<compile_context>
chip_gen: v7x
topology: tpu7x:2x2x1
jax: 0.10.0
libtpu: 0.0.40
codegen_flags: <defaults>
</compile_context>

<pallas_src>
import functools

import jax
import jax.numpy as jnp
from jax import lax
from jax.experimental import pallas as pl
from jax.experimental.pallas import tpu as pltpu

LANE = 128                       # lane width / channel padding target
TM = 128                         # attention destination-row tile
TSRC = 512                       # flash source tile; proj/BN row tile; Np alignment
_VMEM_LIMIT = 48 * 1024 * 1024   # < 64 MiB physical on v7x -> compiler headroom


# ----------------------------- kernels ------------------------------------


def _proj_kernel(x_ref, w_ref, h_ref, s_ref, *, cpa, ones_col):
    """x @ W_aug -> (h | scores).

    Emits h directly in bf16 with a literal `1` written into padding column
    `ones_col` (so the attention matmul also produces the softmax denominator)
    and the (a_dst, a_src) score slab in f32.  No f32 hx slab ever hits HBM.
    """
    hx = jnp.dot(x_ref[...], w_ref[...], preferred_element_type=jnp.float32)
    col = lax.broadcasted_iota(jnp.int32, (x_ref.shape[0], cpa), 1)
    ones_blk = jnp.where(col == ones_col, 1.0, 0.0)   # padded cols of hx are 0
    h_ref[...] = (hx[:, :cpa] + ones_blk).astype(jnp.bfloat16)
    s_ref[...] = hx[:, cpa:]                          # col0 = a_dst, col1 = a_src


def _attn_kernel(adj_ref, h_ref, adst_ref, asrc_ref, b_ref, o_ref,
                 m_sc, acc_sc, *, cp, ones_col):
    """One (dst-tile, src-tile) step of GATConv attention + aggregation,
    flash-style online softmax.  alpha is never materialized; the softmax
    denominator rides along in column `ones_col` of the accumulator."""
    k = pl.program_id(1)

    @pl.when(k == 0)
    def _():
        m_sc[...] = jnp.full_like(m_sc, -1e30)
        acc_sc[...] = jnp.zeros_like(acc_sc)

    adjf = adj_ref[...].astype(jnp.float32)           # int8 {0,1} -> f32
    e = adst_ref[...] + asrc_ref[...]                 # (TM,1)+(1,TSRC)
    e = jnp.maximum(e, 0.2 * e)                       # GATConv leaky_relu (0.2)
    e = jnp.where(adjf > 0.0, e, -1e30)               # mask non-edges

    m_prev = m_sc[...]
    m_new = jnp.maximum(m_prev, jnp.max(e, axis=-1, keepdims=True))
    # Rows that have seen no edge yet have m_new == -1e30; shift by 0 there so
    # exp(-1e30 - 0) underflows to exactly 0 (instead of exp(0) == 1).
    m_safe = jnp.where(m_new <= -1e29, 0.0, m_new)
    p = jnp.exp(e - m_safe)                           # (TM, TSRC), 0 on non-edges
    corr = jnp.exp(m_prev - m_new)                    # online-softmax rescale
    acc_sc[...] = corr * acc_sc[...] + jnp.dot(
        p.astype(jnp.bfloat16), h_ref[...], preferred_element_type=jnp.float32)
    m_sc[...] = m_new

    @pl.when(k == pl.num_programs(1) - 1)
    def _():
        acc = acc_sc[...]
        lane = lax.broadcasted_iota(jnp.int32, acc.shape, 1)
        denom = jnp.sum(jnp.where(lane == ones_col, acc, 0.0),
                        axis=-1, keepdims=True)       # folded softmax denom
        y = acc[:, :cp] * pl.reciprocal(denom, approx=True) + b_ref[...]
        o_ref[...] = jnp.maximum(y, 0.01 * y)         # F.leaky_relu after conv


def _bn_stats_kernel(y_ref, mask_ref, sum_ref, ssq_ref):
    # Pass 1: per-column sum / sum-of-squares over valid nodes (tiled rows).
    @pl.when(pl.program_id(0) == 0)
    def _():
        sum_ref[...] = jnp.zeros_like(sum_ref)
        ssq_ref[...] = jnp.zeros_like(ssq_ref)
    ym = y_ref[...] * mask_ref[...]
    sum_ref[...] += jnp.sum(ym, axis=0, keepdims=True)
    ssq_ref[...] += jnp.sum(ym * y_ref[...], axis=0, keepdims=True)


def _bn_norm_kernel(y_ref, scale_ref, shift_ref, o_ref):
    # Pass 2: affine normalization, tiled and pipelined over rows.
    o_ref[...] = y_ref[...] * scale_ref[...] + shift_ref[...]


# --------------------------- pallas wrappers -------------------------------


def _gat_layer(x_pad, adj, w_aug, bias_pad, *, cp, cpa, ones_col):
    """GATConv (single head) + F.leaky_relu."""
    np_ = x_pad.shape[0]

    # Projection: emits bf16 h (+ ones column) and the f32 score slab directly.
    h_aug, scores = pl.pallas_call(
        functools.partial(_proj_kernel, cpa=cpa, ones_col=ones_col),
        out_shape=(jax.ShapeDtypeStruct((np_, cpa), jnp.bfloat16),
                   jax.ShapeDtypeStruct((np_, LANE), jnp.float32)),
        grid=(np_ // TSRC,),
        in_specs=[pl.BlockSpec((TSRC, cp), lambda i: (i, 0)),
                  pl.BlockSpec((cp, cpa + LANE), lambda i: (0, 0))],
        out_specs=(pl.BlockSpec((TSRC, cpa), lambda i: (i, 0)),
                   pl.BlockSpec((TSRC, LANE), lambda i: (i, 0))),
        compiler_params=pltpu.CompilerParams(
            dimension_semantics=("parallel",),
            vmem_limit_bytes=_VMEM_LIMIT),
    )(x_pad, w_aug)

    # Tiny XLA reshuffles of the per-node score vectors (Np floats each).
    a_dst_col = scores[:, 0:1]                         # (Np, 1)
    a_src_row = scores[:, 1:2].reshape(1, np_)         # (1, Np)

    # Flash-style attention over (dst tile, src tile).
    return pl.pallas_call(
        functools.partial(_attn_kernel, cp=cp, ones_col=ones_col),
        out_shape=jax.ShapeDtypeStruct((np_, cp), jnp.float32),
        grid=(np_ // TM, np_ // TSRC),
        in_specs=[pl.BlockSpec((TM, TSRC), lambda i, k: (i, k)),   # adj tile (int8)
                  pl.BlockSpec((TSRC, cpa), lambda i, k: (k, 0)),  # h source tile
                  pl.BlockSpec((TM, 1), lambda i, k: (i, 0)),      # a_dst tile
                  pl.BlockSpec((1, TSRC), lambda i, k: (0, k)),    # a_src tile
                  pl.BlockSpec((1, cp), lambda i, k: (0, 0))],     # bias
        out_specs=pl.BlockSpec((TM, cp), lambda i, k: (i, 0)),
        scratch_shapes=[pltpu.VMEM((TM, 1), jnp.float32),          # running max
                        pltpu.VMEM((TM, cpa), jnp.float32)],       # accumulator
        compiler_params=pltpu.CompilerParams(
            dimension_semantics=("parallel", "arbitrary"),
            vmem_limit_bytes=_VMEM_LIMIT),
    )(adj, h_aug, a_dst_col, a_src_row, bias_pad)


def _batch_norm(y, mask, gamma_pad, beta_pad, n_valid):
    """torch BatchNorm1d training-mode batch stats (biased var), tiled."""
    np_, cp = y.shape
    sums, ssqs = pl.pallas_call(
        _bn_stats_kernel,
        out_shape=(jax.ShapeDtypeStruct((1, cp), jnp.float32),
                   jax.ShapeDtypeStruct((1, cp), jnp.float32)),
        grid=(np_ // TSRC,),
        in_specs=[pl.BlockSpec((TSRC, cp), lambda i: (i, 0)),
                  pl.BlockSpec((TSRC, 1), lambda i: (i, 0))],
        out_specs=(pl.BlockSpec((1, cp), lambda i: (0, 0)),
                   pl.BlockSpec((1, cp), lambda i: (0, 0))),
        compiler_params=pltpu.CompilerParams(
            dimension_semantics=("arbitrary",),
            vmem_limit_bytes=_VMEM_LIMIT),
    )(y, mask)

    mean = sums / n_valid
    var = jnp.maximum(ssqs / n_valid - mean * mean, 0.0)
    scale = gamma_pad * lax.rsqrt(var + 1e-5)
    shift = beta_pad - mean * scale

    return pl.pallas_call(
        _bn_norm_kernel,
        out_shape=jax.ShapeDtypeStruct((np_, cp), jnp.float32),
        grid=(np_ // TSRC,),
        in_specs=[pl.BlockSpec((TSRC, cp), lambda i: (i, 0)),
                  pl.BlockSpec((1, cp), lambda i: (0, 0)),
                  pl.BlockSpec((1, cp), lambda i: (0, 0))],
        out_specs=pl.BlockSpec((TSRC, cp), lambda i: (i, 0)),
        compiler_params=pltpu.CompilerParams(
            dimension_semantics=("parallel",),
            vmem_limit_bytes=_VMEM_LIMIT),
    )(y, scale, shift)


# ------------------------------ forward ------------------------------------


def _pad2(a, rows, cols):
    out = jnp.zeros((rows, cols), jnp.float32)
    return out.at[:a.shape[0], :a.shape[1]].set(a.astype(jnp.float32))


def _augment_weight(w, att_src, att_dst, cp, cpa):
    """W_aug = [W | 0-pad | W@att_dst^T, W@att_src^T, 0...] of shape (Cp, CpA+128)."""
    wp = _pad2(w, cp, cp)
    ad_col = wp @ _pad2(att_dst, 1, cp).T              # (Cp, 1)
    as_col = wp @ _pad2(att_src, 1, cp).T              # (Cp, 1)
    score_blk = jnp.zeros((cp, LANE), jnp.float32)
    score_blk = score_blk.at[:, 0:1].set(ad_col).at[:, 1:2].set(as_col)
    blocks = [wp]
    if cpa > cp:
        blocks.append(jnp.zeros((cp, cpa - cp), jnp.float32))
    blocks.append(score_blk)
    return jnp.concatenate(blocks, axis=1)


@functools.partial(jax.jit, static_argnames=("num_graphs", "max_nodes"))
def gat_forward(x, edge_index, batch, params, *, num_graphs, max_nodes):
    """Gat.forward(graph_batch, pool=False).

    edge_attr is accepted by GATConv but ignored (edge_dim=None), matching the
    PyTorch module.
    """
    N, C = x.shape
    Cp = ((C + LANE - 1) // LANE) * LANE
    # Put the denominator "ones" column into the channel padding when possible
    # (no extra lane block -> no extra h HBM traffic); otherwise extend.
    if C < Cp:
        CpA, ones_col = Cp, C
    else:
        CpA, ones_col = Cp + LANE, Cp
    Np = ((N + TSRC - 1) // TSRC) * TSRC               # multiple of TSRC (and TM)

    x_pad = jnp.zeros((Np, Cp), jnp.float32).at[:N, :C].set(x.astype(jnp.float32))

    # Dense int8 adjacency: adj[dst, src] = 1 on edges; GATConv adds one self
    # loop per node (padded nodes too, so every softmax row has an edge).
    src = edge_index[0].astype(jnp.int32)
    dst = edge_index[1].astype(jnp.int32)
    adj = jnp.zeros((Np, Np), jnp.int8).at[dst, src].set(1)
    idx = jnp.arange(Np)
    adj = adj.at[idx, idx].set(1)
    mask = jnp.zeros((Np, 1), jnp.float32).at[:N].set(1.0)

    w1_aug = _augment_weight(params['w1'], params['att_src1'],
                             params['att_dst1'], Cp, CpA)
    w2_aug = _augment_weight(params['w2'], params['att_src2'],
                             params['att_dst2'], Cp, CpA)
    b1 = _pad2(params['b1'], 1, Cp)
    b2 = _pad2(params['b2'], 1, Cp)
    gamma = _pad2(params['gamma'], 1, Cp)
    beta = _pad2(params['beta'], 1, Cp)

    h1 = _gat_layer(x_pad, adj, w1_aug, b1, cp=Cp, cpa=CpA, ones_col=ones_col)
    h2 = _gat_layer(h1, adj, w2_aug, b2, cp=Cp, cpa=CpA, ones_col=ones_col)
    y = _batch_norm(h2, mask, gamma, beta, float(N))[:N, :C]

    # pool=False tail: to_data_list() + pad_sequence, fully vectorized.
    counts = jax.ops.segment_sum(jnp.ones((N,), jnp.int32), batch,
                                 num_segments=num_graphs)
    starts = jnp.concatenate(
        [jnp.zeros((1,), jnp.int32), jnp.cumsum(counts)[:-1]])
    pos = jnp.arange(N, dtype=jnp.int32) - starts[batch]
    X = jnp.zeros((num_graphs, max_nodes, C), jnp.float32).at[batch, pos].set(y)
    return X


# --------------------------- pure-JAX reference -----------------------------


def _reference(x, adj_n, params):
    def layer(h_in, w, a_s, a_d, b):
        h = h_in @ w
        e = (h @ a_d.T) + (h @ a_s.T).T                # e[i, j] = dst_i + src_j
        e = jnp.maximum(e, 0.2 * e)
        e = jnp.where(adj_n > 0, e, -jnp.inf)
        p = jax.nn.softmax(e, axis=-1)
        y = p @ h + b
        return jnp.maximum(y, 0.01 * y)

    h1 = layer(x, params['w1'], params['att_src1'], params['att_dst1'],
               params['b1'])
    h2 = layer(h1, params['w2'], params['att_src2'], params['att_dst2'],
               params['b2'])
    mean = h2.mean(0, keepdims=True)
    var = ((h2 - mean) ** 2).mean(0, keepdims=True)
    return params['gamma'] * (h2 - mean) * lax.rsqrt(var + 1e-5) + params['beta']


# ---------------------------------- demo ------------------------------------


if __name__ == "__main__":
    key = jax.random.PRNGKey(0)
    C = 32  # in_channels == out_channels (needed to stack gat1 -> gat2)
    sizes = [320, 290]                                  # exercises multi-tile grids
    N = sum(sizes)

    k_x, k_w1, k_w2, k_a1s, k_a1d, k_a2s, k_a2d = jax.random.split(key, 7)
    x = jax.random.normal(k_x, (N, C), jnp.float32)

    # bidirectional ring edges within each graph
    src_list, dst_list = [], []
    off = 0
    for n in sizes:
        for i in range(n):
            j = (i + 1) % n
            src_list += [off + i, off + j]
            dst_list += [off + j, off + i]
        off += n
    edge_index = jnp.array([src_list, dst_list], dtype=jnp.int32)
    edge_attr = jnp.ones((edge_index.shape[1], 1), jnp.float32)  # ignored (edge_dim=None)
    batch = jnp.concatenate(
        [jnp.full((n,), g, jnp.int32) for g, n in enumerate(sizes)])

    params = dict(
        w1=0.2 * jax.random.normal(k_w1, (C, C), jnp.float32),
        att_src1=0.2 * jax.random.normal(k_a1s, (1, C), jnp.float32),
        att_dst1=0.2 * jax.random.normal(k_a1d, (1, C), jnp.float32),
        b1=jnp.zeros((1, C), jnp.float32),
        w2=0.2 * jax.random.normal(k_w2, (C, C), jnp.float32),
        att_src2=0.2 * jax.random.normal(k_a2s, (1, C), jnp.float32),
        att_dst2=0.2 * jax.random.normal(k_a2d, (1, C), jnp.float32),
        b2=jnp.zeros((1, C), jnp.float32),
        gamma=jnp.ones((1, C), jnp.float32),   # BatchNorm weight
        beta=jnp.zeros((1, C), jnp.float32),   # BatchNorm bias
    )

    X = gat_forward(x, edge_index, batch, params,
                    num_graphs=len(sizes), max_nodes=max(sizes))
    X = jax.block_until_ready(X)
    assert X.shape == (len(sizes), max(sizes), C), X.shape
    assert bool(jnp.all(jnp.isfinite(X)))

    # Loose-tolerance check vs. a dense f32 reference (bf16 aggregation +
    # approx reciprocal in the kernel path).
    adj_ref = jnp.zeros((N, N), jnp.float32).at[
        edge_index[1], edge_index[0]].set(1.0)
    adj_ref = adj_ref.at[jnp.arange(N), jnp.arange(N)].set(1.0)
    y_ref = _reference(x, adj_ref, params)
    pos_ref = jnp.concatenate([jnp.arange(n, dtype=jnp.int32) for n in sizes])
    X_ref = jnp.zeros_like(X).at[batch, pos_ref].set(y_ref)
    err = float(jnp.max(jnp.abs(X - X_ref)))
    assert err < 0.2, err

    print("KERNEL_OK")
</pallas_src>

<mosaic_0001>
module attributes {stable_mosaic.version = 11 : i64} {
  func.func @_proj_kernel(%arg0: i32, %arg1: memref<512x128xf32, #tpu.memory_space<vmem>>, %arg2: memref<128x256xf32, #tpu.memory_space<vmem>>, %arg3: memref<512x128xbf16, #tpu.memory_space<vmem>>, %arg4: memref<512x128xf32, #tpu.memory_space<vmem>>) attributes {dimension_semantics = [#tpu.dimension_semantics<parallel>], iteration_bounds = array<i64: 2>, scalar_prefetch = 0 : i64, scratch_operands = 0 : i64, tpu.core_type = #tpu.core_type<tc>, window_params = [{transform_indices = @transform_0, window_bounds = array<i64: 512, 128>}, {pipeline_mode = #tpu.pipeline_mode<synchronous>, transform_indices = @transform_1, window_bounds = array<i64: 128, 256>}, {transform_indices = @transform_2, window_bounds = array<i64: 512, 128>}, {transform_indices = @transform_3, window_bounds = array<i64: 512, 128>}]} {
    %c0 = arith.constant 0 : index
    %c0_0 = arith.constant 0 : index
    %0 = vector.load %arg1[%c0, %c0_0] : memref<512x128xf32, #tpu.memory_space<vmem>>, vector<512x128xf32>
    %c0_1 = arith.constant 0 : index
    %c0_2 = arith.constant 0 : index
    %1 = vector.load %arg2[%c0_1, %c0_2] : memref<128x256xf32, #tpu.memory_space<vmem>>, vector<128x256xf32>
    %cst = arith.constant dense<0.000000e+00> : vector<512x256xf32>
    %2 = tpu.matmul %0, %1, %cst {dimension_numbers = #tpu.dot_dimension_numbers<[1], [0], [0], [1], [0, 0, 1, 1], [], []>} : vector<512x128xf32>, vector<128x256xf32>, vector<512x256xf32> -> vector<512x256xf32>
    %3 = tpu.iota {dimensions = array<i32: 1>} : vector<512x128xi32>
    %c32_i32 = arith.constant 32 : i32
    %4 = vector.broadcast %c32_i32 : i32 to vector<512x128xi32>
    %5 = arith.cmpi eq, %3, %4 : vector<512x128xi32>
    %cst_3 = arith.constant 1.000000e+00 : f32
    %cst_4 = arith.constant 0.000000e+00 : f32
    %6 = vector.broadcast %cst_3 : f32 to vector<512x128xf32>
    %7 = vector.broadcast %cst_4 : f32 to vector<512x128xf32>
    %8 = arith.select %5, %6, %7 : vector<512x128xi1>, vector<512x128xf32>
    %9 = vector.extract_strided_slice %2 {offsets = [0, 0], sizes = [512, 128], strides = [1, 1]} : vector<512x256xf32> to vector<512x128xf32>
    %10 = arith.addf %9, %8 : vector<512x128xf32>
    %11 = arith.truncf %10 : vector<512x128xf32> to vector<512x128xbf16>
    %c0_5 = arith.constant 0 : index
    %c0_6 = arith.constant 0 : index
    %12 = vector.load %arg3[%c0_5, %c0_6] : memref<512x128xbf16, #tpu.memory_space<vmem>>, vector<512x128xbf16>
    tpu.vector_store %arg3[%c0_5, %c0_6], %11 {strides = array<i32>} : memref<512x128xbf16, #tpu.memory_space<vmem>>, vector<512x128xbf16>,
    %13 = vector.extract_strided_slice %2 {offsets = [0, 128], sizes = [512, 128], strides = [1, 1]} : vector<512x256xf32> to vector<512x128xf32>
    %c0_7 = arith.constant 0 : index
    %c0_8 = arith.constant 0 : index
    %14 = vector.load %arg4[%c0_7, %c0_8] : memref<512x128xf32, #tpu.memory_space<vmem>>, vector<512x128xf32>
    tpu.vector_store %arg4[%c0_7, %c0_8], %13 {strides = array<i32>} : memref<512x128xf32, #tpu.memory_space<vmem>>, vector<512x128xf32>,
    return
  }
  func.func @transform_0(%arg0: i32) -> (i32, i32) {
    %c0_i32 = arith.constant 0 : i32
    %c0_i32_0 = arith.constant 0 : i32
    return %arg0, %c0_i32 : i32, i32
  }
  func.func @transform_1(%arg0: i32) -> (i32, i32) {
    %c0_i32 = arith.constant 0 : i32
    %c0_i32_0 = arith.constant 0 : i32
    %c0_i32_1 = arith.constant 0 : i32
    return %c0_i32, %c0_i32_0 : i32, i32
  }
  func.func @transform_2(%arg0: i32) -> (i32, i32) {
    %c0_i32 = arith.constant 0 : i32
    %c0_i32_0 = arith.constant 0 : i32
    return %arg0, %c0_i32 : i32, i32
  }
  func.func @transform_3(%arg0: i32) -> (i32, i32) {
    %c0_i32 = arith.constant 0 : i32
    %c0_i32_0 = arith.constant 0 : i32
    return %arg0, %c0_i32 : i32, i32
  }
}

module attributes {stable_mosaic.version = 11 : i64} {
  func.func @_attn_kernel(%arg0: i32, %arg1: i32, %arg2: memref<128x512xi8, #tpu.memory_space<vmem>>, %arg3: memref<512x128xbf16, #tpu.memory_space<vmem>>, %arg4: memref<128x1xf32, #tpu.memory_space<vmem>>, %arg5: memref<1x512xf32, #tpu.memory_space<vmem>>, %arg6: memref<1x128xf32, #tpu.memory_space<vmem>>, %arg7: memref<128x128xf32, #tpu.memory_space<vmem>>, %arg8: memref<128x1xf32, #tpu.memory_space<vmem>>, %arg9: memref<128x128xf32, #tpu.memory_space<vmem>>) attributes {dimension_semantics = [#tpu.dimension_semantics<parallel>, #tpu.dimension_semantics<arbitrary>], iteration_bounds = array<i64: 8, 2>, scalar_prefetch = 0 : i64, scratch_operands = 2 : i64, tpu.core_type = #tpu.core_type<tc>, window_params = [{transform_indices = @transform_0, window_bounds = array<i64: 128, 512>}, {transform_indices = @transform_1, window_bounds = array<i64: 512, 128>}, {transform_indices = @transform_2, window_bounds = array<i64: 128, 1>}, {transform_indices = @transform_3, window_bounds = array<i64: 1, 512>}, {pipeline_mode = #tpu.pipeline_mode<synchronous>, transform_indices = @transform_4, window_bounds = array<i64: 1, 128>}, {transform_indices = @transform_5, window_bounds = array<i64: 128, 128>}]} {
    %c0_i32 = arith.constant 0 : i32
    %0 = arith.cmpi eq, %arg1, %c0_i32 : i32
    %1 = arith.extui %0 : i1 to i32
    %c0_i32_0 = arith.constant 0 : i32
    %2 = arith.cmpi ne, %1, %c0_i32_0 : i32
    scf.if %2 {
      %cst_23 = arith.constant -1.000000e+30 : f32
      %42 = vector.broadcast %cst_23 : f32 to vector<128x1xf32>
      %c0_24 = arith.constant 0 : index
      %c0_25 = arith.constant 0 : index
      %43 = vector.load %arg8[%c0_24, %c0_25] : memref<128x1xf32, #tpu.memory_space<vmem>>, vector<128x1xf32>
      tpu.vector_store %arg8[%c0_24, %c0_25], %42 {strides = array<i32>} : memref<128x1xf32, #tpu.memory_space<vmem>>, vector<128x1xf32>,
      %cst_26 = arith.constant 0.000000e+00 : f32
      %44 = vector.broadcast %cst_26 : f32 to vector<128x128xf32>
      %c0_27 = arith.constant 0 : index
      %c0_28 = arith.constant 0 : index
      %45 = vector.load %arg9[%c0_27, %c0_28] : memref<128x128xf32, #tpu.memory_space<vmem>>, vector<128x128xf32>
      tpu.vector_store %arg9[%c0_27, %c0_28], %44 {strides = array<i32>} : memref<128x128xf32, #tpu.memory_space<vmem>>, vector<128x128xf32>,
    } else {
    }
    %c0 = arith.constant 0 : index
    %c0_1 = arith.constant 0 : index
    %3 = vector.load %arg2[%c0, %c0_1] : memref<128x512xi8, #tpu.memory_space<vmem>>, vector<128x512xi8>
    %4 = arith.sitofp %3 : vector<128x512xi8> to vector<128x512xf32>
    %c0_2 = arith.constant 0 : index
    %c0_3 = arith.constant 0 : index
    %5 = vector.load %arg4[%c0_2, %c0_3] : memref<128x1xf32, #tpu.memory_space<vmem>>, vector<128x1xf32>
    %c0_4 = arith.constant 0 : index
    %c0_5 = arith.constant 0 : index
    %6 = vector.load %arg5[%c0_4, %c0_5] : memref<1x512xf32, #tpu.memory_space<vmem>>, vector<1x512xf32>
    %7 = vector.broadcast %5 : vector<128x1xf32> to vector<128x512xf32>
    %8 = vector.broadcast %6 : vector<1x512xf32> to vector<128x512xf32>
    %9 = arith.addf %7, %8 : vector<128x512xf32>
    %cst = arith.constant 2.000000e-01 : f32
    %10 = vector.broadcast %cst : f32 to vector<128x512xf32>
    %11 = arith.mulf %10, %9 : vector<128x512xf32>
    %12 = arith.maximumf %9, %11 : vector<128x512xf32>
    %cst_6 = arith.constant 0.000000e+00 : f32
    %13 = vector.broadcast %cst_6 : f32 to vector<128x512xf32>
    %14 = arith.cmpf ogt, %4, %13 : vector<128x512xf32>
    %cst_7 = arith.constant -1.000000e+30 : f32
    %15 = vector.broadcast %cst_7 : f32 to vector<128x512xf32>
    %16 = arith.select %14, %12, %15 : vector<128x512xi1>, vector<128x512xf32>
    %c0_8 = arith.constant 0 : index
    %c0_9 = arith.constant 0 : index
    %17 = vector.load %arg8[%c0_8, %c0_9] : memref<128x1xf32, #tpu.memory_space<vmem>>, vector<128x1xf32>
    %cst_10 = arith.constant dense<0xFF800000> : vector<128xf32>
    %18 = vector.multi_reduction <maximumf>, %16, %cst_10 [1] : vector<128x512xf32> to vector<128xf32>
    %19 = vector.shape_cast %18 : vector<128xf32> to vector<128x1xf32>
    %20 = arith.maximumf %17, %19 : vector<128x1xf32>
    %cst_11 = arith.constant -1.000000e+29 : f32
    %21 = vector.broadcast %cst_11 : f32 to vector<128x1xf32>
    %22 = arith.cmpf ole, %20, %21 : vector<128x1xf32>
    %cst_12 = arith.constant 0.000000e+00 : f32
    %23 = vector.broadcast %cst_12 : f32 to vector<128x1xf32>
    %24 = arith.select %22, %23, %20 : vector<128x1xi1>, vector<128x1xf32>
    %25 = vector.broadcast %24 : vector<128x1xf32> to vector<128x512xf32>
    %26 = arith.subf %16, %25 : vector<128x512xf32>
    %27 = math.exp %26 : vector<128x512xf32>
    %28 = arith.subf %17, %20 : vector<128x1xf32>
    %29 = math.exp %28 : vector<128x1xf32>
    %c0_13 = arith.constant 0 : index
    %c0_14 = arith.constant 0 : index
    %30 = vector.load %arg9[%c0_13, %c0_14] : memref<128x128xf32, #tpu.memory_space<vmem>>, vector<128x128xf32>
    %31 = vector.broadcast %29 : vector<128x1xf32> to vector<128x128xf32>
    %32 = arith.mulf %31, %30 : vector<128x128xf32>
    %33 = arith.truncf %27 : vector<128x512xf32> to vector<128x512xbf16>
    %c0_15 = arith.constant 0 : index
    %c0_16 = arith.constant 0 : index
    %34 = vector.load %arg3[%c0_15, %c0_16] : memref<512x128xbf16, #tpu.memory_space<vmem>>, vector<512x128xbf16>
    %cst_17 = arith.constant dense<0.000000e+00> : vector<128x128xf32>
    %35 = tpu.matmul %33, %34, %cst_17 {dimension_numbers = #tpu.dot_dimension_numbers<[1], [0], [0], [1], [0, 0, 1, 1], [], []>} : vector<128x512xbf16>, vector<512x128xbf16>, vector<128x128xf32> -> vector<128x128xf32>
    %36 = arith.addf %32, %35 : vector<128x128xf32>
    %c0_18 = arith.constant 0 : index
    %c0_19 = arith.constant 0 : index
    %37 = vector.load %arg9[%c0_18, %c0_19] : memref<128x128xf32, #tpu.memory_space<vmem>>, vector<128x128xf32>
    tpu.vector_store %arg9[%c0_18, %c0_19], %36 {strides = array<i32>} : memref<128x128xf32, #tpu.memory_space<vmem>>, vector<128x128xf32>,
    %c0_20 = arith.constant 0 : index
    %c0_21 = arith.constant 0 : index
    %38 = vector.load %arg8[%c0_20, %c0_21] : memref<128x1xf32, #tpu.memory_space<vmem>>, vector<128x1xf32>
    tpu.vector_store %arg8[%c0_20, %c0_21], %20 {strides = array<i32>} : memref<128x1xf32, #tpu.memory_space<vmem>>, vector<128x1xf32>,
    %c1_i32 = arith.constant 1 : i32
    %39 = arith.cmpi eq, %arg1, %c1_i32 : i32
    %40 = arith.extui %39 : i1 to i32
    %c0_i32_22 = arith.constant 0 : i32
    %41 = arith.cmpi ne, %40, %c0_i32_22 : i32
    scf.if %41 {
      %c0_23 = arith.constant 0 : index
      %c0_24 = arith.constant 0 : index
      %42 = vector.load %arg9[%c0_23, %c0_24] : memref<128x128xf32, #tpu.memory_space<vmem>>, vector<128x128xf32>
      %43 = tpu.iota {dimensions = array<i32: 1>} : vector<128x128xi32>
      %c32_i32 = arith.constant 32 : i32
      %44 = vector.broadcast %c32_i32 : i32 to vector<128x128xi32>
      %45 = arith.cmpi eq, %43, %44 : vector<128x128xi32>
      %cst_25 = arith.constant 0.000000e+00 : f32
      %46 = vector.broadcast %cst_25 : f32 to vector<128x128xf32>
      %47 = arith.select %45, %42, %46 : vector<128x128xi1>, vector<128x128xf32>
      %cst_26 = arith.constant dense<0.000000e+00> : vector<128xf32>
      %48 = vector.multi_reduction <add>, %47, %cst_26 [1] : vector<128x128xf32> to vector<128xf32>
      %49 = vector.shape_cast %48 : vector<128xf32> to vector<128x1xf32>
      %50 = tpu.reciprocal %49 {approx = true} : vector<128x1xf32> -> vector<128x1xf32>
      %51 = vector.broadcast %50 : vector<128x1xf32> to vector<128x128xf32>
      %52 = arith.mulf %42, %51 : vector<128x128xf32>
      %c0_27 = arith.constant 0 : index
      %c0_28 = arith.constant 0 : index
      %53 = vector.load %arg6[%c0_27, %c0_28] : memref<1x128xf32, #tpu.memory_space<vmem>>, vector<1x128xf32>
      %54 = vector.broadcast %53 : vector<1x128xf32> to vector<128x128xf32>
      %55 = arith.addf %52, %54 : vector<128x128xf32>
      %cst_29 = arith.constant 0.00999999977 : f32
      %56 = vector.broadcast %cst_29 : f32 to vector<128x128xf32>
      %57 = arith.mulf %56, %55 : vector<128x128xf32>
      %58 = arith.maximumf %55, %57 : vector<128x128xf32>
      %c0_30 = arith.constant 0 : index
      %c0_31 = arith.constant 0 : index
      %59 = vector.load %arg7[%c0_30, %c0_31] : memref<128x128xf32, #tpu.memory_space<vmem>>, vector<128x128xf32>
      tpu.vector_store %arg7[%c0_30, %c0_31], %58 {strides = array<i32>} : memref<128x128xf32, #tpu.memory_space<vmem>>, vector<128x128xf32>,
    } else {
    }
    return
  }
  func.func @transform_0(%arg0: i32, %arg1: i32) -> (i32, i32) {
    %c0_i32 = arith.constant 0 : i32
    return %arg0, %arg1 : i32, i32
  }
  func.func @transform_1(%arg0: i32, %arg1: i32) -> (i32, i32) {
    %c0_i32 = arith.constant 0 : i32
    %c0_i32_0 = arith.constant 0 : i32
    return %arg1, %c0_i32 : i32, i32
  }
  func.func @transform_2(%arg0: i32, %arg1: i32) -> (i32, i32) {
    %c0_i32 = arith.constant 0 : i32
    %c0_i32_0 = arith.constant 0 : i32
    return %arg0, %c0_i32 : i32, i32
  }
  func.func @transform_3(%arg0: i32, %arg1: i32) -> (i32, i32) {
    %c0_i32 = arith.constant 0 : i32
    %c0_i32_0 = arith.constant 0 : i32
    return %c0_i32, %arg1 : i32, i32
  }
  func.func @transform_4(%arg0: i32, %arg1: i32) -> (i32, i32) {
    %c0_i32 = arith.constant 0 : i32
    %c0_i32_0 = arith.constant 0 : i32
    %c0_i32_1 = arith.constant 0 : i32
    return %c0_i32, %c0_i32_0 : i32, i32
  }
  func.func @transform_5(%arg0: i32, %arg1: i32) -> (i32, i32) {
    %c0_i32 = arith.constant 0 : i32
    %c0_i32_0 = arith.constant 0 : i32
    return %arg0, %c0_i32 : i32, i32
  }
}

module attributes {stable_mosaic.version = 11 : i64} {
  func.func @_bn_stats_kernel(%arg0: i32, %arg1: memref<512x128xf32, #tpu.memory_space<vmem>>, %arg2: memref<512x1xf32, #tpu.memory_space<vmem>>, %arg3: memref<1x128xf32, #tpu.memory_space<vmem>>, %arg4: memref<1x128xf32, #tpu.memory_space<vmem>>) attributes {dimension_semantics = [#tpu.dimension_semantics<arbitrary>], iteration_bounds = array<i64: 2>, scalar_prefetch = 0 : i64, scratch_operands = 0 : i64, tpu.core_type = #tpu.core_type<tc>, window_params = [{transform_indices = @transform_0, window_bounds = array<i64: 512, 128>}, {transform_indices = @transform_1, window_bounds = array<i64: 512, 1>}, {pipeline_mode = #tpu.pipeline_mode<synchronous>, transform_indices = @transform_2, window_bounds = array<i64: 1, 128>}, {pipeline_mode = #tpu.pipeline_mode<synchronous>, transform_indices = @transform_3, window_bounds = array<i64: 1, 128>}]} {
    %c0_i32 = arith.constant 0 : i32
    %0 = arith.cmpi eq, %arg0, %c0_i32 : i32
    %1 = arith.extui %0 : i1 to i32
    %c0_i32_0 = arith.constant 0 : i32
    %2 = arith.cmpi ne, %1, %c0_i32_0 : i32
    scf.if %2 {
      %cst_15 = arith.constant 0.000000e+00 : f32
      %19 = vector.broadcast %cst_15 : f32 to vector<1x128xf32>
      %c0_16 = arith.constant 0 : index
      %c0_17 = arith.constant 0 : index
      %20 = vector.load %arg3[%c0_16, %c0_17] : memref<1x128xf32, #tpu.memory_space<vmem>>, vector<1x128xf32>
      tpu.vector_store %arg3[%c0_16, %c0_17], %19 {strides = array<i32>} : memref<1x128xf32, #tpu.memory_space<vmem>>, vector<1x128xf32>,
      %cst_18 = arith.constant 0.000000e+00 : f32
      %21 = vector.broadcast %cst_18 : f32 to vector<1x128xf32>
      %c0_19 = arith.constant 0 : index
      %c0_20 = arith.constant 0 : index
      %22 = vector.load %arg4[%c0_19, %c0_20] : memref<1x128xf32, #tpu.memory_space<vmem>>, vector<1x128xf32>
      tpu.vector_store %arg4[%c0_19, %c0_20], %21 {strides = array<i32>} : memref<1x128xf32, #tpu.memory_space<vmem>>, vector<1x128xf32>,
    } else {
    }
    %c0 = arith.constant 0 : index
    %c0_1 = arith.constant 0 : index
    %3 = vector.load %arg1[%c0, %c0_1] : memref<512x128xf32, #tpu.memory_space<vmem>>, vector<512x128xf32>
    %c0_2 = arith.constant 0 : index
    %c0_3 = arith.constant 0 : index
    %4 = vector.load %arg2[%c0_2, %c0_3] : memref<512x1xf32, #tpu.memory_space<vmem>>, vector<512x1xf32>
    %5 = vector.broadcast %4 : vector<512x1xf32> to vector<512x128xf32>
    %6 = arith.mulf %3, %5 : vector<512x128xf32>
    %c0_4 = arith.constant 0 : index
    %c0_5 = arith.constant 0 : index
    %7 = vector.load %arg3[%c0_4, %c0_5] : memref<1x128xf32, #tpu.memory_space<vmem>>, vector<1x128xf32>
    %cst = arith.constant dense<0.000000e+00> : vector<128xf32>
    %8 = vector.multi_reduction <add>, %6, %cst [0] : vector<512x128xf32> to vector<128xf32>
    %9 = vector.shape_cast %8 : vector<128xf32> to vector<1x128xf32>
    %10 = arith.addf %7, %9 : vector<1x128xf32>
    %c0_6 = arith.constant 0 : index
    %c0_7 = arith.constant 0 : index
    %11 = vector.load %arg3[%c0_6, %c0_7] : memref<1x128xf32, #tpu.memory_space<vmem>>, vector<1x128xf32>
    tpu.vector_store %arg3[%c0_6, %c0_7], %10 {strides = array<i32>} : memref<1x128xf32, #tpu.memory_space<vmem>>, vector<1x128xf32>,
    %c0_8 = arith.constant 0 : index
    %c0_9 = arith.constant 0 : index
    %12 = vector.load %arg4[%c0_8, %c0_9] : memref<1x128xf32, #tpu.memory_space<vmem>>, vector<1x128xf32>
    %c0_10 = arith.constant 0 : index
    %c0_11 = arith.constant 0 : index
    %13 = vector.load %arg1[%c0_10, %c0_11] : memref<512x128xf32, #tpu.memory_space<vmem>>, vector<512x128xf32>
    %14 = arith.mulf %6, %13 : vector<512x128xf32>
    %cst_12 = arith.constant dense<0.000000e+00> : vector<128xf32>
    %15 = vector.multi_reduction <add>, %14, %cst_12 [0] : vector<512x128xf32> to vector<128xf32>
    %16 = vector.shape_cast %15 : vector<128xf32> to vector<1x128xf32>
    %17 = arith.addf %12, %16 : vector<1x128xf32>
    %c0_13 = arith.constant 0 : index
    %c0_14 = arith.constant 0 : index
    %18 = vector.load %arg4[%c0_13, %c0_14] : memref<1x128xf32, #tpu.memory_space<vmem>>, vector<1x128xf32>
    tpu.vector_store %arg4[%c0_13, %c0_14], %17 {strides = array<i32>} : memref<1x128xf32, #tpu.memory_space<vmem>>, vector<1x128xf32>,
    return
  }
  func.func @transform_0(%arg0: i32) -> (i32, i32) {
    %c0_i32 = arith.constant 0 : i32
    %c0_i32_0 = arith.constant 0 : i32
    return %arg0, %c0_i32 : i32, i32
  }
  func.func @transform_1(%arg0: i32) -> (i32, i32) {
    %c0_i32 = arith.constant 0 : i32
    %c0_i32_0 = arith.constant 0 : i32
    return %arg0, %c0_i32 : i32, i32
  }
  func.func @transform_2(%arg0: i32) -> (i32, i32) {
    %c0_i32 = arith.constant 0 : i32
    %c0_i32_0 = arith.constant 0 : i32
    %c0_i32_1 = arith.constant 0 : i32
    return %c0_i32, %c0_i32_0 : i32, i32
  }
  func.func @transform_3(%arg0: i32) -> (i32, i32) {
    %c0_i32 = arith.constant 0 : i32
    %c0_i32_0 = arith.constant 0 : i32
    %c0_i32_1 = arith.constant 0 : i32
    return %c0_i32, %c0_i32_0 : i32, i32
  }
}

module attributes {stable_mosaic.version = 11 : i64} {
  func.func @_bn_norm_kernel(%arg0: i32, %arg1: memref<512x128xf32, #tpu.memory_space<vmem>>, %arg2: memref<1x128xf32, #tpu.memory_space<vmem>>, %arg3: memref<1x128xf32, #tpu.memory_space<vmem>>, %arg4: memref<512x128xf32, #tpu.memory_space<vmem>>) attributes {dimension_semantics = [#tpu.dimension_semantics<parallel>], iteration_bounds = array<i64: 2>, scalar_prefetch = 0 : i64, scratch_operands = 0 : i64, tpu.core_type = #tpu.core_type<tc>, window_params = [{transform_indices = @transform_0, window_bounds = array<i64: 512, 128>}, {pipeline_mode = #tpu.pipeline_mode<synchronous>, transform_indices = @transform_1, window_bounds = array<i64: 1, 128>}, {pipeline_mode = #tpu.pipeline_mode<synchronous>, transform_indices = @transform_2, window_bounds = array<i64: 1, 128>}, {transform_indices = @transform_3, window_bounds = array<i64: 512, 128>}]} {
    %c0 = arith.constant 0 : index
    %c0_0 = arith.constant 0 : index
    %0 = vector.load %arg1[%c0, %c0_0] : memref<512x128xf32, #tpu.memory_space<vmem>>, vector<512x128xf32>
    %c0_1 = arith.constant 0 : index
    %c0_2 = arith.constant 0 : index
    %1 = vector.load %arg2[%c0_1, %c0_2] : memref<1x128xf32, #tpu.memory_space<vmem>>, vector<1x128xf32>
    %2 = vector.broadcast %1 : vector<1x128xf32> to vector<512x128xf32>
    %3 = arith.mulf %0, %2 : vector<512x128xf32>
    %c0_3 = arith.constant 0 : index
    %c0_4 = arith.constant 0 : index
    %4 = vector.load %arg3[%c0_3, %c0_4] : memref<1x128xf32, #tpu.memory_space<vmem>>, vector<1x128xf32>
    %5 = vector.broadcast %4 : vector<1x128xf32> to vector<512x128xf32>
    %6 = arith.addf %3, %5 : vector<512x128xf32>
    %c0_5 = arith.constant 0 : index
    %c0_6 = arith.constant 0 : index
    %7 = vector.load %arg4[%c0_5, %c0_6] : memref<512x128xf32, #tpu.memory_space<vmem>>, vector<512x128xf32>
    tpu.vector_store %arg4[%c0_5, %c0_6], %6 {strides = array<i32>} : memref<512x128xf32, #tpu.memory_space<vmem>>, vector<512x128xf32>,
    return
  }
  func.func @transform_0(%arg0: i32) -> (i32, i32) {
    %c0_i32 = arith.constant 0 : i32
    %c0_i32_0 = arith.constant 0 : i32
    return %arg0, %c0_i32 : i32, i32
  }
  func.func @transform_1(%arg0: i32) -> (i32, i32) {
    %c0_i32 = arith.constant 0 : i32
    %c0_i32_0 = arith.constant 0 : i32
    %c0_i32_1 = arith.constant 0 : i32
    return %c0_i32, %c0_i32_0 : i32, i32
  }
  func.func @transform_2(%arg0: i32) -> (i32, i32) {
    %c0_i32 = arith.constant 0 : i32
    %c0_i32_0 = arith.constant 0 : i32
    %c0_i32_1 = arith.constant 0 : i32
    return %c0_i32, %c0_i32_0 : i32, i32
  }
  func.func @transform_3(%arg0: i32) -> (i32, i32) {
    %c0_i32 = arith.constant 0 : i32
    %c0_i32_0 = arith.constant 0 : i32
    return %arg0, %c0_i32 : i32, i32
  }
}

</mosaic_0001>

<llo_original>
// kernel: gat_forward.6
$region0: #{gat_forward.6}
  #allocation0 [shape = 'u32[]', space=smem, size = 0x4, offset = 0x4, fixed_abs, tag = 'smem constant byte address 0x4 - core index']
  #allocation1 [shape = 'u32[144,128]{1,0:T(1,128)}', space=vmem, size = 0x12000, scoped, tag = 'internal scratch']
  %s0 = inlined_call_operand.vmem [shape: f32[1024,128], index: 0, kind: input, shape index: {}]
  %s1 = inlined_call_operand.vmem [shape: f32[128,256], index: 1, kind: input, shape index: {}]
  %s2 = inlined_call_operand.vmem [shape: bf16[1024,128], index: 2, kind: output, shape index: {0}]
  %s3 = inlined_call_operand.vmem [shape: f32[1024,128], index: 3, kind: output, shape index: {1}]
  %4 = xla_tuple %s2, %s3
  %s5 = sld [smem:[#allocation0]]
  $region49: #{gat_forward.6} parent=0
    _
  %s7 = ssub.s32 1, %s5
  %s8 = scalar_select 0, %s7, %s5
  loop: start=0, step=1, limit=4
  $region2: #{gat_forward.6} parent=0 // loop_pre_header
    _
  $region3: #{gat_forward.6} parent=0 // loop_header
    %s10 = sphi 0, %s14
    %p11 = scmp.ge.s32.totalorder %s10, 4
    %s20 = sphi 0, %s22
    %s23 = sphi 0, %s20
    %s24 = sphi 0, %s23
    %s40 = sphi 0, %s24
    %s44 = sphi 0, %s44
    %s46 = sphi 0, %s44
    %s47 = sphi 0, %s46
    %s61 = sphi 0, %s47
    %s67 = sphi 0, %s69
    %s70 = sphi 0, %s67
    %s71 = sphi 0, %s70
    %s87 = sphi 0, %s71
    %s93 = sphi 0, %s95
    %s96 = sphi 0, %s93
    %s97 = sphi 0, %s96
    %s113 = sphi 0, %s97
  $region4: #{gat_forward.6} parent=0 // loop_header_branch
    %13 = sbr.rel (%p11) target = $region8
  $region5: #{gat_forward.6} parent=0 // loop_body
    %s15 = ssub.s32 %s10, 1
    %s16 = ssub.s32 %s10, 2
    %s17 = sadd.s32 %s10, 1
    %s18 = ssub.s32 %s10, %s17
    %p19 = scmp.eq.s32.totalorder %s18, 0
    %s21 = sadd.s32 %s20, 1
    %s22 = scalar_select %p19, %s20, %s21
    %p25 = pneg %p19
    %p26 = scmp.eq.s32.totalorder %s10, 1
    %p27 = por %p25, %p26
    %p28 = scmp.ne.s32.totalorder %s20, %s23
    %p29 = scmp.eq.s32.totalorder %s10, 0
    %p30 = por %p28, %p29
    %p31 = scmp.ne.s32.totalorder %s20, %s23
    %p32 = scmp.eq.s32.totalorder %s15, 1
    %p33 = por %p31, %p32
    %p34 = scmp.ne.s32.totalorder %s23, %s24
    %p35 = scmp.eq.s32.totalorder %s15, 0
    %p36 = por %p34, %p35
    %p37 = scmp.ne.s32.totalorder %s23, %s24
    %p38 = scmp.eq.s32.totalorder %s16, 1
    %p39 = por %p37, %p38
    %p41 = scmp.ne.s32.totalorder %s24, %s40
    %p42 = scmp.eq.s32.totalorder %s16, 0
    %p43 = por %p41, %p42
    %s45 = sadd.s32 %s44, 1
    %p48 = scmp.eq.s32.totalorder %s10, 1
    %p49 = scmp.ne.s32.totalorder %s44, %s46
    %p50 = scmp.eq.s32.totalorder %s10, 0
    %p51 = por %p49, %p50
    %p52 = scmp.ne.s32.totalorder %s44, %s46
    %p53 = scmp.eq.s32.totalorder %s15, 1
    %p54 = por %p52, %p53
    %p55 = scmp.ne.s32.totalorder %s46, %s47
    %p56 = scmp.eq.s32.totalorder %s15, 0
    %p57 = por %p55, %p56
    %p58 = scmp.ne.s32.totalorder %s46, %s47
    %p59 = scmp.eq.s32.totalorder %s16, 1
    %p60 = por %p58, %p59
    %p62 = scmp.ne.s32.totalorder %s47, %s61
    %p63 = scmp.eq.s32.totalorder %s16, 0
    %p64 = por %p62, %p63
    %s65 = ssub.s32 %s10, %s17
    %p66 = scmp.eq.s32.totalorder %s65, 0
    %s68 = sadd.s32 %s67, 1
    %s69 = scalar_select %p66, %s67, %s68
    %p72 = pneg %p66
    %p73 = scmp.eq.s32.totalorder %s10, 1
    %p74 = por %p72, %p73
    %p75 = scmp.ne.s32.totalorder %s67, %s70
    %p76 = scmp.eq.s32.totalorder %s10, 0
    %p77 = por %p75, %p76
    %p78 = scmp.ne.s32.totalorder %s67, %s70
    %p79 = scmp.eq.s32.totalorder %s15, 1
    %p80 = por %p78, %p79
    %p81 = scmp.ne.s32.totalorder %s70, %s71
    %p82 = scmp.eq.s32.totalorder %s15, 0
    %p83 = por %p81, %p82
    %p84 = scmp.ne.s32.totalorder %s70, %s71
    %p85 = scmp.eq.s32.totalorder %s16, 1
    %p86 = por %p84, %p85
    %p88 = scmp.ne.s32.totalorder %s71, %s87
    %p89 = scmp.eq.s32.totalorder %s16, 0
    %p90 = por %p88, %p89
    %s91 = ssub.s32 %s10, %s17
    %p92 = scmp.eq.s32.totalorder %s91, 0
    %s94 = sadd.s32 %s93, 1
    %s95 = scalar_select %p92, %s93, %s94
    %p98 = pneg %p92
    %p99 = scmp.eq.s32.totalorder %s10, 1
    %p100 = por %p98, %p99
    %p101 = scmp.ne.s32.totalorder %s93, %s96
    %p102 = scmp.eq.s32.totalorder %s10, 0
    %p103 = por %p101, %p102
    %p104 = scmp.ne.s32.totalorder %s93, %s96
    %p105 = scmp.eq.s32.totalorder %s15, 1
    %p106 = por %p104, %p105
    %p107 = scmp.ne.s32.totalorder %s96, %s97
    %p108 = scmp.eq.s32.totalorder %s15, 0
    %p109 = por %p107, %p108
    %p110 = scmp.ne.s32.totalorder %s96, %s97
    %p111 = scmp.eq.s32.totalorder %s16, 1
    %p112 = por %p110, %p111
    %p114 = scmp.ne.s32.totalorder %s97, %s113
    %p115 = scmp.eq.s32.totalorder %s16, 0
    %p116 = por %p114, %p115
    %p117 = scmp.le.s32.totalorder 1, %s10
    %p118 = scmp.lt.s32.totalorder %s10, 3
    %p119 = pnand %p117, %p118
    %p120 = pneg %p119
    // Predicated region
    $region9: #{gat_forward.6} parent=5 // pred_check
      _
    $region10: #{gat_forward.6} parent=5 // pred_check_branch
      %122 = sbr.rel (%p119) target = $region12
    $region11: #{gat_forward.6} parent=5 // pred_region
      %s123 = ssub.s32 %s10, 1
      // Predicated region
      $region13: #{gat_forward.6} parent=11 // pred_check
        %p124 = pneg %p57
      $region14: #{gat_forward.6} parent=11 // pred_check_branch
        %126 = sbr.rel (%p124) target = $region16
      $region15: #{gat_forward.6} parent=11 // pred_region
        _
      $region16: #{gat_forward.6} parent=11 // pred_fallthru
        _
    $region12: #{gat_forward.6} parent=5 // pred_fallthru
      _
    %p127 = scmp.lt.s32.totalorder %s10, 2
    // Predicated region
    $region17: #{gat_forward.6} parent=5 // pred_check
      %p128 = pneg %p127
    $region18: #{gat_forward.6} parent=5 // pred_check_branch
      %130 = sbr.rel (%p128) target = $region20
    $region19: #{gat_forward.6} parent=5 // pred_region
      // Predicated region
      $region21: #{gat_forward.6} parent=19 // pred_check
        %p131 = pneg %p30
      $region22: #{gat_forward.6} parent=19 // pred_check_branch
        %133 = sbr.rel (%p131) target = $region24
      $region23: #{gat_forward.6} parent=19 // pred_region
        %s134 = smul.u32 64, %s10
        %p135 = scmp.lt.s32.totalorder %s134, 127
        %s136 = scalar_select %p135, %s134, 127
        %s137 = smul.addr %s136, 8
        %s138 = scalar_lea.vmem %s0, %s137
        %s139 = smul.u32 64, %s10
      $region24: #{gat_forward.6} parent=19 // pred_fallthru
        _
    $region20: #{gat_forward.6} parent=5 // pred_fallthru
      _
    %p140 = scmp.le.s32.totalorder 1, %s10
    %p141 = scmp.lt.s32.totalorder %s10, 3
    %p142 = pnand %p140, %p141
    %p143 = pneg %p142
    // Predicated region
    $region25: #{gat_forward.6} parent=5 // pred_check
      _
    $region26: #{gat_forward.6} parent=5 // pred_check_branch
      %145 = sbr.rel (%p142) target = $region28
    $region27: #{gat_forward.6} parent=5 // pred_region
      %s146 = ssub.s32 %s10, 1
      %s147 = smul.u32 64, %s15
      %p148 = scmp.lt.s32.totalorder %s147, 127
      %s149 = scalar_select %p148, %s147, 127
      %s150 = smul.addr %s149, 8
      %s151 = scalar_lea.vmem %s0, %s150
      %p152 = pneg %p36
      %p153 = pneg %p33
      %p154 = pneg %p57
      %p155 = pneg %p54
      %p156 = pneg %p83
      %p157 = pneg %p80
      %s158 = smul.u32 64, %s15
      %p159 = scmp.lt.s32.totalorder %s158, 127
      %s160 = scalar_select %p159, %s158, 127
      %s161 = smul.addr %s160, 4
      %s162 = scalar_lea.vmem %s2, %s161
      %p163 = pneg %p109
      %p164 = pneg %p106
      %s165 = smul.u32 64, %s15
      %p166 = scmp.lt.s32.totalorder %s165, 127
      %s167 = scalar_select %p166, %s165, 127
      %s168 = smul.addr %s167, 8
      %s169 = scalar_lea.vmem %s3, %s168
      %s170 = smul.u32 64, %s15
      %p171 = scmp.lt.s32.totalorder %s170, 127
      %s172 = scalar_select %p171, %s170, 127
      %s173 = smul.addr %s172, 8
      %s174 = scalar_lea.vmem %s0, %s173
      %s175 = smul.u32 64, %s15
      %s176 = smul.u32 64, %s15
      %p177 = scmp.lt.s32.totalorder %s176, 127
      %s178 = scalar_select %p177, %s176, 127
      %s179 = smul.addr %s178, 4
      %s180 = scalar_lea.vmem %s2, %s179
      %s181 = smul.u32 64, %s15
      %s182 = smul.u32 64, %s15
      %p183 = scmp.lt.s32.totalorder %s182, 127
      %s184 = scalar_select %p183, %s182, 127
      %s185 = smul.addr %s184, 8
      %s186 = scalar_lea.vmem %s3, %s185
      %s187 = smul.u32 64, %s15
      %v188 = vld [vmem:[%s174] sm:$0xff]
      %v189 = vld [vmem:[%s174 + $0x8] sm:$0xff]
      %v190 = vld [vmem:[%s174 + $0x10] sm:$0xff]
      %v191 = vld [vmem:[%s174 + $0x18] sm:$0xff]
      %v192 = vld [vmem:[%s174 + $0x20] sm:$0xff]
      %v193 = vld [vmem:[%s174 + $0x28] sm:$0xff]
      %v194 = vld [vmem:[%s174 + $0x30] sm:$0xff]
      %v195 = vld [vmem:[%s174 + $0x38] sm:$0xff]
      %v196 = vld [vmem:[%s174 + $0x40] sm:$0xff]
      %v197 = vld [vmem:[%s174 + $0x48] sm:$0xff]
      %v198 = vld [vmem:[%s174 + $0x50] sm:$0xff]
      %v199 = vld [vmem:[%s174 + $0x58] sm:$0xff]
      %v200 = vld [vmem:[%s174 + $0x60] sm:$0xff]
      %v201 = vld [vmem:[%s174 + $0x68] sm:$0xff]
      %v202 = vld [vmem:[%s174 + $0x70] sm:$0xff]
      %v203 = vld [vmem:[%s174 + $0x78] sm:$0xff]
      %v204 = vld [vmem:[%s174 + $0x80] sm:$0xff]
      %v205 = vld [vmem:[%s174 + $0x88] sm:$0xff]
      %v206 = vld [vmem:[%s174 + $0x90] sm:$0xff]
      %v207 = vld [vmem:[%s174 + $0x98] sm:$0xff]
      %v208 = vld [vmem:[%s174 + $0xa0] sm:$0xff]
      %v209 = vld [vmem:[%s174 + $0xa8] sm:$0xff]
      %v210 = vld [vmem:[%s174 + $0xb0] sm:$0xff]
      %v211 = vld [vmem:[%s174 + $0xb8] sm:$0xff]
      %v212 = vld [vmem:[%s174 + $0xc0] sm:$0xff]
      %v213 = vld [vmem:[%s174 + $0xc8] sm:$0xff]
      %v214 = vld [vmem:[%s174 + $0xd0] sm:$0xff]
      %v215 = vld [vmem:[%s174 + $0xd8] sm:$0xff]
      %v216 = vld [vmem:[%s174 + $0xe0] sm:$0xff]
      %v217 = vld [vmem:[%s174 + $0xe8] sm:$0xff]
      %v218 = vld [vmem:[%s174 + $0xf0] sm:$0xff]
      %v219 = vld [vmem:[%s174 + $0xf8] sm:$0xff]
      %v220 = vld [vmem:[%s174 + $0x100] sm:$0xff]
      %v221 = vld [vmem:[%s174 + $0x108] sm:$0xff]
      %v222 = vld [vmem:[%s174 + $0x110] sm:$0xff]
      %v223 = vld [vmem:[%s174 + $0x118] sm:$0xff]
      %v224 = vld [vmem:[%s174 + $0x120] sm:$0xff]
      %v225 = vld [vmem:[%s174 + $0x128] sm:$0xff]
      %v226 = vld [vmem:[%s174 + $0x130] sm:$0xff]
      %v227 = vld [vmem:[%s174 + $0x138] sm:$0xff]
      %v228 = vld [vmem:[%s174 + $0x140] sm:$0xff]
      %v229 = vld [vmem:[%s174 + $0x148] sm:$0xff]
      %v230 = vld [vmem:[%s174 + $0x150] sm:$0xff]
      %v231 = vld [vmem:[%s174 + $0x158] sm:$0xff]
      %v232 = vld [vmem:[%s174 + $0x160] sm:$0xff]
      %v233 = vld [vmem:[%s174 + $0x168] sm:$0xff]
      %v234 = vld [vmem:[%s174 + $0x170] sm:$0xff]
      %v235 = vld [vmem:[%s174 + $0x178] sm:$0xff]
      %v236 = vld [vmem:[%s174 + $0x180] sm:$0xff]
      %v237 = vld [vmem:[%s174 + $0x188] sm:$0xff]
      %v238 = vld [vmem:[%s174 + $0x190] sm:$0xff]
      %v239 = vld [vmem:[%s174 + $0x198] sm:$0xff]
      %v240 = vld [vmem:[%s174 + $0x1a0] sm:$0xff]
      %v241 = vld [vmem:[%s174 + $0x1a8] sm:$0xff]
      %v242 = vld [vmem:[%s174 + $0x1b0] sm:$0xff]
      %v243 = vld [vmem:[%s174 + $0x1b8] sm:$0xff]
      %v244 = vld [vmem:[%s174 + $0x1c0] sm:$0xff]
      %v245 = vld [vmem:[%s174 + $0x1c8] sm:$0xff]
      %v246 = vld [vmem:[%s174 + $0x1d0] sm:$0xff]
      %v247 = vld [vmem:[%s174 + $0x1d8] sm:$0xff]
      %v248 = vld [vmem:[%s174 + $0x1e0] sm:$0xff]
      %v249 = vld [vmem:[%s174 + $0x1e8] sm:$0xff]
      %v250 = vld [vmem:[%s174 + $0x1f0] sm:$0xff]
      %v251 = vld [vmem:[%s174 + $0x1f8] sm:$0xff]
      %v252 = vld [vmem:[%s1] sm:$0xff]
      %v253 = vld [vmem:[%s1 + $0x8] sm:$0xff]
      %v254 = vld [vmem:[%s1 + $0x10] sm:$0xff]
      %v255 = vld [vmem:[%s1 + $0x18] sm:$0xff]
      %v256 = vld [vmem:[%s1 + $0x20] sm:$0xff]
      %v257 = vld [vmem:[%s1 + $0x28] sm:$0xff]
      %v258 = vld [vmem:[%s1 + $0x30] sm:$0xff]
      %v259 = vld [vmem:[%s1 + $0x38] sm:$0xff]
      %v260 = vld [vmem:[%s1 + $0x40] sm:$0xff]
      %v261 = vld [vmem:[%s1 + $0x48] sm:$0xff]
      %v262 = vld [vmem:[%s1 + $0x50] sm:$0xff]
      %v263 = vld [vmem:[%s1 + $0x58] sm:$0xff]
      %v264 = vld [vmem:[%s1 + $0x60] sm:$0xff]
      %v265 = vld [vmem:[%s1 + $0x68] sm:$0xff]
      %v266 = vld [vmem:[%s1 + $0x70] sm:$0xff]
      %v267 = vld [vmem:[%s1 + $0x78] sm:$0xff]
      %v268 = vld [vmem:[%s1 + $0x80] sm:$0xff]
      %v269 = vld [vmem:[%s1 + $0x88] sm:$0xff]
      %v270 = vld [vmem:[%s1 + $0x90] sm:$0xff]
      %v271 = vld [vmem:[%s1 + $0x98] sm:$0xff]
      %v272 = vld [vmem:[%s1 + $0xa0] sm:$0xff]
      %v273 = vld [vmem:[%s1 + $0xa8] sm:$0xff]
      %v274 = vld [vmem:[%s1 + $0xb0] sm:$0xff]
      %v275 = vld [vmem:[%s1 + $0xb8] sm:$0xff]
      %v276 = vld [vmem:[%s1 + $0xc0] sm:$0xff]
      %v277 = vld [vmem:[%s1 + $0xc8] sm:$0xff]
      %v278 = vld [vmem:[%s1 + $0xd0] sm:$0xff]
      %v279 = vld [vmem:[%s1 + $0xd8] sm:$0xff]
      %v280 = vld [vmem:[%s1 + $0xe0] sm:$0xff]
      %v281 = vld [vmem:[%s1 + $0xe8] sm:$0xff]
      %v282 = vld [vmem:[%s1 + $0xf0] sm:$0xff]
      %v283 = vld [vmem:[%s1 + $0xf8] sm:$0xff]
      %284 = vmatprep.subr.mxu0 %v253
      %285 = vmatpush1.msra.mxu0 %v252
      %286 = vmatprep.subr.mxu0 %v255
      %287 = vmatpush1.msra.mxu0 %v254
      %288 = vmatprep.subr.mxu0 %v257
      %289 = vmatpush1.msra.mxu0 %v256
      %290 = vmatprep.subr.mxu0 %v259
      %291 = vmatpush1.msra.mxu0 %v258
      %292 = vmatprep.subr.mxu0 %v261
      %293 = vmatpush1.msra.mxu0 %v260
      %294 = vmatprep.subr.mxu0 %v263
      %295 = vmatpush1.msra.mxu0 %v262
      %296 = vmatprep.subr.mxu0 %v265
      %297 = vmatpush1.msra.mxu0 %v264
      %298 = vmatprep.subr.mxu0 %v267
      %299 = vmatpush1.msra.mxu0 %v266
      %300 = vmatprep.subr.mxu0 %v269
      %301 = vmatpush1.msra.mxu0 %v268
      %302 = vmatprep.subr.mxu0 %v271
      %303 = vmatpush1.msra.mxu0 %v270
      %304 = vmatprep.subr.mxu0 %v273
      %305 = vmatpush1.msra.mxu0 %v272
      %306 = vmatprep.subr.mxu0 %v275
      %307 = vmatpush1.msra.mxu0 %v274
      %308 = vmatprep.subr.mxu0 %v277
      %309 = vmatpush1.msra.mxu0 %v276
      %310 = vmatprep.subr.mxu0 %v279
      %311 = vmatpush1.msra.mxu0 %v278
      %312 = vmatprep.subr.mxu0 %v281
      %313 = vmatpush1.msra.mxu0 %v280
      %314 = vmatprep.subr.mxu0 %v283
      %315 = vmatpush1.msra.mxu0 %v282
      %316 = vmatprep.subr.mxu0 0.0
      %317 = vmatpush1.msra.mxu0 0.0
      %318 = vmatprep.subr.mxu0 0.0
      %319 = vmatpush1.msra.mxu0 0.0
      %320 = vmatprep.subr.mxu0 0.0
      %321 = vmatpush1.msra.mxu0 0.0
      %322 = vmatprep.subr.mxu0 0.0
      %323 = vmatpush1.msra.mxu0 0.0
      %324 = vmatprep.subr.mxu0 0.0
      %325 = vmatpush1.msra.mxu0 0.0
      %326 = vmatprep.subr.mxu0 0.0
      %327 = vmatpush1.msra.mxu0 0.0
      %328 = vmatprep.subr.mxu0 0.0
      %329 = vmatpush1.msra.mxu0 0.0
      %330 = vmatprep.subr.mxu0 0.0
      %331 = vmatpush1.msra.mxu0 0.0
      %332 = vmatprep.subr.mxu0 0.0
      %333 = vmatpush1.msra.mxu0 0.0
      %334 = vmatprep.subr.mxu0 0.0
      %335 = vmatpush1.msra.mxu0 0.0
      %336 = vmatprep.subr.mxu0 0.0
      %337 = vmatpush1.msra.mxu0 0.0
      %338 = vmatprep.subr.mxu0 0.0
      %339 = vmatpush1.msra.mxu0 0.0
      %340 = vmatprep.subr.mxu0 0.0
      %341 = vmatpush1.msra.mxu0 0.0
      %342 = vmatprep.subr.mxu0 0.0
      %343 = vmatpush1.msra.mxu0 0.0
      %344 = vmatprep.subr.mxu0 0.0
      %345 = vmatpush1.msra.mxu0 0.0
      %346 = vmatprep.subr.mxu0 0.0
      %347 = vmatpush1.msra.mxu0 0.0
      %348 = vmatprep.mubr.f32.mxu0 0.0
      %349 = vmatmul.mubr.f32.gmra.mrb[0].mxu0 %v188
      %v350 = vpop.f32.mrb[0].mxu0
      %v351 = vadd.f32 0.0, %v350
      %v352 = vpop.f32.mrb[0].mxu0
      %v353 = vadd.f32 0.0, %v352
      %354 = vmatprep.mubr.f32.mxu0 0.0
      %355 = vmatmul.mubr.f32.gmra.mrb[0].mxu0 %v189
      %v356 = vpop.f32.mrb[0].mxu0
      %v357 = vadd.f32 0.0, %v356
      %v358 = vpop.f32.mrb[0].mxu0
      %v359 = vadd.f32 0.0, %v358
      %360 = vmatprep.mubr.f32.mxu0 0.0
      %361 = vmatmul.mubr.f32.gmra.mrb[0].mxu0 %v190
      %v362 = vpop.f32.mrb[0].mxu0
      %v363 = vadd.f32 0.0, %v362
      %v364 = vpop.f32.mrb[0].mxu0
      %v365 = vadd.f32 0.0, %v364
      %366 = vmatprep.mubr.f32.mxu0 0.0
      %367 = vmatmul.mubr.f32.gmra.mrb[0].mxu0 %v191
      %v368 = vpop.f32.mrb[0].mxu0
      %v369 = vadd.f32 0.0, %v368
      %v370 = vpop.f32.mrb[0].mxu0
      %v371 = vadd.f32 0.0, %v370
      %372 = vmatprep.mubr.f32.mxu0 0.0
      %373 = vmatmul.mubr.f32.gmra.mrb[0].mxu0 %v192
      %v374 = vpop.f32.mrb[0].mxu0
      %v375 = vadd.f32 0.0, %v374
      %v376 = vpop.f32.mrb[0].mxu0
      %v377 = vadd.f32 0.0, %v376
      %378 = vmatprep.mubr.f32.mxu0 0.0
      %379 = vmatmul.mubr.f32.gmra.mrb[0].mxu0 %v193
      %v380 = vpop.f32.mrb[0].mxu0
      %v381 = vadd.f32 0.0, %v380
      %v382 = vpop.f32.mrb[0].mxu0
      %v383 = vadd.f32 0.0, %v382
      %384 = vmatprep.mubr.f32.mxu0 0.0
      %385 = vmatmul.mubr.f32.gmra.mrb[0].mxu0 %v194
      %v386 = vpop.f32.mrb[0].mxu0
      %v387 = vadd.f32 0.0, %v386
      %v388 = vpop.f32.mrb[0].mxu0
      %v389 = vadd.f32 0.0, %v388
      %390 = vmatprep.mubr.f32.mxu0 0.0
      %391 = vmatmul.mubr.f32.gmra.mrb[0].mxu0 %v195
      %v392 = vpop.f32.mrb[0].mxu0
      %v393 = vadd.f32 0.0, %v392
      %v394 = vpop.f32.mrb[0].mxu0
      %v395 = vadd.f32 0.0, %v394
      %396 = vmatprep.mubr.f32.mxu0 0.0
      %397 = vmatmul.mubr.f32.gmra.mrb[0].mxu0 %v196
      %v398 = vpop.f32.mrb[0].mxu0
      %v399 = vadd.f32 0.0, %v398
      %v400 = vpop.f32.mrb[0].mxu0
      %v401 = vadd.f32 0.0, %v400
      %402 = vmatprep.mubr.f32.mxu0 0.0
      %403 = vmatmul.mubr.f32.gmra.mrb[0].mxu0 %v197
      %v404 = vpop.f32.mrb[0].mxu0
      %v405 = vadd.f32 0.0, %v404
      %v406 = vpop.f32.mrb[0].mxu0
      %v407 = vadd.f32 0.0, %v406
      %408 = vmatprep.mubr.f32.mxu0 0.0
      %409 = vmatmul.mubr.f32.gmra.mrb[0].mxu0 %v198
      %v410 = vpop.f32.mrb[0].mxu0
      %v411 = vadd.f32 0.0, %v410
      %v412 = vpop.f32.mrb[0].mxu0
      %v413 = vadd.f32 0.0, %v412
      %414 = vmatprep.mubr.f32.mxu0 0.0
      %415 = vmatmul.mubr.f32.gmra.mrb[0].mxu0 %v199
      %v416 = vpop.f32.mrb[0].mxu0
      %v417 = vadd.f32 0.0, %v416
      %v418 = vpop.f32.mrb[0].mxu0
      %v419 = vadd.f32 0.0, %v418
      %420 = vmatprep.mubr.f32.mxu0 0.0
      %421 = vmatmul.mubr.f32.gmra.mrb[0].mxu0 %v200
      %v422 = vpop.f32.mrb[0].mxu0
      %v423 = vadd.f32 0.0, %v422
      %v424 = vpop.f32.mrb[0].mxu0
      %v425 = vadd.f32 0.0, %v424
      %426 = vmatprep.mubr.f32.mxu0 0.0
      %427 = vmatmul.mubr.f32.gmra.mrb[0].mxu0 %v201
      %v428 = vpop.f32.mrb[0].mxu0
      %v429 = vadd.f32 0.0, %v428
      %v430 = vpop.f32.mrb[0].mxu0
      %v431 = vadd.f32 0.0, %v430
      %432 = vmatprep.mubr.f32.mxu0 0.0
      %433 = vmatmul.mubr.f32.gmra.mrb[0].mxu0 %v202
      %v434 = vpop.f32.mrb[0].mxu0
      %v435 = vadd.f32 0.0, %v434
      %v436 = vpop.f32.mrb[0].mxu0
      %v437 = vadd.f32 0.0, %v436
      %438 = vmatprep.mubr.f32.mxu0 0.0
      %439 = vmatmul.mubr.f32.gmra.mrb[0].mxu0 %v203
      %v440 = vpop.f32.mrb[0].mxu0
      %v441 = vadd.f32 0.0, %v440
      %v442 = vpop.f32.mrb[0].mxu0
      %v443 = vadd.f32 0.0, %v442
      %444 = vmatprep.mubr.f32.mxu0 0.0
      %445 = vmatmul.mubr.f32.gmra.mrb[0].mxu0 %v204
      %v446 = vpop.f32.mrb[0].mxu0
      %v447 = vadd.f32 0.0, %v446
      %v448 = vpop.f32.mrb[0].mxu0
      %v449 = vadd.f32 0.0, %v448
      %450 = vmatprep.mubr.f32.mxu0 0.0
      %451 = vmatmul.mubr.f32.gmra.mrb[0].mxu0 %v205
      %v452 = vpop.f32.mrb[0].mxu0
      %v453 = vadd.f32 0.0, %v452
      %v454 = vpop.f32.mrb[0].mxu0
      %v455 = vadd.f32 0.0, %v454
      %456 = vmatprep.mubr.f32.mxu0 0.0
      %457 = vmatmul.mubr.f32.gmra.mrb[0].mxu0 %v206
      %v458 = vpop.f32.mrb[0].mxu0
      %v459 = vadd.f32 0.0, %v458
      %v460 = vpop.f32.mrb[0].mxu0
      %v461 = vadd.f32 0.0, %v460
      %462 = vmatprep.mubr.f32.mxu0 0.0
      %463 = vmatmul.mubr.f32.gmra.mrb[0].mxu0 %v207
      %v464 = vpop.f32.mrb[0].mxu0
      %v465 = vadd.f32 0.0, %v464
      %v466 = vpop.f32.mrb[0].mxu0
      %v467 = vadd.f32 0.0, %v466
      %468 = vmatprep.mubr.f32.mxu0 0.0
      %469 = vmatmul.mubr.f32.gmra.mrb[0].mxu0 %v208
      %v470 = vpop.f32.mrb[0].mxu0
      %v471 = vadd.f32 0.0, %v470
      %v472 = vpop.f32.mrb[0].mxu0
      %v473 = vadd.f32 0.0, %v472
      %474 = vmatprep.mubr.f32.mxu0 0.0
      %475 = vmatmul.mubr.f32.gmra.mrb[0].mxu0 %v209
      %v476 = vpop.f32.mrb[0].mxu0
      %v477 = vadd.f32 0.0, %v476
      %v478 = vpop.f32.mrb[0].mxu0
      %v479 = vadd.f32 0.0, %v478
      %480 = vmatprep.mubr.f32.mxu0 0.0
      %481 = vmatmul.mubr.f32.gmra.mrb[0].mxu0 %v210
      %v482 = vpop.f32.mrb[0].mxu0
      %v483 = vadd.f32 0.0, %v482
      %v484 = vpop.f32.mrb[0].mxu0
      %v485 = vadd.f32 0.0, %v484
      %486 = vmatprep.mubr.f32.mxu0 0.0
      %487 = vmatmul.mubr.f32.gmra.mrb[0].mxu0 %v211
      %v488 = vpop.f32.mrb[0].mxu0
      %v489 = vadd.f32 0.0, %v488
      %v490 = vpop.f32.mrb[0].mxu0
      %v491 = vadd.f32 0.0, %v490
      %492 = vmatprep.mubr.f32.mxu0 0.0
      %493 = vmatmul.mubr.f32.gmra.mrb[0].mxu0 %v212
      %v494 = vpop.f32.mrb[0].mxu0
      %v495 = vadd.f32 0.0, %v494
      %v496 = vpop.f32.mrb[0].mxu0
      %v497 = vadd.f32 0.0, %v496
      %498 = vmatprep.mubr.f32.mxu0 0.0
      %499 = vmatmul.mubr.f32.gmra.mrb[0].mxu0 %v213
      %v500 = vpop.f32.mrb[0].mxu0
      %v501 = vadd.f32 0.0, %v500
      %v502 = vpop.f32.mrb[0].mxu0
      %v503 = vadd.f32 0.0, %v502
      %504 = vmatprep.mubr.f32.mxu0 0.0
      %505 = vmatmul.mubr.f32.gmra.mrb[0].mxu0 %v214
      %v506 = vpop.f32.mrb[0].mxu0
      %v507 = vadd.f32 0.0, %v506
      %v508 = vpop.f32.mrb[0].mxu0
      %v509 = vadd.f32 0.0, %v508
      %510 = vmatprep.mubr.f32.mxu0 0.0
      %511 = vmatmul.mubr.f32.gmra.mrb[0].mxu0 %v215
      %v512 = vpop.f32.mrb[0].mxu0
      %v513 = vadd.f32 0.0, %v512
      %v514 = vpop.f32.mrb[0].mxu0
      %v515 = vadd.f32 0.0, %v514
      %516 = vmatprep.mubr.f32.mxu0 0.0
      %517 = vmatmul.mubr.f32.gmra.mrb[0].mxu0 %v216
      %v518 = vpop.f32.mrb[0].mxu0
      %v519 = vadd.f32 0.0, %v518
      %v520 = vpop.f32.mrb[0].mxu0
      %v521 = vadd.f32 0.0, %v520
      %522 = vmatprep.mubr.f32.mxu0 0.0
      %523 = vmatmul.mubr.f32.gmra.mrb[0].mxu0 %v217
      %v524 = vpop.f32.mrb[0].mxu0
      %v525 = vadd.f32 0.0, %v524
      %v526 = vpop.f32.mrb[0].mxu0
      %v527 = vadd.f32 0.0, %v526
      %528 = vmatprep.mubr.f32.mxu0 0.0
      %529 = vmatmul.mubr.f32.gmra.mrb[0].mxu0 %v218
      %v530 = vpop.f32.mrb[0].mxu0
      %v531 = vadd.f32 0.0, %v530
      %v532 = vpop.f32.mrb[0].mxu0
      %v533 = vadd.f32 0.0, %v532
      %534 = vmatprep.mubr.f32.mxu0 0.0
      %535 = vmatmul.mubr.f32.gmra.mrb[0].mxu0 %v219
      %v536 = vpop.f32.mrb[0].mxu0
      %v537 = vadd.f32 0.0, %v536
      %v538 = vpop.f32.mrb[0].mxu0
      %v539 = vadd.f32 0.0, %v538
      %540 = vmatprep.mubr.f32.mxu0 0.0
      %541 = vmatmul.mubr.f32.gmra.mrb[0].mxu0 %v220
      %v542 = vpop.f32.mrb[0].mxu0
      %v543 = vadd.f32 0.0, %v542
      %v544 = vpop.f32.mrb[0].mxu0
      %v545 = vadd.f32 0.0, %v544
      %546 = vmatprep.mubr.f32.mxu0 0.0
      %547 = vmatmul.mubr.f32.gmra.mrb[0].mxu0 %v221
      %v548 = vpop.f32.mrb[0].mxu0
      %v549 = vadd.f32 0.0, %v548
      %v550 = vpop.f32.mrb[0].mxu0
      %v551 = vadd.f32 0.0, %v550
      %552 = vmatprep.mubr.f32.mxu0 0.0
      %553 = vmatmul.mubr.f32.gmra.mrb[0].mxu0 %v222
      %v554 = vpop.f32.mrb[0].mxu0
      %v555 = vadd.f32 0.0, %v554
      %v556 = vpop.f32.mrb[0].mxu0
      %v557 = vadd.f32 0.0, %v556
      %558 = vmatprep.mubr.f32.mxu0 0.0
      %559 = vmatmul.mubr.f32.gmra.mrb[0].mxu0 %v223
      %v560 = vpop.f32.mrb[0].mxu0
      %v561 = vadd.f32 0.0, %v560
      %v562 = vpop.f32.mrb[0].mxu0
      %v563 = vadd.f32 0.0, %v562
      %564 = vmatprep.mubr.f32.mxu0 0.0
      %565 = vmatmul.mubr.f32.gmra.mrb[0].mxu0 %v224
      %v566 = vpop.f32.mrb[0].mxu0
      %v567 = vadd.f32 0.0, %v566
      %v568 = vpop.f32.mrb[0].mxu0
      %v569 = vadd.f32 0.0, %v568
      %570 = vmatprep.mubr.f32.mxu0 0.0
      %571 = vmatmul.mubr.f32.gmra.mrb[0].mxu0 %v225
      %v572 = vpop.f32.mrb[0].mxu0
      %v573 = vadd.f32 0.0, %v572
      %v574 = vpop.f32.mrb[0].mxu0
      %v575 = vadd.f32 0.0, %v574
      %576 = vmatprep.mubr.f32.mxu0 0.0
      %577 = vmatmul.mubr.f32.gmra.mrb[0].mxu0 %v226
      %v578 = vpop.f32.mrb[0].mxu0
      %v579 = vadd.f32 0.0, %v578
      %v580 = vpop.f32.mrb[0].mxu0
      %v581 = vadd.f32 0.0, %v580
      %582 = vmatprep.mubr.f32.mxu0 0.0
      %583 = vmatmul.mubr.f32.gmra.mrb[0].mxu0 %v227
      %v584 = vpop.f32.mrb[0].mxu0
      %v585 = vadd.f32 0.0, %v584
      %v586 = vpop.f32.mrb[0].mxu0
      %v587 = vadd.f32 0.0, %v586
      %588 = vmatprep.mubr.f32.mxu0 0.0
      %589 = vmatmul.mubr.f32.gmra.mrb[0].mxu0 %v228
      %v590 = vpop.f32.mrb[0].mxu0
      %v591 = vadd.f32 0.0, %v590
      %v592 = vpop.f32.mrb[0].mxu0
      %v593 = vadd.f32 0.0, %v592
      %594 = vmatprep.mubr.f32.mxu0 0.0
      %595 = vmatmul.mubr.f32.gmra.mrb[0].mxu0 %v229
      %v596 = vpop.f32.mrb[0].mxu0
      %v597 = vadd.f32 0.0, %v596
      %v598 = vpop.f32.mrb[0].mxu0
      %v599 = vadd.f32 0.0, %v598
      %600 = vmatprep.mubr.f32.mxu0 0.0
      %601 = vmatmul.mubr.f32.gmra.mrb[0].mxu0 %v230
      %v602 = vpop.f32.mrb[0].mxu0
      %v603 = vadd.f32 0.0, %v602
      %v604 = vpop.f32.mrb[0].mxu0
      %v605 = vadd.f32 0.0, %v604
      %606 = vmatprep.mubr.f32.mxu0 0.0
      %607 = vmatmul.mubr.f32.gmra.mrb[0].mxu0 %v231
      %v608 = vpop.f32.mrb[0].mxu0
      %v609 = vadd.f32 0.0, %v608
      %v610 = vpop.f32.mrb[0].mxu0
      %v611 = vadd.f32 0.0, %v610
      %612 = vmatprep.mubr.f32.mxu0 0.0
      %613 = vmatmul.mubr.f32.gmra.mrb[0].mxu0 %v232
      %v614 = vpop.f32.mrb[0].mxu0
      %v615 = vadd.f32 0.0, %v614
      %v616 = vpop.f32.mrb[0].mxu0
      %v617 = vadd.f32 0.0, %v616
      %618 = vmatprep.mubr.f32.mxu0 0.0
      %619 = vmatmul.mubr.f32.gmra.mrb[0].mxu0 %v233
      %v620 = vpop.f32.mrb[0].mxu0
      %v621 = vadd.f32 0.0, %v620
      %v622 = vpop.f32.mrb[0].mxu0
      %v623 = vadd.f32 0.0, %v622
      %624 = vmatprep.mubr.f32.mxu0 0.0
      %625 = vmatmul.mubr.f32.gmra.mrb[0].mxu0 %v234
      %v626 = vpop.f32.mrb[0].mxu0
      %v627 = vadd.f32 0.0, %v626
      %v628 = vpop.f32.mrb[0].mxu0
      %v629 = vadd.f32 0.0, %v628
      %630 = vmatprep.mubr.f32.mxu0 0.0
      %631 = vmatmul.mubr.f32.gmra.mrb[0].mxu0 %v235
      %v632 = vpop.f32.mrb[0].mxu0
      %v633 = vadd.f32 0.0, %v632
      %v634 = vpop.f32.mrb[0].mxu0
      %v635 = vadd.f32 0.0, %v634
      %636 = vmatprep.mubr.f32.mxu0 0.0
      %637 = vmatmul.mubr.f32.gmra.mrb[0].mxu0 %v236
      %v638 = vpop.f32.mrb[0].mxu0
      %v639 = vadd.f32 0.0, %v638
      %v640 = vpop.f32.mrb[0].mxu0
      %v641 = vadd.f32 0.0, %v640
      %642 = vmatprep.mubr.f32.mxu0 0.0
      %643 = vmatmul.mubr.f32.gmra.mrb[0].mxu0 %v237
      %v644 = vpop.f32.mrb[0].mxu0
      %v645 = vadd.f32 0.0, %v644
      %v646 = vpop.f32.mrb[0].mxu0
      %v647 = vadd.f32 0.0, %v646
      %648 = vmatprep.mubr.f32.mxu0 0.0
      %649 = vmatmul.mubr.f32.gmra.mrb[0].mxu0 %v238
      %v650 = vpop.f32.mrb[0].mxu0
      %v651 = vadd.f32 0.0, %v650
      %v652 = vpop.f32.mrb[0].mxu0
      %v653 = vadd.f32 0.0, %v652
      %654 = vmatprep.mubr.f32.mxu0 0.0
      %655 = vmatmul.mubr.f32.gmra.mrb[0].mxu0 %v239
      %v656 = vpop.f32.mrb[0].mxu0
      %v657 = vadd.f32 0.0, %v656
      %v658 = vpop.f32.mrb[0].mxu0
      %v659 = vadd.f32 0.0, %v658
      %660 = vmatprep.mubr.f32.mxu0 0.0
      %661 = vmatmul.mubr.f32.gmra.mrb[0].mxu0 %v240
      %v662 = vpop.f32.mrb[0].mxu0
      %v663 = vadd.f32 0.0, %v662
      %v664 = vpop.f32.mrb[0].mxu0
      %v665 = vadd.f32 0.0, %v664
      %666 = vmatprep.mubr.f32.mxu0 0.0
      %667 = vmatmul.mubr.f32.gmra.mrb[0].mxu0 %v241
      %v668 = vpop.f32.mrb[0].mxu0
      %v669 = vadd.f32 0.0, %v668
      %v670 = vpop.f32.mrb[0].mxu0
      %v671 = vadd.f32 0.0, %v670
      %672 = vmatprep.mubr.f32.mxu0 0.0
      %673 = vmatmul.mubr.f32.gmra.mrb[0].mxu0 %v242
      %v674 = vpop.f32.mrb[0].mxu0
      %v675 = vadd.f32 0.0, %v674
      %v676 = vpop.f32.mrb[0].mxu0
      %v677 = vadd.f32 0.0, %v676
      %678 = vmatprep.mubr.f32.mxu0 0.0
      %679 = vmatmul.mubr.f32.gmra.mrb[0].mxu0 %v243
      %v680 = vpop.f32.mrb[0].mxu0
      %v681 = vadd.f32 0.0, %v680
      %v682 = vpop.f32.mrb[0].mxu0
      %v683 = vadd.f32 0.0, %v682
      %684 = vmatprep.mubr.f32.mxu0 0.0
      %685 = vmatmul.mubr.f32.gmra.mrb[0].mxu0 %v244
      %v686 = vpop.f32.mrb[0].mxu0
      %v687 = vadd.f32 0.0, %v686
      %v688 = vpop.f32.mrb[0].mxu0
      %v689 = vadd.f32 0.0, %v688
      %690 = vmatprep.mubr.f32.mxu0 0.0
      %691 = vmatmul.mubr.f32.gmra.mrb[0].mxu0 %v245
      %v692 = vpop.f32.mrb[0].mxu0
      %v693 = vadd.f32 0.0, %v692
      %v694 = vpop.f32.mrb[0].mxu0
      %v695 = vadd.f32 0.0, %v694
      %696 = vmatprep.mubr.f32.mxu0 0.0
      %697 = vmatmul.mubr.f32.gmra.mrb[0].mxu0 %v246
      %v698 = vpop.f32.mrb[0].mxu0
      %v699 = vadd.f32 0.0, %v698
      %v700 = vpop.f32.mrb[0].mxu0
      %v701 = vadd.f32 0.0, %v700
      %702 = vmatprep.mubr.f32.mxu0 0.0
      %703 = vmatmul.mubr.f32.gmra.mrb[0].mxu0 %v247
      %v704 = vpop.f32.mrb[0].mxu0
      %v705 = vadd.f32 0.0, %v704
      %v706 = vpop.f32.mrb[0].mxu0
      %v707 = vadd.f32 0.0, %v706
      %708 = vmatprep.mubr.f32.mxu0 0.0
      %709 = vmatmul.mubr.f32.gmra.mrb[0].mxu0 %v248
      %v710 = vpop.f32.mrb[0].mxu0
      %v711 = vadd.f32 0.0, %v710
      %v712 = vpop.f32.mrb[0].mxu0
      %v713 = vadd.f32 0.0, %v712
      %714 = vmatprep.mubr.f32.mxu0 0.0
      %715 = vmatmul.mubr.f32.gmra.mrb[0].mxu0 %v249
      %v716 = vpop.f32.mrb[0].mxu0
      %v717 = vadd.f32 0.0, %v716
      %v718 = vpop.f32.mrb[0].mxu0
      %v719 = vadd.f32 0.0, %v718
      %720 = vmatprep.mubr.f32.mxu0 0.0
      %721 = vmatmul.mubr.f32.gmra.mrb[0].mxu0 %v250
      %v722 = vpop.f32.mrb[0].mxu0
      %v723 = vadd.f32 0.0, %v722
      %v724 = vpop.f32.mrb[0].mxu0
      %v725 = vadd.f32 0.0, %v724
      %726 = vmatprep.mubr.f32.mxu0 0.0
      %727 = vmatmul.mubr.f32.gmra.mrb[0].mxu0 %v251
      %v728 = vpop.f32.mrb[0].mxu0
      %v729 = vadd.f32 0.0, %v728
      %v730 = vpop.f32.mrb[0].mxu0
      %v731 = vadd.f32 0.0, %v730
      %732 = vdwg.mxu0
      %v733 = vlaneseq
      %v734 = vand.u32 %v733, 127
      %vm735 = vcmp.eq.s32.totalorder %v734, 32
      %v736 = vsel %vm735, 1.0, 0.0
      %v737 = vadd.f32 %v351, %v736
      %v738 = vadd.f32 %v357, %v736
      %v739 = vadd.f32 %v363, %v736
      %v740 = vadd.f32 %v369, %v736
      %v741 = vadd.f32 %v375, %v736
      %v742 = vadd.f32 %v381, %v736
      %v743 = vadd.f32 %v387, %v736
      %v744 = vadd.f32 %v393, %v736
      %v745 = vadd.f32 %v399, %v736
      %v746 = vadd.f32 %v405, %v736
      %v747 = vadd.f32 %v411, %v736
      %v748 = vadd.f32 %v417, %v736
      %v749 = vadd.f32 %v423, %v736
      %v750 = vadd.f32 %v429, %v736
      %v751 = vadd.f32 %v435, %v736
      %v752 = vadd.f32 %v441, %v736
      %v753 = vadd.f32 %v447, %v736
      %v754 = vadd.f32 %v453, %v736
      %v755 = vadd.f32 %v459, %v736
      %v756 = vadd.f32 %v465, %v736
      %v757 = vadd.f32 %v471, %v736
      %v758 = vadd.f32 %v477, %v736
      %v759 = vadd.f32 %v483, %v736
      %v760 = vadd.f32 %v489, %v736
      %v761 = vadd.f32 %v495, %v736
      %v762 = vadd.f32 %v501, %v736
      %v763 = vadd.f32 %v507, %v736
      %v764 = vadd.f32 %v513, %v736
      %v765 = vadd.f32 %v519, %v736
      %v766 = vadd.f32 %v525, %v736
      %v767 = vadd.f32 %v531, %v736
      %v768 = vadd.f32 %v537, %v736
      %v769 = vadd.f32 %v543, %v736
      %v770 = vadd.f32 %v549, %v736
      %v771 = vadd.f32 %v555, %v736
      %v772 = vadd.f32 %v561, %v736
      %v773 = vadd.f32 %v567, %v736
      %v774 = vadd.f32 %v573, %v736
      %v775 = vadd.f32 %v579, %v736
      %v776 = vadd.f32 %v585, %v736
      %v777 = vadd.f32 %v591, %v736
      %v778 = vadd.f32 %v597, %v736
      %v779 = vadd.f32 %v603, %v736
      %v780 = vadd.f32 %v609, %v736
      %v781 = vadd.f32 %v615, %v736
      %v782 = vadd.f32 %v621, %v736
      %v783 = vadd.f32 %v627, %v736
      %v784 = vadd.f32 %v633, %v736
      %v785 = vadd.f32 %v639, %v736
      %v786 = vadd.f32 %v645, %v736
      %v787 = vadd.f32 %v651, %v736
      %v788 = vadd.f32 %v657, %v736
      %v789 = vadd.f32 %v663, %v736
      %v790 = vadd.f32 %v669, %v736
      %v791 = vadd.f32 %v675, %v736
      %v792 = vadd.f32 %v681, %v736
      %v793 = vadd.f32 %v687, %v736
      %v794 = vadd.f32 %v693, %v736
      %v795 = vadd.f32 %v699, %v736
      %v796 = vadd.f32 %v705, %v736
      %v797 = vadd.f32 %v711, %v736
      %v798 = vadd.f32 %v717, %v736
      %v799 = vadd.f32 %v723, %v736
      %v800 = vadd.f32 %v729, %v736
      %v801 = vpack.c.bf16 %v738, %v737
      %v802 = vpack.c.bf16 %v740, %v739
      %v803 = vpack.c.bf16 %v742, %v741
      %v804 = vpack.c.bf16 %v744, %v743
      %v805 = vpack.c.bf16 %v746, %v745
      %v806 = vpack.c.bf16 %v748, %v747
      %v807 = vpack.c.bf16 %v750, %v749
      %v808 = vpack.c.bf16 %v752, %v751
      %v809 = vpack.c.bf16 %v754, %v753
      %v810 = vpack.c.bf16 %v756, %v755
      %v811 = vpack.c.bf16 %v758, %v757
      %v812 = vpack.c.bf16 %v760, %v759
      %v813 = vpack.c.bf16 %v762, %v761
      %v814 = vpack.c.bf16 %v764, %v763
      %v815 = vpack.c.bf16 %v766, %v765
      %v816 = vpack.c.bf16 %v768, %v767
      %v817 = vpack.c.bf16 %v770, %v769
      %v818 = vpack.c.bf16 %v772, %v771
      %v819 = vpack.c.bf16 %v774, %v773
      %v820 = vpack.c.bf16 %v776, %v775
      %v821 = vpack.c.bf16 %v778, %v777
      %v822 = vpack.c.bf16 %v780, %v779
      %v823 = vpack.c.bf16 %v782, %v781
      %v824 = vpack.c.bf16 %v784, %v783
      %v825 = vpack.c.bf16 %v786, %v785
      %v826 = vpack.c.bf16 %v788, %v787
      %v827 = vpack.c.bf16 %v790, %v789
      %v828 = vpack.c.bf16 %v792, %v791
      %v829 = vpack.c.bf16 %v794, %v793
      %v830 = vpack.c.bf16 %v796, %v795
      %v831 = vpack.c.bf16 %v798, %v797
      %v832 = vpack.c.bf16 %v800, %v799
      %v865 = vunpack.c.l.b16 %v801
      %v866 = vunpack.c.h.b16 %v801
      %v867 = vunpack.c.l.b16 %v802
      %v868 = vunpack.c.h.b16 %v802
      %v869 = vunpack.c.l.b16 %v803
      %v870 = vunpack.c.h.b16 %v803
      %v871 = vunpack.c.l.b16 %v804
      %v872 = vunpack.c.h.b16 %v804
      %v873 = vunpack.c.l.b16 %v805
      %v874 = vunpack.c.h.b16 %v805
      %v875 = vunpack.c.l.b16 %v806
      %v876 = vunpack.c.h.b16 %v806
      %v877 = vunpack.c.l.b16 %v807
      %v878 = vunpack.c.h.b16 %v807
      %v879 = vunpack.c.l.b16 %v808
      %v880 = vunpack.c.h.b16 %v808
      %v881 = vunpack.c.l.b16 %v809
      %v882 = vunpack.c.h.b16 %v809
      %v883 = vunpack.c.l.b16 %v810
      %v884 = vunpack.c.h.b16 %v810
      %v885 = vunpack.c.l.b16 %v811
      %v886 = vunpack.c.h.b16 %v811
      %v887 = vunpack.c.l.b16 %v812
      %v888 = vunpack.c.h.b16 %v812
      %v889 = vunpack.c.l.b16 %v813
      %v890 = vunpack.c.h.b16 %v813
      %v891 = vunpack.c.l.b16 %v814
      %v892 = vunpack.c.h.b16 %v814
      %v893 = vunpack.c.l.b16 %v815
      %v894 = vunpack.c.h.b16 %v815
      %v895 = vunpack.c.l.b16 %v816
      %v896 = vunpack.c.h.b16 %v816
      %v897 = vunpack.c.l.b16 %v817
      %v898 = vunpack.c.h.b16 %v817
      %v899 = vunpack.c.l.b16 %v818
      %v900 = vunpack.c.h.b16 %v818
      %v901 = vunpack.c.l.b16 %v819
      %v902 = vunpack.c.h.b16 %v819
      %v903 = vunpack.c.l.b16 %v820
      %v904 = vunpack.c.h.b16 %v820
      %v905 = vunpack.c.l.b16 %v821
      %v906 = vunpack.c.h.b16 %v821
      %v907 = vunpack.c.l.b16 %v822
      %v908 = vunpack.c.h.b16 %v822
      %v909 = vunpack.c.l.b16 %v823
      %v910 = vunpack.c.h.b16 %v823
      %v911 = vunpack.c.l.b16 %v824
      %v912 = vunpack.c.h.b16 %v824
      %v913 = vunpack.c.l.b16 %v825
      %v914 = vunpack.c.h.b16 %v825
      %v915 = vunpack.c.l.b16 %v826
      %v916 = vunpack.c.h.b16 %v826
      %v917 = vunpack.c.l.b16 %v827
      %v918 = vunpack.c.h.b16 %v827
      %v919 = vunpack.c.l.b16 %v828
      %v920 = vunpack.c.h.b16 %v828
      %v921 = vunpack.c.l.b16 %v829
      %v922 = vunpack.c.h.b16 %v829
      %v923 = vunpack.c.l.b16 %v830
      %v924 = vunpack.c.h.b16 %v830
      %v925 = vunpack.c.l.b16 %v831
      %v926 = vunpack.c.h.b16 %v831
      %v927 = vunpack.c.l.b16 %v832
      %v928 = vunpack.c.h.b16 %v832
      %v929 = vpack.c.b16 %v865, %v865
      %v930 = vpack.c.b16 %v866, %v866
      %v931 = vpack.c.b16 %v867, %v867
      %v932 = vpack.c.b16 %v868, %v868
      %v933 = vpack.c.b16 %v869, %v869
      %v934 = vpack.c.b16 %v870, %v870
      %v935 = vpack.c.b16 %v871, %v871
      %v936 = vpack.c.b16 %v872, %v872
      %v937 = vpack.c.b16 %v873, %v873
      %v938 = vpack.c.b16 %v874, %v874
      %v939 = vpack.c.b16 %v875, %v875
      %v940 = vpack.c.b16 %v876, %v876
      %v941 = vpack.c.b16 %v877, %v877
      %v942 = vpack.c.b16 %v878, %v878
      %v943 = vpack.c.b16 %v879, %v879
      %v944 = vpack.c.b16 %v880, %v880
      %v945 = vpack.c.b16 %v881, %v881
      %v946 = vpack.c.b16 %v882, %v882
      %v947 = vpack.c.b16 %v883, %v883
      %v948 = vpack.c.b16 %v884, %v884
      %v949 = vpack.c.b16 %v885, %v885
      %v950 = vpack.c.b16 %v886, %v886
      %v951 = vpack.c.b16 %v887, %v887
      %v952 = vpack.c.b16 %v888, %v888
      %v953 = vpack.c.b16 %v889, %v889
      %v954 = vpack.c.b16 %v890, %v890
      %v955 = vpack.c.b16 %v891, %v891
      %v956 = vpack.c.b16 %v892, %v892
      %v957 = vpack.c.b16 %v893, %v893
      %v958 = vpack.c.b16 %v894, %v894
      %v959 = vpack.c.b16 %v895, %v895
      %v960 = vpack.c.b16 %v896, %v896
      %v961 = vpack.c.b16 %v897, %v897
      %v962 = vpack.c.b16 %v898, %v898
      %v963 = vpack.c.b16 %v899, %v899
      %v964 = vpack.c.b16 %v900, %v900
      %v965 = vpack.c.b16 %v901, %v901
      %v966 = vpack.c.b16 %v902, %v902
      %v967 = vpack.c.b16 %v903, %v903
      %v968 = vpack.c.b16 %v904, %v904
      %v969 = vpack.c.b16 %v905, %v905
      %v970 = vpack.c.b16 %v906, %v906
      %v971 = vpack.c.b16 %v907, %v907
      %v972 = vpack.c.b16 %v908, %v908
      %v973 = vpack.c.b16 %v909, %v909
      %v974 = vpack.c.b16 %v910, %v910
      %v975 = vpack.c.b16 %v911, %v911
      %v976 = vpack.c.b16 %v912, %v912
      %v977 = vpack.c.b16 %v913, %v913
      %v978 = vpack.c.b16 %v914, %v914
      %v979 = vpack.c.b16 %v915, %v915
      %v980 = vpack.c.b16 %v916, %v916
      %v981 = vpack.c.b16 %v917, %v917
      %v982 = vpack.c.b16 %v918, %v918
      %v983 = vpack.c.b16 %v919, %v919
      %v984 = vpack.c.b16 %v920, %v920
      %v985 = vpack.c.b16 %v921, %v921
      %v986 = vpack.c.b16 %v922, %v922
      %v987 = vpack.c.b16 %v923, %v923
      %v988 = vpack.c.b16 %v924, %v924
      %v989 = vpack.c.b16 %v925, %v925
      %v990 = vpack.c.b16 %v926, %v926
      %v991 = vpack.c.b16 %v927, %v927
      %v992 = vpack.c.b16 %v928, %v928
      %1057 = vst [vmem:[%s180] sm:$0xf] %v929
      %1058 = vst [vmem:[%s180 + $0x4] sm:$0xf] %v930
      %1059 = vst [vmem:[%s180 + $0x8] sm:$0xf] %v931
      %1060 = vst [vmem:[%s180 + $0xc] sm:$0xf] %v932
      %1061 = vst [vmem:[%s180 + $0x10] sm:$0xf] %v933
      %1062 = vst [vmem:[%s180 + $0x14] sm:$0xf] %v934
      %1063 = vst [vmem:[%s180 + $0x18] sm:$0xf] %v935
      %1064 = vst [vmem:[%s180 + $0x1c] sm:$0xf] %v936
      %1065 = vst [vmem:[%s180 + $0x20] sm:$0xf] %v937
      %1066 = vst [vmem:[%s180 + $0x24] sm:$0xf] %v938
      %1067 = vst [vmem:[%s180 + $0x28] sm:$0xf] %v939
      %1068 = vst [vmem:[%s180 + $0x2c] sm:$0xf] %v940
      %1069 = vst [vmem:[%s180 + $0x30] sm:$0xf] %v941
      %1070 = vst [vmem:[%s180 + $0x34] sm:$0xf] %v942
      %1071 = vst [vmem:[%s180 + $0x38] sm:$0xf] %v943
      %1072 = vst [vmem:[%s180 + $0x3c] sm:$0xf] %v944
      %1073 = vst [vmem:[%s180 + $0x40] sm:$0xf] %v945
      %1074 = vst [vmem:[%s180 + $0x44] sm:$0xf] %v946
      %1075 = vst [vmem:[%s180 + $0x48] sm:$0xf] %v947
      %1076 = vst [vmem:[%s180 + $0x4c] sm:$0xf] %v948
      %1077 = vst [vmem:[%s180 + $0x50] sm:$0xf] %v949
      %1078 = vst [vmem:[%s180 + $0x54] sm:$0xf] %v950
      %1079 = vst [vmem:[%s180 + $0x58] sm:$0xf] %v951
      %1080 = vst [vmem:[%s180 + $0x5c] sm:$0xf] %v952
      %1081 = vst [vmem:[%s180 + $0x60] sm:$0xf] %v953
      %1082 = vst [vmem:[%s180 + $0x64] sm:$0xf] %v954
      %1083 = vst [vmem:[%s180 + $0x68] sm:$0xf] %v955
      %1084 = vst [vmem:[%s180 + $0x6c] sm:$0xf] %v956
      %1085 = vst [vmem:[%s180 + $0x70] sm:$0xf] %v957
      %1086 = vst [vmem:[%s180 + $0x74] sm:$0xf] %v958
      %1087 = vst [vmem:[%s180 + $0x78] sm:$0xf] %v959
      %1088 = vst [vmem:[%s180 + $0x7c] sm:$0xf] %v960
      %1089 = vst [vmem:[%s180 + $0x80] sm:$0xf] %v961
      %1090 = vst [vmem:[%s180 + $0x84] sm:$0xf] %v962
      %1091 = vst [vmem:[%s180 + $0x88] sm:$0xf] %v963
      %1092 = vst [vmem:[%s180 + $0x8c] sm:$0xf] %v964
      %1093 = vst [vmem:[%s180 + $0x90] sm:$0xf] %v965
      %1094 = vst [vmem:[%s180 + $0x94] sm:$0xf] %v966
      %1095 = vst [vmem:[%s180 + $0x98] sm:$0xf] %v967
      %1096 = vst [vmem:[%s180 + $0x9c] sm:$0xf] %v968
      %1097 = vst [vmem:[%s180 + $0xa0] sm:$0xf] %v969
      %1098 = vst [vmem:[%s180 + $0xa4] sm:$0xf] %v970
      %1099 = vst [vmem:[%s180 + $0xa8] sm:$0xf] %v971
      %1100 = vst [vmem:[%s180 + $0xac] sm:$0xf] %v972
      %1101 = vst [vmem:[%s180 + $0xb0] sm:$0xf] %v973
      %1102 = vst [vmem:[%s180 + $0xb4] sm:$0xf] %v974
      %1103 = vst [vmem:[%s180 + $0xb8] sm:$0xf] %v975
      %1104 = vst [vmem:[%s180 + $0xbc] sm:$0xf] %v976
      %1105 = vst [vmem:[%s180 + $0xc0] sm:$0xf] %v977
      %1106 = vst [vmem:[%s180 + $0xc4] sm:$0xf] %v978
      %1107 = vst [vmem:[%s180 + $0xc8] sm:$0xf] %v979
      %1108 = vst [vmem:[%s180 + $0xcc] sm:$0xf] %v980
      %1109 = vst [vmem:[%s180 + $0xd0] sm:$0xf] %v981
      %1110 = vst [vmem:[%s180 + $0xd4] sm:$0xf] %v982
      %1111 = vst [vmem:[%s180 + $0xd8] sm:$0xf] %v983
      %1112 = vst [vmem:[%s180 + $0xdc] sm:$0xf] %v984
      %1113 = vst [vmem:[%s180 + $0xe0] sm:$0xf] %v985
      %1114 = vst [vmem:[%s180 + $0xe4] sm:$0xf] %v986
      %1115 = vst [vmem:[%s180 + $0xe8] sm:$0xf] %v987
      %1116 = vst [vmem:[%s180 + $0xec] sm:$0xf] %v988
      %1117 = vst [vmem:[%s180 + $0xf0] sm:$0xf] %v989
      %1118 = vst [vmem:[%s180 + $0xf4] sm:$0xf] %v990
      %1119 = vst [vmem:[%s180 + $0xf8] sm:$0xf] %v991
      %1120 = vst [vmem:[%s180 + $0xfc] sm:$0xf] %v992
      %1121 = vst [vmem:[%s186] sm:$0xff] %v353
      %1122 = vst [vmem:[%s186 + $0x8] sm:$0xff] %v359
      %1123 = vst [vmem:[%s186 + $0x10] sm:$0xff] %v365
      %1124 = vst [vmem:[%s186 + $0x18] sm:$0xff] %v371
      %1125 = vst [vmem:[%s186 + $0x20] sm:$0xff] %v377
      %1126 = vst [vmem:[%s186 + $0x28] sm:$0xff] %v383
      %1127 = vst [vmem:[%s186 + $0x30] sm:$0xff] %v389
      %1128 = vst [vmem:[%s186 + $0x38] sm:$0xff] %v395
      %1129 = vst [vmem:[%s186 + $0x40] sm:$0xff] %v401
      %1130 = vst [vmem:[%s186 + $0x48] sm:$0xff] %v407
      %1131 = vst [vmem:[%s186 + $0x50] sm:$0xff] %v413
      %1132 = vst [vmem:[%s186 + $0x58] sm:$0xff] %v419
      %1133 = vst [vmem:[%s186 + $0x60] sm:$0xff] %v425
      %1134 = vst [vmem:[%s186 + $0x68] sm:$0xff] %v431
      %1135 = vst [vmem:[%s186 + $0x70] sm:$0xff] %v437
      %1136 = vst [vmem:[%s186 + $0x78] sm:$0xff] %v443
      %1137 = vst [vmem:[%s186 + $0x80] sm:$0xff] %v449
      %1138 = vst [vmem:[%s186 + $0x88] sm:$0xff] %v455
      %1139 = vst [vmem:[%s186 + $0x90] sm:$0xff] %v461
      %1140 = vst [vmem:[%s186 + $0x98] sm:$0xff] %v467
      %1141 = vst [vmem:[%s186 + $0xa0] sm:$0xff] %v473
      %1142 = vst [vmem:[%s186 + $0xa8] sm:$0xff] %v479
      %1143 = vst [vmem:[%s186 + $0xb0] sm:$0xff] %v485
      %1144 = vst [vmem:[%s186 + $0xb8] sm:$0xff] %v491
      %1145 = vst [vmem:[%s186 + $0xc0] sm:$0xff] %v497
      %1146 = vst [vmem:[%s186 + $0xc8] sm:$0xff] %v503
      %1147 = vst [vmem:[%s186 + $0xd0] sm:$0xff] %v509
      %1148 = vst [vmem:[%s186 + $0xd8] sm:$0xff] %v515
      %1149 = vst [vmem:[%s186 + $0xe0] sm:$0xff] %v521
      %1150 = vst [vmem:[%s186 + $0xe8] sm:$0xff] %v527
      %1151 = vst [vmem:[%s186 + $0xf0] sm:$0xff] %v533
      %1152 = vst [vmem:[%s186 + $0xf8] sm:$0xff] %v539
      %1153 = vst [vmem:[%s186 + $0x100] sm:$0xff] %v545
      %1154 = vst [vmem:[%s186 + $0x108] sm:$0xff] %v551
      %1155 = vst [vmem:[%s186 + $0x110] sm:$0xff] %v557
      %1156 = vst [vmem:[%s186 + $0x118] sm:$0xff] %v563
      %1157 = vst [vmem:[%s186 + $0x120] sm:$0xff] %v569
      %1158 = vst [vmem:[%s186 + $0x128] sm:$0xff] %v575
      %1159 = vst [vmem:[%s186 + $0x130] sm:$0xff] %v581
      %1160 = vst [vmem:[%s186 + $0x138] sm:$0xff] %v587
      %1161 = vst [vmem:[%s186 + $0x140] sm:$0xff] %v593
      %1162 = vst [vmem:[%s186 + $0x148] sm:$0xff] %v599
      %1163 = vst [vmem:[%s186 + $0x150] sm:$0xff] %v605
      %1164 = vst [vmem:[%s186 + $0x158] sm:$0xff] %v611
      %1165 = vst [vmem:[%s186 + $0x160] sm:$0xff] %v617
      %1166 = vst [vmem:[%s186 + $0x168] sm:$0xff] %v623
      %1167 = vst [vmem:[%s186 + $0x170] sm:$0xff] %v629
      %1168 = vst [vmem:[%s186 + $0x178] sm:$0xff] %v635
      %1169 = vst [vmem:[%s186 + $0x180] sm:$0xff] %v641
      %1170 = vst [vmem:[%s186 + $0x188] sm:$0xff] %v647
      %1171 = vst [vmem:[%s186 + $0x190] sm:$0xff] %v653
      %1172 = vst [vmem:[%s186 + $0x198] sm:$0xff] %v659
      %1173 = vst [vmem:[%s186 + $0x1a0] sm:$0xff] %v665
      %1174 = vst [vmem:[%s186 + $0x1a8] sm:$0xff] %v671
      %1175 = vst [vmem:[%s186 + $0x1b0] sm:$0xff] %v677
      %1176 = vst [vmem:[%s186 + $0x1b8] sm:$0xff] %v683
      %1177 = vst [vmem:[%s186 + $0x1c0] sm:$0xff] %v689
      %1178 = vst [vmem:[%s186 + $0x1c8] sm:$0xff] %v695
      %1179 = vst [vmem:[%s186 + $0x1d0] sm:$0xff] %v701
      %1180 = vst [vmem:[%s186 + $0x1d8] sm:$0xff] %v707
      %1181 = vst [vmem:[%s186 + $0x1e0] sm:$0xff] %v713
      %1182 = vst [vmem:[%s186 + $0x1e8] sm:$0xff] %v719
      %1183 = vst [vmem:[%s186 + $0x1f0] sm:$0xff] %v725
      %1184 = vst [vmem:[%s186 + $0x1f8] sm:$0xff] %v731
      %s1185 = smul.u32 64, %s15
      %p1186 = scmp.lt.s32.totalorder %s1185, 127
      %s1187 = scalar_select %p1186, %s1185, 127
      %s1188 = smul.addr %s1187, 4
      %s1189 = scalar_lea.vmem %s2, %s1188
      %s1190 = smul.u32 64, %s15
      %p1191 = scmp.lt.s32.totalorder %s1190, 127
      %s1192 = scalar_select %p1191, %s1190, 127
      %s1193 = smul.addr %s1192, 8
      %s1194 = scalar_lea.vmem %s3, %s1193
      // Predicated region
      $region29: #{gat_forward.6} parent=27 // pred_check
        %p1195 = pneg %p80
      $region30: #{gat_forward.6} parent=27 // pred_check_branch
        %1197 = sbr.rel (%p1195) target = $region32
      $region31: #{gat_forward.6} parent=27 // pred_region
        %s1198 = smul.u32 64, %s15
      $region32: #{gat_forward.6} parent=27 // pred_fallthru
        _
      // Predicated region
      $region33: #{gat_forward.6} parent=27 // pred_check
        %p1199 = pneg %p106
      $region34: #{gat_forward.6} parent=27 // pred_check_branch
        %1201 = sbr.rel (%p1199) target = $region36
      $region35: #{gat_forward.6} parent=27 // pred_region
        %s1202 = smul.u32 64, %s15
      $region36: #{gat_forward.6} parent=27 // pred_fallthru
        _
    $region28: #{gat_forward.6} parent=5 // pred_fallthru
      _
    %p1203 = scmp.le.s32.totalorder 2, %s10
    // Predicated region
    $region37: #{gat_forward.6} parent=5 // pred_check
      %p1204 = pneg %p1203
    $region38: #{gat_forward.6} parent=5 // pred_check_branch
      %1206 = sbr.rel (%p1204) target = $region40
    $region39: #{gat_forward.6} parent=5 // pred_region
      %s1207 = ssub.s32 %s10, 2
      // Predicated region
      $region41: #{gat_forward.6} parent=39 // pred_check
        %p1208 = pneg %p86
      $region42: #{gat_forward.6} parent=39 // pred_check_branch
        %1210 = sbr.rel (%p1208) target = $region44
      $region43: #{gat_forward.6} parent=39 // pred_region
        %s1211 = smul.u32 64, %s16
        %p1212 = scmp.lt.s32.totalorder %s1211, 127
        %s1213 = scalar_select %p1212, %s1211, 127
        %s1214 = smul.addr %s1213, 4
        %s1215 = scalar_lea.vmem %s2, %s1214
      $region44: #{gat_forward.6} parent=39 // pred_fallthru
        _
      // Predicated region
      $region45: #{gat_forward.6} parent=39 // pred_check
        %p1216 = pneg %p112
      $region46: #{gat_forward.6} parent=39 // pred_check_branch
        %1218 = sbr.rel (%p1216) target = $region48
      $region47: #{gat_forward.6} parent=39 // pred_region
        %s1219 = smul.u32 64, %s16
        %p1220 = scmp.lt.s32.totalorder %s1219, 127
        %s1221 = scalar_select %p1220, %s1219, 127
        %s1222 = smul.addr %s1221, 8
        %s1223 = scalar_lea.vmem %s3, %s1222
      $region48: #{gat_forward.6} parent=39 // pred_fallthru
        _
    $region40: #{gat_forward.6} parent=5 // pred_fallthru
      _
  $region6: #{gat_forward.6} parent=0 // loop_footer
    %s14 = sadd.s32 1, %s10
  $region7: #{gat_forward.6} parent=0 // loop_footer_branch
    %9 = sbr.rel target = $region3
  $region8: #{gat_forward.6} parent=0 // loop_exit
    _

// kernel: gat_forward.7
$region0: #{gat_forward.7}
  #allocation0 [shape = 'u32[]', space=smem, size = 0x4, offset = 0x4, fixed_abs, tag = 'smem constant byte address 0x4 - core index']
  #allocation1 [shape = 'u32[144,128]{1,0:T(1,128)}', space=vmem, size = 0x12000, scoped, tag = 'internal scratch']
  #allocation2 [shape = 'f32[128,1]{1,0:T(8,128)}', space=vmem, size = 0x10000, scoped, tag = 'scratch operand']
  #allocation3 [shape = 'f32[128,128]{1,0:T(8,128)}', space=vmem, size = 0x10000, scoped, tag = 'scratch operand']
  %s0 = inlined_call_operand.vmem [shape: s8[1024,1024], index: 0, kind: input, shape index: {}]
  %s1 = inlined_call_operand.vmem [shape: bf16[1024,128], index: 1, kind: input, shape index: {}]
  %s2 = inlined_call_operand.vmem [shape: f32[1024,1], index: 2, kind: input, shape index: {}]
  %s3 = inlined_call_operand.vmem [shape: f32[1,1024], index: 3, kind: input, shape index: {}]
  %s4 = inlined_call_operand.vmem [shape: f32[1,128], index: 4, kind: input, shape index: {}]
  %s5 = inlined_call_operand.vmem [shape: f32[1024,128], index: 5, kind: output, shape index: {}]
  %s6 = sld [smem:[#allocation0]]
  $region84: #{gat_forward.7} parent=0
    _
  %s8 = ssub.s32 1, %s6
  %s9 = scalar_select 0, %s8, %s6
  $region1: #{gat_forward.7} parent=0
    #allocation4 [shape = 'u8[131072]{0}', space=vmem, size = 0x20000, scoped, tag = 'input window, operand 0']
    loop: start=0, step=1, limit=18
    $region2: #{gat_forward.7} parent=1 // loop_pre_header
      _
    $region3: #{gat_forward.7} parent=1 // loop_header
      %s11 = sphi 0, %s15
      %p12 = scmp.ge.s32.totalorder %s11, 18
      %s18 = sphi 0, %s30
      %s19 = sphi 0, %s26
      %s20 = sphi 0, %s18
      %s21 = sphi 0, %s19
      %s22 = sphi 0, %s20
      %s23 = sphi 0, %s21
      %s35 = sphi 0, %s37
      %s38 = sphi 0, %s35
      %s39 = sphi 0, %s38
      %s55 = sphi 0, %s39
      %s61 = sphi 0, %s63
      %s64 = sphi 0, %s61
      %s65 = sphi 0, %s64
      %s81 = sphi 0, %s65
      %s87 = sphi 0, %s89
      %s90 = sphi 0, %s87
      %s91 = sphi 0, %s90
      %s107 = sphi 0, %s91
      %s113 = sphi 0, %s115
      %s116 = sphi 0, %s113
      %s117 = sphi 0, %s116
      %s133 = sphi 0, %s117
      %s137 = sphi 0, %s137
      %s139 = sphi 0, %s137
      %s140 = sphi 0, %s139
      %s154 = sphi 0, %s140
      %s160 = sphi 0, %s162
      %s163 = sphi 0, %s160
      %s164 = sphi 0, %s163
      %s180 = sphi 0, %s164
    $region4: #{gat_forward.7} parent=1 // loop_header_branch
      %14 = sbr.rel (%p12) target = $region8
    $region5: #{gat_forward.7} parent=1 // loop_body
      %s16 = ssub.s32 %s11, 1
      %s17 = ssub.s32 %s11, 2
      %s24 = sadd.s32 1, %s19
      %p25 = scmp.ge.s32.totalorder %s24, 2
      %s26 = scalar_select %p25, 0, %s24
      %s27 = sadd.s32 1, %s18
      %s28 = scalar_select %p25, %s27, %s18
      %p29 = scmp.ge.s32.totalorder %s28, 8
      %s30 = scalar_select %p29, 0, %s28
      %s31 = ssub.s32 %s18, %s30
      %s32 = ssub.s32 %s19, %s26
      %s33 = sor.u32 %s31, %s32
      %p34 = scmp.eq.s32.totalorder %s33, 0
      %s36 = sadd.s32 %s35, 1
      %s37 = scalar_select %p34, %s35, %s36
      %p40 = pneg %p34
      %p41 = scmp.eq.s32.totalorder %s11, 15
      %p42 = por %p40, %p41
      %p43 = scmp.ne.s32.totalorder %s35, %s38
      %p44 = scmp.eq.s32.totalorder %s11, 0
      %p45 = por %p43, %p44
      %p46 = scmp.ne.s32.totalorder %s35, %s38
      %p47 = scmp.eq.s32.totalorder %s16, 15
      %p48 = por %p46, %p47
      %p49 = scmp.ne.s32.totalorder %s38, %s39
      %p50 = scmp.eq.s32.totalorder %s16, 0
      %p51 = por %p49, %p50
      %p52 = scmp.ne.s32.totalorder %s38, %s39
      %p53 = scmp.eq.s32.totalorder %s17, 15
      %p54 = por %p52, %p53
      %p56 = scmp.ne.s32.totalorder %s39, %s55
      %p57 = scmp.eq.s32.totalorder %s17, 0
      %p58 = por %p56, %p57
      %s59 = ssub.s32 %s19, %s26
      %p60 = scmp.eq.s32.totalorder %s59, 0
      %s62 = sadd.s32 %s61, 1
      %s63 = scalar_select %p60, %s61, %s62
      %p66 = pneg %p60
      %p67 = scmp.eq.s32.totalorder %s11, 15
      %p68 = por %p66, %p67
      %p69 = scmp.ne.s32.totalorder %s61, %s64
      %p70 = scmp.eq.s32.totalorder %s11, 0
      %p71 = por %p69, %p70
      %p72 = scmp.ne.s32.totalorder %s61, %s64
      %p73 = scmp.eq.s32.totalorder %s16, 15
      %p74 = por %p72, %p73
      %p75 = scmp.ne.s32.totalorder %s64, %s65
      %p76 = scmp.eq.s32.totalorder %s16, 0
      %p77 = por %p75, %p76
      %p78 = scmp.ne.s32.totalorder %s64, %s65
      %p79 = scmp.eq.s32.totalorder %s17, 15
      %p80 = por %p78, %p79
      %p82 = scmp.ne.s32.totalorder %s65, %s81
      %p83 = scmp.eq.s32.totalorder %s17, 0
      %p84 = por %p82, %p83
      %s85 = ssub.s32 %s18, %s30
      %p86 = scmp.eq.s32.totalorder %s85, 0
      %s88 = sadd.s32 %s87, 1
      %s89 = scalar_select %p86, %s87, %s88
      %p92 = pneg %p86
      %p93 = scmp.eq.s32.totalorder %s11, 15
      %p94 = por %p92, %p93
      %p95 = scmp.ne.s32.totalorder %s87, %s90
      %p96 = scmp.eq.s32.totalorder %s11, 0
      %p97 = por %p95, %p96
      %p98 = scmp.ne.s32.totalorder %s87, %s90
      %p99 = scmp.eq.s32.totalorder %s16, 15
      %p100 = por %p98, %p99
      %p101 = scmp.ne.s32.totalorder %s90, %s91
      %p102 = scmp.eq.s32.totalorder %s16, 0
      %p103 = por %p101, %p102
      %p104 = scmp.ne.s32.totalorder %s90, %s91
      %p105 = scmp.eq.s32.totalorder %s17, 15
      %p106 = por %p104, %p105
      %p108 = scmp.ne.s32.totalorder %s91, %s107
      %p109 = scmp.eq.s32.totalorder %s17, 0
      %p110 = por %p108, %p109
      %s111 = ssub.s32 %s19, %s26
      %p112 = scmp.eq.s32.totalorder %s111, 0
      %s114 = sadd.s32 %s113, 1
      %s115 = scalar_select %p112, %s113, %s114
      %p118 = pneg %p112
      %p119 = scmp.eq.s32.totalorder %s11, 15
      %p120 = por %p118, %p119
      %p121 = scmp.ne.s32.totalorder %s113, %s116
      %p122 = scmp.eq.s32.totalorder %s11, 0
      %p123 = por %p121, %p122
      %p124 = scmp.ne.s32.totalorder %s113, %s116
      %p125 = scmp.eq.s32.totalorder %s16, 15
      %p126 = por %p124, %p125
      %p127 = scmp.ne.s32.totalorder %s116, %s117
      %p128 = scmp.eq.s32.totalorder %s16, 0
      %p129 = por %p127, %p128
      %p130 = scmp.ne.s32.totalorder %s116, %s117
      %p131 = scmp.eq.s32.totalorder %s17, 15
      %p132 = por %p130, %p131
      %p134 = scmp.ne.s32.totalorder %s117, %s133
      %p135 = scmp.eq.s32.totalorder %s17, 0
      %p136 = por %p134, %p135
      %s138 = sadd.s32 %s137, 1
      %p141 = scmp.eq.s32.totalorder %s11, 15
      %p142 = scmp.ne.s32.totalorder %s137, %s139
      %p143 = scmp.eq.s32.totalorder %s11, 0
      %p144 = por %p142, %p143
      %p145 = scmp.ne.s32.totalorder %s137, %s139
      %p146 = scmp.eq.s32.totalorder %s16, 15
      %p147 = por %p145, %p146
      %p148 = scmp.ne.s32.totalorder %s139, %s140
      %p149 = scmp.eq.s32.totalorder %s16, 0
      %p150 = por %p148, %p149
      %p151 = scmp.ne.s32.totalorder %s139, %s140
      %p152 = scmp.eq.s32.totalorder %s17, 15
      %p153 = por %p151, %p152
      %p155 = scmp.ne.s32.totalorder %s140, %s154
      %p156 = scmp.eq.s32.totalorder %s17, 0
      %p157 = por %p155, %p156
      %s158 = ssub.s32 %s18, %s30
      %p159 = scmp.eq.s32.totalorder %s158, 0
      %s161 = sadd.s32 %s160, 1
      %s162 = scalar_select %p159, %s160, %s161
      %p165 = pneg %p159
      %p166 = scmp.eq.s32.totalorder %s11, 15
      %p167 = por %p165, %p166
      %p168 = scmp.ne.s32.totalorder %s160, %s163
      %p169 = scmp.eq.s32.totalorder %s11, 0
      %p170 = por %p168, %p169
      %p171 = scmp.ne.s32.totalorder %s160, %s163
      %p172 = scmp.eq.s32.totalorder %s16, 15
      %p173 = por %p171, %p172
      %p174 = scmp.ne.s32.totalorder %s163, %s164
      %p175 = scmp.eq.s32.totalorder %s16, 0
      %p176 = por %p174, %p175
      %p177 = scmp.ne.s32.totalorder %s163, %s164
      %p178 = scmp.eq.s32.totalorder %s17, 15
      %p179 = por %p177, %p178
      %p181 = scmp.ne.s32.totalorder %s164, %s180
      %p182 = scmp.eq.s32.totalorder %s17, 0
      %p183 = por %p181, %p182
      %p184 = scmp.le.s32.totalorder 1, %s11
      %p185 = scmp.lt.s32.totalorder %s11, 17
      %p186 = pnand %p184, %p185
      %p187 = pneg %p186
      // Predicated region
      $region9: #{gat_forward.7} parent=5 // pred_check
        _
      $region10: #{gat_forward.7} parent=5 // pred_check_branch
        %189 = sbr.rel (%p186) target = $region12
      $region11: #{gat_forward.7} parent=5 // pred_region
        %s190 = ssub.s32 %s11, 1
        // Predicated region
        $region13: #{gat_forward.7} parent=11 // pred_check
          %p191 = pneg %p150
        $region14: #{gat_forward.7} parent=11 // pred_check_branch
          %193 = sbr.rel (%p191) target = $region16
        $region15: #{gat_forward.7} parent=11 // pred_region
          _
        $region16: #{gat_forward.7} parent=11 // pred_fallthru
          _
      $region12: #{gat_forward.7} parent=5 // pred_fallthru
        _
      %p194 = scmp.lt.s32.totalorder %s11, 16
      // Predicated region
      $region17: #{gat_forward.7} parent=5 // pred_check
        %p195 = pneg %p194
      $region18: #{gat_forward.7} parent=5 // pred_check_branch
        %197 = sbr.rel (%p195) target = $region20
      $region19: #{gat_forward.7} parent=5 // pred_region
        // Predicated region
        $region21: #{gat_forward.7} parent=19 // pred_check
          %p198 = pneg %p45
        $region22: #{gat_forward.7} parent=19 // pred_check_branch
          %200 = sbr.rel (%p198) target = $region24
        $region23: #{gat_forward.7} parent=19 // pred_region
          %s201 = sand.u32 %s35, 1
          %s202 = sand.u32 %s35, 1
          %s203 = smul.addr %s202, 128
          %s204 = scalar_lea.vmem [#allocation4], %s203
          %s205 = smul.u32 4, %s18
          %s206 = smul.u32 4, %s19
          %s207 = smul.addr %s205, 8
          %s208 = sadd.s32 %s206, %s207
          %s209 = smul.addr %s208, 8
          %s210 = scalar_lea.vmem %s0, %s209
          // Predicated region
          $region25: #{gat_forward.7} parent=23 // pred_check
            _
          $region26: #{gat_forward.7} parent=23 // pred_check_branch
            %212 = sbr.rel (0) target = $region28
          $region27: #{gat_forward.7} parent=23 // pred_region
            // Predicated region
            $region29: #{gat_forward.7} parent=27 // pred_check
              _
            $region30: #{gat_forward.7} parent=27 // pred_check_branch
              %214 = sbr.rel (0) target = $region32
            $region31: #{gat_forward.7} parent=27 // pred_region
              loop: start=0, step=1, limit=1
              $region33: #{gat_forward.7} parent=31 // loop_pre_header
                _
              $region34: #{gat_forward.7} parent=31 // loop_header
                %s216 = sphi 0, %s220
                %p217 = scmp.ge.s32.totalorder %s216, 1
                %s221 = sphi %s210, %s210
                %s222 = sphi %s204, %s204
              $region35: #{gat_forward.7} parent=31 // loop_header_branch
                %219 = sbr.rel (%p217) target = $region39
              $region36: #{gat_forward.7} parent=31 // loop_body
                %v223 = vld [vmem:[%s221] sm:$0xff]
                %224 = vst [vmem:[%s222] sm:$0xff] %v223
                %v225 = vld [vmem:[%s221 + $0x8] sm:$0xff]
                %226 = vst [vmem:[%s222 + $0x8] sm:$0xff] %v225
                %v227 = vld [vmem:[%s221 + $0x10] sm:$0xff]
                %228 = vst [vmem:[%s222 + $0x10] sm:$0xff] %v227
                %v229 = vld [vmem:[%s221 + $0x18] sm:$0xff]
                %230 = vst [vmem:[%s222 + $0x18] sm:$0xff] %v229
                %v231 = vld [vmem:[%s221 + $0x40] sm:$0xff]
                %232 = vst [vmem:[%s222 + $0x20] sm:$0xff] %v231
                %v233 = vld [vmem:[%s221 + $0x48] sm:$0xff]
                %234 = vst [vmem:[%s222 + $0x28] sm:$0xff] %v233
                %v235 = vld [vmem:[%s221 + $0x50] sm:$0xff]
                %236 = vst [vmem:[%s222 + $0x30] sm:$0xff] %v235
                %v237 = vld [vmem:[%s221 + $0x58] sm:$0xff]
                %238 = vst [vmem:[%s222 + $0x38] sm:$0xff] %v237
                %v239 = vld [vmem:[%s221 + $0x80] sm:$0xff]
                %240 = vst [vmem:[%s222 + $0x40] sm:$0xff] %v239
                %v241 = vld [vmem:[%s221 + $0x88] sm:$0xff]
                %242 = vst [vmem:[%s222 + $0x48] sm:$0xff] %v241
                %v243 = vld [vmem:[%s221 + $0x90] sm:$0xff]
                %244 = vst [vmem:[%s222 + $0x50] sm:$0xff] %v243
                %v245 = vld [vmem:[%s221 + $0x98] sm:$0xff]
                %246 = vst [vmem:[%s222 + $0x58] sm:$0xff] %v245
                %v247 = vld [vmem:[%s221 + $0xc0] sm:$0xff]
                %248 = vst [vmem:[%s222 + $0x60] sm:$0xff] %v247
                %v249 = vld [vmem:[%s221 + $0xc8] sm:$0xff]
                %250 = vst [vmem:[%s222 + $0x68] sm:$0xff] %v249
                %v251 = vld [vmem:[%s221 + $0xd0] sm:$0xff]
                %252 = vst [vmem:[%s222 + $0x70] sm:$0xff] %v251
                %v253 = vld [vmem:[%s221 + $0xd8] sm:$0xff]
                %254 = vst [vmem:[%s222 + $0x78] sm:$0xff] %v253
              $region37: #{gat_forward.7} parent=31 // loop_footer
                %s220 = sadd.s32 1, %s216
              $region38: #{gat_forward.7} parent=31 // loop_footer_branch
                %215 = sbr.rel target = $region34
              $region39: #{gat_forward.7} parent=31 // loop_exit
                _
            $region32: #{gat_forward.7} parent=27 // pred_fallthru
              _
            // Predicated region
            $region40: #{gat_forward.7} parent=27 // pred_check
              _
            $region41: #{gat_forward.7} parent=27 // pred_check_branch
              %256 = sbr.rel target = $region43
            $region42: #{gat_forward.7} parent=27 // pred_region
              _
            $region43: #{gat_forward.7} parent=27 // pred_fallthru
              _
          $region28: #{gat_forward.7} parent=23 // pred_fallthru
            _
          %257 = vnop
        $region24: #{gat_forward.7} parent=19 // pred_fallthru
          _
        // Predicated region
        $region44: #{gat_forward.7} parent=19 // pred_check
          %p258 = pneg %p71
        $region45: #{gat_forward.7} parent=19 // pred_check_branch
          %260 = sbr.rel (%p258) target = $region47
        $region46: #{gat_forward.7} parent=19 // pred_region
          %s261 = smul.u32 64, %s19
          %p262 = scmp.lt.s32.totalorder %s261, 127
          %s263 = scalar_select %p262, %s261, 127
          %s264 = smul.addr %s263, 4
          %s265 = scalar_lea.vmem %s1, %s264
          %s266 = smul.u32 64, %s19
        $region47: #{gat_forward.7} parent=19 // pred_fallthru
          _
        // Predicated region
        $region48: #{gat_forward.7} parent=19 // pred_check
          %p267 = pneg %p97
        $region49: #{gat_forward.7} parent=19 // pred_check_branch
          %269 = sbr.rel (%p267) target = $region51
        $region50: #{gat_forward.7} parent=19 // pred_region
          %s270 = smul.u32 16, %s18
          %p271 = scmp.lt.s32.totalorder %s270, 127
          %s272 = scalar_select %p271, %s270, 127
          %s273 = smul.addr %s272, 8
          %s274 = scalar_lea.vmem %s2, %s273
          %s275 = smul.u32 16, %s18
        $region51: #{gat_forward.7} parent=19 // pred_fallthru
          _
        // Predicated region
        $region52: #{gat_forward.7} parent=19 // pred_check
          %p276 = pneg %p123
        $region53: #{gat_forward.7} parent=19 // pred_check_branch
          %278 = sbr.rel (%p276) target = $region55
        $region54: #{gat_forward.7} parent=19 // pred_region
          %s279 = smul.u32 4, %s19
          %p280 = scmp.lt.s32.totalorder %s279, 7
          %s281 = scalar_select %p280, %s279, 7
          %s282 = scalar_lea.vmem %s3, %s281
          %s283 = smul.u32 4, %s19
        $region55: #{gat_forward.7} parent=19 // pred_fallthru
          _
      $region20: #{gat_forward.7} parent=5 // pred_fallthru
        _
      %p284 = scmp.le.s32.totalorder 1, %s11
      %p285 = scmp.lt.s32.totalorder %s11, 17
      %p286 = pnand %p284, %p285
      %p287 = pneg %p286
      // Predicated region
      $region56: #{gat_forward.7} parent=5 // pred_check
        _
      $region57: #{gat_forward.7} parent=5 // pred_check_branch
        %289 = sbr.rel (%p286) target = $region59
      $region58: #{gat_forward.7} parent=5 // pred_region
        %s290 = ssub.s32 %s11, 1
        %s291 = sand.u32 %s38, 1
        %s292 = sand.u32 %s38, 1
        %s293 = smul.addr %s292, 128
        %s294 = scalar_lea.vmem [#allocation4], %s293
        // Predicated region
        $region60: #{gat_forward.7} parent=58 // pred_check
          %p295 = pneg %p51
        $region61: #{gat_forward.7} parent=58 // pred_check_branch
          %297 = sbr.rel (%p295) target = $region63
        $region62: #{gat_forward.7} parent=58 // pred_region
          _
        $region63: #{gat_forward.7} parent=58 // pred_fallthru
          _
        %s298 = sand.u32 %s38, 1
        %s299 = sand.u32 %s38, 1
        %s300 = smul.addr %s299, 128
        %s301 = scalar_lea.vmem [#allocation4], %s300
        %p302 = pneg %p51
        %p303 = pneg %p48
        %s304 = smul.u32 64, %s21
        %p305 = scmp.lt.s32.totalorder %s304, 127
        %s306 = scalar_select %p305, %s304, 127
        %s307 = smul.addr %s306, 4
        %s308 = scalar_lea.vmem %s1, %s307
        %p309 = pneg %p77
        %p310 = pneg %p74
        %s311 = smul.u32 16, %s20
        %p312 = scmp.lt.s32.totalorder %s311, 127
        %s313 = scalar_select %p312, %s311, 127
        %s314 = smul.addr %s313, 8
        %s315 = scalar_lea.vmem %s2, %s314
        %p316 = pneg %p103
        %p317 = pneg %p100
        %s318 = smul.u32 4, %s21
        %p319 = scmp.lt.s32.totalorder %s318, 7
        %s320 = scalar_select %p319, %s318, 7
        %s321 = scalar_lea.vmem %s3, %s320
        %p322 = pneg %p129
        %p323 = pneg %p126
        %p324 = pneg %p150
        %p325 = pneg %p147
        %p326 = pneg %p176
        %p327 = pneg %p173
        %s328 = smul.u32 16, %s20
        %p329 = scmp.lt.s32.totalorder %s328, 127
        %s330 = scalar_select %p329, %s328, 127
        %s331 = smul.addr %s330, 8
        %s332 = scalar_lea.vmem %s5, %s331
        %s333 = smul.u32 4, %s20
        %s334 = smul.u32 4, %s21
        %s335 = smul.u32 64, %s21
        %p336 = scmp.lt.s32.totalorder %s335, 127
        %s337 = scalar_select %p336, %s335, 127
        %s338 = smul.addr %s337, 4
        %s339 = scalar_lea.vmem %s1, %s338
        %s340 = smul.u32 64, %s21
        %s341 = smul.u32 16, %s20
        %p342 = scmp.lt.s32.totalorder %s341, 127
        %s343 = scalar_select %p342, %s341, 127
        %s344 = smul.addr %s343, 8
        %s345 = scalar_lea.vmem %s2, %s344
        %s346 = smul.u32 16, %s20
        %s347 = smul.u32 4, %s21
        %p348 = scmp.lt.s32.totalorder %s347, 7
        %s349 = scalar_select %p348, %s347, 7
        %s350 = scalar_lea.vmem %s3, %s349
        %s351 = smul.u32 4, %s21
        %s352 = smul.u32 16, %s20
        %p353 = scmp.lt.s32.totalorder %s352, 127
        %s354 = scalar_select %p353, %s352, 127
        %s355 = smul.addr %s354, 8
        %s356 = scalar_lea.vmem %s5, %s355
        %s357 = smul.u32 16, %s20
        %p359 = scmp.eq.s32.totalorder %s21, 0
        // Predicated region
        $region64: #{gat_forward.7} parent=58 // pred_check
          %p360 = pneg %p359
        $region65: #{gat_forward.7} parent=58 // pred_check_branch
          %362 = sbr.rel (%p360) target = $region67
        $region66: #{gat_forward.7} parent=58 // pred_region
          %vm363 = vcmask 7168
          %364 = vst.msk [vmem:[#allocation2] sm:$0xff] %vm363, -1e+30
          %365 = vst.msk [vmem:[#allocation2 + $0x8] sm:$0xff] %vm363, -1e+30
          %366 = vst.msk [vmem:[#allocation2 + $0x10] sm:$0xff] %vm363, -1e+30
          %367 = vst.msk [vmem:[#allocation2 + $0x18] sm:$0xff] %vm363, -1e+30
          %368 = vst.msk [vmem:[#allocation2 + $0x20] sm:$0xff] %vm363, -1e+30
          %369 = vst.msk [vmem:[#allocation2 + $0x28] sm:$0xff] %vm363, -1e+30
          %370 = vst.msk [vmem:[#allocation2 + $0x30] sm:$0xff] %vm363, -1e+30
          %371 = vst.msk [vmem:[#allocation2 + $0x38] sm:$0xff] %vm363, -1e+30
          %372 = vst.msk [vmem:[#allocation2 + $0x40] sm:$0xff] %vm363, -1e+30
          %373 = vst.msk [vmem:[#allocation2 + $0x48] sm:$0xff] %vm363, -1e+30
          %374 = vst.msk [vmem:[#allocation2 + $0x50] sm:$0xff] %vm363, -1e+30
          %375 = vst.msk [vmem:[#allocation2 + $0x58] sm:$0xff] %vm363, -1e+30
          %376 = vst.msk [vmem:[#allocation2 + $0x60] sm:$0xff] %vm363, -1e+30
          %377 = vst.msk [vmem:[#allocation2 + $0x68] sm:$0xff] %vm363, -1e+30
          %378 = vst.msk [vmem:[#allocation2 + $0x70] sm:$0xff] %vm363, -1e+30
          %379 = vst.msk [vmem:[#allocation2 + $0x78] sm:$0xff] %vm363, -1e+30
          %380 = vst [vmem:[#allocation3] sm:$0xff] 0.0
          %381 = vst [vmem:[#allocation3 + $0x8] sm:$0xff] 0.0
          %382 = vst [vmem:[#allocation3 + $0x10] sm:$0xff] 0.0
          %383 = vst [vmem:[#allocation3 + $0x18] sm:$0xff] 0.0
          %384 = vst [vmem:[#allocation3 + $0x20] sm:$0xff] 0.0
          %385 = vst [vmem:[#allocation3 + $0x28] sm:$0xff] 0.0
          %386 = vst [vmem:[#allocation3 + $0x30] sm:$0xff] 0.0
          %387 = vst [vmem:[#allocation3 + $0x38] sm:$0xff] 0.0
          %388 = vst [vmem:[#allocation3 + $0x40] sm:$0xff] 0.0
          %389 = vst [vmem:[#allocation3 + $0x48] sm:$0xff] 0.0
          %390 = vst [vmem:[#allocation3 + $0x50] sm:$0xff] 0.0
          %391 = vst [vmem:[#allocation3 + $0x58] sm:$0xff] 0.0
          %392 = vst [vmem:[#allocation3 + $0x60] sm:$0xff] 0.0
          %393 = vst [vmem:[#allocation3 + $0x68] sm:$0xff] 0.0
          %394 = vst [vmem:[#allocation3 + $0x70] sm:$0xff] 0.0
          %395 = vst [vmem:[#allocation3 + $0x78] sm:$0xff] 0.0
        $region67: #{gat_forward.7} parent=58 // pred_fallthru
          _
        %v396 = vld [vmem:[%s294] sm:$0xff]
        %v397 = vld [vmem:[%s294 + $0x8] sm:$0xff]
        %v398 = vld [vmem:[%s294 + $0x10] sm:$0xff]
        %v399 = vld [vmem:[%s294 + $0x18] sm:$0xff]
        %v400 = vld [vmem:[%s294 + $0x20] sm:$0xff]
        %v401 = vld [vmem:[%s294 + $0x28] sm:$0xff]
        %v402 = vld [vmem:[%s294 + $0x30] sm:$0xff]
        %v403 = vld [vmem:[%s294 + $0x38] sm:$0xff]
        %v404 = vld [vmem:[%s294 + $0x40] sm:$0xff]
        %v405 = vld [vmem:[%s294 + $0x48] sm:$0xff]
        %v406 = vld [vmem:[%s294 + $0x50] sm:$0xff]
        %v407 = vld [vmem:[%s294 + $0x58] sm:$0xff]
        %v408 = vld [vmem:[%s294 + $0x60] sm:$0xff]
        %v409 = vld [vmem:[%s294 + $0x68] sm:$0xff]
        %v410 = vld [vmem:[%s294 + $0x70] sm:$0xff]
        %v411 = vld [vmem:[%s294 + $0x78] sm:$0xff]
        %v412 = vunpack.c.0.s8 %v396
        %v413 = vunpack.c.0.s8 %v397
        %v414 = vunpack.c.0.s8 %v398
        %v415 = vunpack.c.0.s8 %v399
        %v416 = vunpack.c.1.s8 %v396
        %v417 = vunpack.c.1.s8 %v397
        %v418 = vunpack.c.1.s8 %v398
        %v419 = vunpack.c.1.s8 %v399
        %v420 = vunpack.c.2.s8 %v396
        %v421 = vunpack.c.2.s8 %v397
        %v422 = vunpack.c.2.s8 %v398
        %v423 = vunpack.c.2.s8 %v399
        %v424 = vunpack.c.3.s8 %v396
        %v425 = vunpack.c.3.s8 %v397
        %v426 = vunpack.c.3.s8 %v398
        %v427 = vunpack.c.3.s8 %v399
        %v428 = vunpack.c.0.s8 %v400
        %v429 = vunpack.c.0.s8 %v401
        %v430 = vunpack.c.0.s8 %v402
        %v431 = vunpack.c.0.s8 %v403
        %v432 = vunpack.c.1.s8 %v400
        %v433 = vunpack.c.1.s8 %v401
        %v434 = vunpack.c.1.s8 %v402
        %v435 = vunpack.c.1.s8 %v403
        %v436 = vunpack.c.2.s8 %v400
        %v437 = vunpack.c.2.s8 %v401
        %v438 = vunpack.c.2.s8 %v402
        %v439 = vunpack.c.2.s8 %v403
        %v440 = vunpack.c.3.s8 %v400
        %v441 = vunpack.c.3.s8 %v401
        %v442 = vunpack.c.3.s8 %v402
        %v443 = vunpack.c.3.s8 %v403
        %v444 = vunpack.c.0.s8 %v404
        %v445 = vunpack.c.0.s8 %v405
        %v446 = vunpack.c.0.s8 %v406
        %v447 = vunpack.c.0.s8 %v407
        %v448 = vunpack.c.1.s8 %v404
        %v449 = vunpack.c.1.s8 %v405
        %v450 = vunpack.c.1.s8 %v406
        %v451 = vunpack.c.1.s8 %v407
        %v452 = vunpack.c.2.s8 %v404
        %v453 = vunpack.c.2.s8 %v405
        %v454 = vunpack.c.2.s8 %v406
        %v455 = vunpack.c.2.s8 %v407
        %v456 = vunpack.c.3.s8 %v404
        %v457 = vunpack.c.3.s8 %v405
        %v458 = vunpack.c.3.s8 %v406
        %v459 = vunpack.c.3.s8 %v407
        %v460 = vunpack.c.0.s8 %v408
        %v461 = vunpack.c.0.s8 %v409
        %v462 = vunpack.c.0.s8 %v410
        %v463 = vunpack.c.0.s8 %v411
        %v464 = vunpack.c.1.s8 %v408
        %v465 = vunpack.c.1.s8 %v409
        %v466 = vunpack.c.1.s8 %v410
        %v467 = vunpack.c.1.s8 %v411
        %v468 = vunpack.c.2.s8 %v408
        %v469 = vunpack.c.2.s8 %v409
        %v470 = vunpack.c.2.s8 %v410
        %v471 = vunpack.c.2.s8 %v411
        %v472 = vunpack.c.3.s8 %v408
        %v473 = vunpack.c.3.s8 %v409
        %v474 = vunpack.c.3.s8 %v410
        %v475 = vunpack.c.3.s8 %v411
        %v476 = vcvt.s32.f32 %v412
        %v477 = vcvt.s32.f32 %v413
        %v478 = vcvt.s32.f32 %v414
        %v479 = vcvt.s32.f32 %v415
        %v480 = vcvt.s32.f32 %v416
        %v481 = vcvt.s32.f32 %v417
        %v482 = vcvt.s32.f32 %v418
        %v483 = vcvt.s32.f32 %v419
        %v484 = vcvt.s32.f32 %v420
        %v485 = vcvt.s32.f32 %v421
        %v486 = vcvt.s32.f32 %v422
        %v487 = vcvt.s32.f32 %v423
        %v488 = vcvt.s32.f32 %v424
        %v489 = vcvt.s32.f32 %v425
        %v490 = vcvt.s32.f32 %v426
        %v491 = vcvt.s32.f32 %v427
        %v492 = vcvt.s32.f32 %v428
        %v493 = vcvt.s32.f32 %v429
        %v494 = vcvt.s32.f32 %v430
        %v495 = vcvt.s32.f32 %v431
        %v496 = vcvt.s32.f32 %v432
        %v497 = vcvt.s32.f32 %v433
        %v498 = vcvt.s32.f32 %v434
        %v499 = vcvt.s32.f32 %v435
        %v500 = vcvt.s32.f32 %v436
        %v501 = vcvt.s32.f32 %v437
        %v502 = vcvt.s32.f32 %v438
        %v503 = vcvt.s32.f32 %v439
        %v504 = vcvt.s32.f32 %v440
        %v505 = vcvt.s32.f32 %v441
        %v506 = vcvt.s32.f32 %v442
        %v507 = vcvt.s32.f32 %v443
        %v508 = vcvt.s32.f32 %v444
        %v509 = vcvt.s32.f32 %v445
        %v510 = vcvt.s32.f32 %v446
        %v511 = vcvt.s32.f32 %v447
        %v512 = vcvt.s32.f32 %v448
        %v513 = vcvt.s32.f32 %v449
        %v514 = vcvt.s32.f32 %v450
        %v515 = vcvt.s32.f32 %v451
        %v516 = vcvt.s32.f32 %v452
        %v517 = vcvt.s32.f32 %v453
        %v518 = vcvt.s32.f32 %v454
        %v519 = vcvt.s32.f32 %v455
        %v520 = vcvt.s32.f32 %v456
        %v521 = vcvt.s32.f32 %v457
        %v522 = vcvt.s32.f32 %v458
        %v523 = vcvt.s32.f32 %v459
        %v524 = vcvt.s32.f32 %v460
        %v525 = vcvt.s32.f32 %v461
        %v526 = vcvt.s32.f32 %v462
        %v527 = vcvt.s32.f32 %v463
        %v528 = vcvt.s32.f32 %v464
        %v529 = vcvt.s32.f32 %v465
        %v530 = vcvt.s32.f32 %v466
        %v531 = vcvt.s32.f32 %v467
        %v532 = vcvt.s32.f32 %v468
        %v533 = vcvt.s32.f32 %v469
        %v534 = vcvt.s32.f32 %v470
        %v535 = vcvt.s32.f32 %v471
        %v536 = vcvt.s32.f32 %v472
        %v537 = vcvt.s32.f32 %v473
        %v538 = vcvt.s32.f32 %v474
        %v539 = vcvt.s32.f32 %v475
        %v540 = vld [vmem:[%s345] sm:$0xff]
        %v541 = vld [vmem:[%s345 + $0x8] sm:$0xff]
        %v542 = vld [vmem:[%s345 + $0x10] sm:$0xff]
        %v543 = vld [vmem:[%s345 + $0x18] sm:$0xff]
        %v544 = vld [vmem:[%s345 + $0x20] sm:$0xff]
        %v545 = vld [vmem:[%s345 + $0x28] sm:$0xff]
        %v546 = vld [vmem:[%s345 + $0x30] sm:$0xff]
        %v547 = vld [vmem:[%s345 + $0x38] sm:$0xff]
        %v548 = vld [vmem:[%s345 + $0x40] sm:$0xff]
        %v549 = vld [vmem:[%s345 + $0x48] sm:$0xff]
        %v550 = vld [vmem:[%s345 + $0x50] sm:$0xff]
        %v551 = vld [vmem:[%s345 + $0x58] sm:$0xff]
        %v552 = vld [vmem:[%s345 + $0x60] sm:$0xff]
        %v553 = vld [vmem:[%s345 + $0x68] sm:$0xff]
        %v554 = vld [vmem:[%s345 + $0x70] sm:$0xff]
        %v555 = vld [vmem:[%s345 + $0x78] sm:$0xff]
        %v556 = vld [vmem:[%s350] sm:$0xf]
        %558 = vset.pattern.permute.xlu0 0
        %559 = vperm.xlu0 %558, %v540
        %v560 = vpop.permute.xlu0 %559
        %563 = vset.pattern.permute.xlu0 0
        %564 = vperm.xlu0 %563, %v541
        %v565 = vpop.permute.xlu0 %564
        %568 = vset.pattern.permute.xlu0 0
        %569 = vperm.xlu0 %568, %v542
        %v570 = vpop.permute.xlu0 %569
        %573 = vset.pattern.permute.xlu0 0
        %574 = vperm.xlu0 %573, %v543
        %v575 = vpop.permute.xlu0 %574
        %578 = vset.pattern.permute.xlu0 0
        %579 = vperm.xlu0 %578, %v544
        %v580 = vpop.permute.xlu0 %579
        %583 = vset.pattern.permute.xlu0 0
        %584 = vperm.xlu0 %583, %v545
        %v585 = vpop.permute.xlu0 %584
        %588 = vset.pattern.permute.xlu0 0
        %589 = vperm.xlu0 %588, %v546
        %v590 = vpop.permute.xlu0 %589
        %593 = vset.pattern.permute.xlu0 0
        %594 = vperm.xlu0 %593, %v547
        %v595 = vpop.permute.xlu0 %594
        %598 = vset.pattern.permute.xlu0 0
        %599 = vperm.xlu0 %598, %v548
        %v600 = vpop.permute.xlu0 %599
        %603 = vset.pattern.permute.xlu0 0
        %604 = vperm.xlu0 %603, %v549
        %v605 = vpop.permute.xlu0 %604
        %608 = vset.pattern.permute.xlu0 0
        %609 = vperm.xlu0 %608, %v550
        %v610 = vpop.permute.xlu0 %609
        %613 = vset.pattern.permute.xlu0 0
        %614 = vperm.xlu0 %613, %v551
        %v615 = vpop.permute.xlu0 %614
        %618 = vset.pattern.permute.xlu0 0
        %619 = vperm.xlu0 %618, %v552
        %v620 = vpop.permute.xlu0 %619
        %623 = vset.pattern.permute.xlu0 0
        %624 = vperm.xlu0 %623, %v553
        %v625 = vpop.permute.xlu0 %624
        %628 = vset.pattern.permute.xlu0 0
        %629 = vperm.xlu0 %628, %v554
        %v630 = vpop.permute.xlu0 %629
        %633 = vset.pattern.permute.xlu0 0
        %634 = vperm.xlu0 %633, %v555
        %v635 = vpop.permute.xlu0 %634
        %v638 = vlaneseq
        %v639 = vshrl.u32 %v638, 7
        %v640 = vsub.s32 0, %v639
        %v641 = vrot.slane %v556, %v640
        %v642 = vlaneseq
        %v643 = vshrl.u32 %v642, 7
        %v644 = vsub.s32 1, %v643
        %v645 = vrot.slane %v556, %v644
        %v646 = vlaneseq
        %v647 = vshrl.u32 %v646, 7
        %v648 = vsub.s32 2, %v647
        %v649 = vrot.slane %v556, %v648
        %v650 = vlaneseq
        %v651 = vshrl.u32 %v650, 7
        %v652 = vsub.s32 3, %v651
        %v653 = vrot.slane %v556, %v652
        %v658 = vadd.f32 %v560, %v641
        %v659 = vadd.f32 %v560, %v645
        %v660 = vadd.f32 %v560, %v649
        %v661 = vadd.f32 %v560, %v653
        %v662 = vadd.f32 %v565, %v641
        %v663 = vadd.f32 %v565, %v645
        %v664 = vadd.f32 %v565, %v649
        %v665 = vadd.f32 %v565, %v653
        %v666 = vadd.f32 %v570, %v641
        %v667 = vadd.f32 %v570, %v645
        %v668 = vadd.f32 %v570, %v649
        %v669 = vadd.f32 %v570, %v653
        %v670 = vadd.f32 %v575, %v641
        %v671 = vadd.f32 %v575, %v645
        %v672 = vadd.f32 %v575, %v649
        %v673 = vadd.f32 %v575, %v653
        %v674 = vadd.f32 %v580, %v641
        %v675 = vadd.f32 %v580, %v645
        %v676 = vadd.f32 %v580, %v649
        %v677 = vadd.f32 %v580, %v653
        %v678 = vadd.f32 %v585, %v641
        %v679 = vadd.f32 %v585, %v645
        %v680 = vadd.f32 %v585, %v649
        %v681 = vadd.f32 %v585, %v653
        %v682 = vadd.f32 %v590, %v641
        %v683 = vadd.f32 %v590, %v645
        %v684 = vadd.f32 %v590, %v649
        %v685 = vadd.f32 %v590, %v653
        %v686 = vadd.f32 %v595, %v641
        %v687 = vadd.f32 %v595, %v645
        %v688 = vadd.f32 %v595, %v649
        %v689 = vadd.f32 %v595, %v653
        %v690 = vadd.f32 %v600, %v641
        %v691 = vadd.f32 %v600, %v645
        %v692 = vadd.f32 %v600, %v649
        %v693 = vadd.f32 %v600, %v653
        %v694 = vadd.f32 %v605, %v641
        %v695 = vadd.f32 %v605, %v645
        %v696 = vadd.f32 %v605, %v649
        %v697 = vadd.f32 %v605, %v653
        %v698 = vadd.f32 %v610, %v641
        %v699 = vadd.f32 %v610, %v645
        %v700 = vadd.f32 %v610, %v649
        %v701 = vadd.f32 %v610, %v653
        %v702 = vadd.f32 %v615, %v641
        %v703 = vadd.f32 %v615, %v645
        %v704 = vadd.f32 %v615, %v649
        %v705 = vadd.f32 %v615, %v653
        %v706 = vadd.f32 %v620, %v641
        %v707 = vadd.f32 %v620, %v645
        %v708 = vadd.f32 %v620, %v649
        %v709 = vadd.f32 %v620, %v653
        %v710 = vadd.f32 %v625, %v641
        %v711 = vadd.f32 %v625, %v645
        %v712 = vadd.f32 %v625, %v649
        %v713 = vadd.f32 %v625, %v653
        %v714 = vadd.f32 %v630, %v641
        %v715 = vadd.f32 %v630, %v645
        %v716 = vadd.f32 %v630, %v649
        %v717 = vadd.f32 %v630, %v653
        %v718 = vadd.f32 %v635, %v641
        %v719 = vadd.f32 %v635, %v645
        %v720 = vadd.f32 %v635, %v649
        %v721 = vadd.f32 %v635, %v653
        %v722 = vmul.f32 %v658, 0.2
        %v723 = vmul.f32 %v659, 0.2
        %v724 = vmul.f32 %v660, 0.2
        %v725 = vmul.f32 %v661, 0.2
        %v726 = vmul.f32 %v662, 0.2
        %v727 = vmul.f32 %v663, 0.2
        %v728 = vmul.f32 %v664, 0.2
        %v729 = vmul.f32 %v665, 0.2
        %v730 = vmul.f32 %v666, 0.2
        %v731 = vmul.f32 %v667, 0.2
        %v732 = vmul.f32 %v668, 0.2
        %v733 = vmul.f32 %v669, 0.2
        %v734 = vmul.f32 %v670, 0.2
        %v735 = vmul.f32 %v671, 0.2
        %v736 = vmul.f32 %v672, 0.2
        %v737 = vmul.f32 %v673, 0.2
        %v738 = vmul.f32 %v674, 0.2
        %v739 = vmul.f32 %v675, 0.2
        %v740 = vmul.f32 %v676, 0.2
        %v741 = vmul.f32 %v677, 0.2
        %v742 = vmul.f32 %v678, 0.2
        %v743 = vmul.f32 %v679, 0.2
        %v744 = vmul.f32 %v680, 0.2
        %v745 = vmul.f32 %v681, 0.2
        %v746 = vmul.f32 %v682, 0.2
        %v747 = vmul.f32 %v683, 0.2
        %v748 = vmul.f32 %v684, 0.2
        %v749 = vmul.f32 %v685, 0.2
        %v750 = vmul.f32 %v686, 0.2
        %v751 = vmul.f32 %v687, 0.2
        %v752 = vmul.f32 %v688, 0.2
        %v753 = vmul.f32 %v689, 0.2
        %v754 = vmul.f32 %v690, 0.2
        %v755 = vmul.f32 %v691, 0.2
        %v756 = vmul.f32 %v692, 0.2
        %v757 = vmul.f32 %v693, 0.2
        %v758 = vmul.f32 %v694, 0.2
        %v759 = vmul.f32 %v695, 0.2
        %v760 = vmul.f32 %v696, 0.2
        %v761 = vmul.f32 %v697, 0.2
        %v762 = vmul.f32 %v698, 0.2
        %v763 = vmul.f32 %v699, 0.2
        %v764 = vmul.f32 %v700, 0.2
        %v765 = vmul.f32 %v701, 0.2
        %v766 = vmul.f32 %v702, 0.2
        %v767 = vmul.f32 %v703, 0.2
        %v768 = vmul.f32 %v704, 0.2
        %v769 = vmul.f32 %v705, 0.2
        %v770 = vmul.f32 %v706, 0.2
        %v771 = vmul.f32 %v707, 0.2
        %v772 = vmul.f32 %v708, 0.2
        %v773 = vmul.f32 %v709, 0.2
        %v774 = vmul.f32 %v710, 0.2
        %v775 = vmul.f32 %v711, 0.2
        %v776 = vmul.f32 %v712, 0.2
        %v777 = vmul.f32 %v713, 0.2
        %v778 = vmul.f32 %v714, 0.2
        %v779 = vmul.f32 %v715, 0.2
        %v780 = vmul.f32 %v716, 0.2
        %v781 = vmul.f32 %v717, 0.2
        %v782 = vmul.f32 %v718, 0.2
        %v783 = vmul.f32 %v719, 0.2
        %v784 = vmul.f32 %v720, 0.2
        %v785 = vmul.f32 %v721, 0.2
        %v786 = vmax.f32 %v658, %v722
        %v787 = vmax.f32 %v659, %v723
        %v788 = vmax.f32 %v660, %v724
        %v789 = vmax.f32 %v661, %v725
        %v790 = vmax.f32 %v662, %v726
        %v791 = vmax.f32 %v663, %v727
        %v792 = vmax.f32 %v664, %v728
        %v793 = vmax.f32 %v665, %v729
        %v794 = vmax.f32 %v666, %v730
        %v795 = vmax.f32 %v667, %v731
        %v796 = vmax.f32 %v668, %v732
        %v797 = vmax.f32 %v669, %v733
        %v798 = vmax.f32 %v670, %v734
        %v799 = vmax.f32 %v671, %v735
        %v800 = vmax.f32 %v672, %v736
        %v801 = vmax.f32 %v673, %v737
        %v802 = vmax.f32 %v674, %v738
        %v803 = vmax.f32 %v675, %v739
        %v804 = vmax.f32 %v676, %v740
        %v805 = vmax.f32 %v677, %v741
        %v806 = vmax.f32 %v678, %v742
        %v807 = vmax.f32 %v679, %v743
        %v808 = vmax.f32 %v680, %v744
        %v809 = vmax.f32 %v681, %v745
        %v810 = vmax.f32 %v682, %v746
        %v811 = vmax.f32 %v683, %v747
        %v812 = vmax.f32 %v684, %v748
        %v813 = vmax.f32 %v685, %v749
        %v814 = vmax.f32 %v686, %v750
        %v815 = vmax.f32 %v687, %v751
        %v816 = vmax.f32 %v688, %v752
        %v817 = vmax.f32 %v689, %v753
        %v818 = vmax.f32 %v690, %v754
        %v819 = vmax.f32 %v691, %v755
        %v820 = vmax.f32 %v692, %v756
        %v821 = vmax.f32 %v693, %v757
        %v822 = vmax.f32 %v694, %v758
        %v823 = vmax.f32 %v695, %v759
        %v824 = vmax.f32 %v696, %v760
        %v825 = vmax.f32 %v697, %v761
        %v826 = vmax.f32 %v698, %v762
        %v827 = vmax.f32 %v699, %v763
        %v828 = vmax.f32 %v700, %v764
        %v829 = vmax.f32 %v701, %v765
        %v830 = vmax.f32 %v702, %v766
        %v831 = vmax.f32 %v703, %v767
        %v832 = vmax.f32 %v704, %v768
        %v833 = vmax.f32 %v705, %v769
        %v834 = vmax.f32 %v706, %v770
        %v835 = vmax.f32 %v707, %v771
        %v836 = vmax.f32 %v708, %v772
        %v837 = vmax.f32 %v709, %v773
        %v838 = vmax.f32 %v710, %v774
        %v839 = vmax.f32 %v711, %v775
        %v840 = vmax.f32 %v712, %v776
        %v841 = vmax.f32 %v713, %v777
        %v842 = vmax.f32 %v714, %v778
        %v843 = vmax.f32 %v715, %v779
        %v844 = vmax.f32 %v716, %v780
        %v845 = vmax.f32 %v717, %v781
        %v846 = vmax.f32 %v718, %v782
        %v847 = vmax.f32 %v719, %v783
        %v848 = vmax.f32 %v720, %v784
        %v849 = vmax.f32 %v721, %v785
        %vm850 = vcmp.gt.f32.partialorder %v476, 0.0
        %vm851 = vcmp.gt.f32.partialorder %v477, 0.0
        %vm852 = vcmp.gt.f32.partialorder %v478, 0.0
        %vm853 = vcmp.gt.f32.partialorder %v479, 0.0
        %vm854 = vcmp.gt.f32.partialorder %v480, 0.0
        %vm855 = vcmp.gt.f32.partialorder %v481, 0.0
        %vm856 = vcmp.gt.f32.partialorder %v482, 0.0
        %vm857 = vcmp.gt.f32.partialorder %v483, 0.0
        %vm858 = vcmp.gt.f32.partialorder %v484, 0.0
        %vm859 = vcmp.gt.f32.partialorder %v485, 0.0
        %vm860 = vcmp.gt.f32.partialorder %v486, 0.0
        %vm861 = vcmp.gt.f32.partialorder %v487, 0.0
        %vm862 = vcmp.gt.f32.partialorder %v488, 0.0
        %vm863 = vcmp.gt.f32.partialorder %v489, 0.0
        %vm864 = vcmp.gt.f32.partialorder %v490, 0.0
        %vm865 = vcmp.gt.f32.partialorder %v491, 0.0
        %vm866 = vcmp.gt.f32.partialorder %v492, 0.0
        %vm867 = vcmp.gt.f32.partialorder %v493, 0.0
        %vm868 = vcmp.gt.f32.partialorder %v494, 0.0
        %vm869 = vcmp.gt.f32.partialorder %v495, 0.0
        %vm870 = vcmp.gt.f32.partialorder %v496, 0.0
        %vm871 = vcmp.gt.f32.partialorder %v497, 0.0
        %vm872 = vcmp.gt.f32.partialorder %v498, 0.0
        %vm873 = vcmp.gt.f32.partialorder %v499, 0.0
        %vm874 = vcmp.gt.f32.partialorder %v500, 0.0
        %vm875 = vcmp.gt.f32.partialorder %v501, 0.0
        %vm876 = vcmp.gt.f32.partialorder %v502, 0.0
        %vm877 = vcmp.gt.f32.partialorder %v503, 0.0
        %vm878 = vcmp.gt.f32.partialorder %v504, 0.0
        %vm879 = vcmp.gt.f32.partialorder %v505, 0.0
        %vm880 = vcmp.gt.f32.partialorder %v506, 0.0
        %vm881 = vcmp.gt.f32.partialorder %v507, 0.0
        %vm882 = vcmp.gt.f32.partialorder %v508, 0.0
        %vm883 = vcmp.gt.f32.partialorder %v509, 0.0
        %vm884 = vcmp.gt.f32.partialorder %v510, 0.0
        %vm885 = vcmp.gt.f32.partialorder %v511, 0.0
        %vm886 = vcmp.gt.f32.partialorder %v512, 0.0
        %vm887 = vcmp.gt.f32.partialorder %v513, 0.0
        %vm888 = vcmp.gt.f32.partialorder %v514, 0.0
        %vm889 = vcmp.gt.f32.partialorder %v515, 0.0
        %vm890 = vcmp.gt.f32.partialorder %v516, 0.0
        %vm891 = vcmp.gt.f32.partialorder %v517, 0.0
        %vm892 = vcmp.gt.f32.partialorder %v518, 0.0
        %vm893 = vcmp.gt.f32.partialorder %v519, 0.0
        %vm894 = vcmp.gt.f32.partialorder %v520, 0.0
        %vm895 = vcmp.gt.f32.partialorder %v521, 0.0
        %vm896 = vcmp.gt.f32.partialorder %v522, 0.0
        %vm897 = vcmp.gt.f32.partialorder %v523, 0.0
        %vm898 = vcmp.gt.f32.partialorder %v524, 0.0
        %vm899 = vcmp.gt.f32.partialorder %v525, 0.0
        %vm900 = vcmp.gt.f32.partialorder %v526, 0.0
        %vm901 = vcmp.gt.f32.partialorder %v527, 0.0
        %vm902 = vcmp.gt.f32.partialorder %v528, 0.0
        %vm903 = vcmp.gt.f32.partialorder %v529, 0.0
        %vm904 = vcmp.gt.f32.partialorder %v530, 0.0
        %vm905 = vcmp.gt.f32.partialorder %v531, 0.0
        %vm906 = vcmp.gt.f32.partialorder %v532, 0.0
        %vm907 = vcmp.gt.f32.partialorder %v533, 0.0
        %vm908 = vcmp.gt.f32.partialorder %v534, 0.0
        %vm909 = vcmp.gt.f32.partialorder %v535, 0.0
        %vm910 = vcmp.gt.f32.partialorder %v536, 0.0
        %vm911 = vcmp.gt.f32.partialorder %v537, 0.0
        %vm912 = vcmp.gt.f32.partialorder %v538, 0.0
        %vm913 = vcmp.gt.f32.partialorder %v539, 0.0
        %v914 = vsel %vm850, %v786, -1e+30
        %v915 = vsel %vm851, %v787, -1e+30
        %v916 = vsel %vm852, %v788, -1e+30
        %v917 = vsel %vm853, %v789, -1e+30
        %v918 = vsel %vm854, %v790, -1e+30
        %v919 = vsel %vm855, %v791, -1e+30
        %v920 = vsel %vm856, %v792, -1e+30
        %v921 = vsel %vm857, %v793, -1e+30
        %v922 = vsel %vm858, %v794, -1e+30
        %v923 = vsel %vm859, %v795, -1e+30
        %v924 = vsel %vm860, %v796, -1e+30
        %v925 = vsel %vm861, %v797, -1e+30
        %v926 = vsel %vm862, %v798, -1e+30
        %v927 = vsel %vm863, %v799, -1e+30
        %v928 = vsel %vm864, %v800, -1e+30
        %v929 = vsel %vm865, %v801, -1e+30
        %v930 = vsel %vm866, %v802, -1e+30
        %v931 = vsel %vm867, %v803, -1e+30
        %v932 = vsel %vm868, %v804, -1e+30
        %v933 = vsel %vm869, %v805, -1e+30
        %v934 = vsel %vm870, %v806, -1e+30
        %v935 = vsel %vm871, %v807, -1e+30
        %v936 = vsel %vm872, %v808, -1e+30
        %v937 = vsel %vm873, %v809, -1e+30
        %v938 = vsel %vm874, %v810, -1e+30
        %v939 = vsel %vm875, %v811, -1e+30
        %v940 = vsel %vm876, %v812, -1e+30
        %v941 = vsel %vm877, %v813, -1e+30
        %v942 = vsel %vm878, %v814, -1e+30
        %v943 = vsel %vm879, %v815, -1e+30
        %v944 = vsel %vm880, %v816, -1e+30
        %v945 = vsel %vm881, %v817, -1e+30
        %v946 = vsel %vm882, %v818, -1e+30
        %v947 = vsel %vm883, %v819, -1e+30
        %v948 = vsel %vm884, %v820, -1e+30
        %v949 = vsel %vm885, %v821, -1e+30
        %v950 = vsel %vm886, %v822, -1e+30
        %v951 = vsel %vm887, %v823, -1e+30
        %v952 = vsel %vm888, %v824, -1e+30
        %v953 = vsel %vm889, %v825, -1e+30
        %v954 = vsel %vm890, %v826, -1e+30
        %v955 = vsel %vm891, %v827, -1e+30
        %v956 = vsel %vm892, %v828, -1e+30
        %v957 = vsel %vm893, %v829, -1e+30
        %v958 = vsel %vm894, %v830, -1e+30
        %v959 = vsel %vm895, %v831, -1e+30
        %v960 = vsel %vm896, %v832, -1e+30
        %v961 = vsel %vm897, %v833, -1e+30
        %v962 = vsel %vm898, %v834, -1e+30
        %v963 = vsel %vm899, %v835, -1e+30
        %v964 = vsel %vm900, %v836, -1e+30
        %v965 = vsel %vm901, %v837, -1e+30
        %v966 = vsel %vm902, %v838, -1e+30
        %v967 = vsel %vm903, %v839, -1e+30
        %v968 = vsel %vm904, %v840, -1e+30
        %v969 = vsel %vm905, %v841, -1e+30
        %v970 = vsel %vm906, %v842, -1e+30
        %v971 = vsel %vm907, %v843, -1e+30
        %v972 = vsel %vm908, %v844, -1e+30
        %v973 = vsel %vm909, %v845, -1e+30
        %v974 = vsel %vm910, %v846, -1e+30
        %v975 = vsel %vm911, %v847, -1e+30
        %v976 = vsel %vm912, %v848, -1e+30
        %v977 = vsel %vm913, %v849, -1e+30
        %v978 = vld [vmem:[#allocation2] sm:$0xff]
        %v979 = vld [vmem:[#allocation2 + $0x8] sm:$0xff]
        %v980 = vld [vmem:[#allocation2 + $0x10] sm:$0xff]
        %v981 = vld [vmem:[#allocation2 + $0x18] sm:$0xff]
        %v982 = vld [vmem:[#allocation2 + $0x20] sm:$0xff]
        %v983 = vld [vmem:[#allocation2 + $0x28] sm:$0xff]
        %v984 = vld [vmem:[#allocation2 + $0x30] sm:$0xff]
        %v985 = vld [vmem:[#allocation2 + $0x38] sm:$0xff]
        %v986 = vld [vmem:[#allocation2 + $0x40] sm:$0xff]
        %v987 = vld [vmem:[#allocation2 + $0x48] sm:$0xff]
        %v988 = vld [vmem:[#allocation2 + $0x50] sm:$0xff]
        %v989 = vld [vmem:[#allocation2 + $0x58] sm:$0xff]
        %v990 = vld [vmem:[#allocation2 + $0x60] sm:$0xff]
        %v991 = vld [vmem:[#allocation2 + $0x68] sm:$0xff]
        %v992 = vld [vmem:[#allocation2 + $0x70] sm:$0xff]
        %v993 = vld [vmem:[#allocation2 + $0x78] sm:$0xff]
        %v994 = vmax.f32 %v914, %v915
        %v995 = vmax.f32 %v994, %v916
        %v996 = vmax.f32 %v995, %v917
        %997 = vmax.xlane.f32.xlu0 %v996
        %v998 = vpop.xlane.xlu0 %997
        %v999 = vmax.f32 %v918, %v919
        %v1000 = vmax.f32 %v999, %v920
        %v1001 = vmax.f32 %v1000, %v921
        %1002 = vmax.xlane.f32.xlu0 %v1001
        %v1003 = vpop.xlane.xlu0 %1002
        %v1004 = vmax.f32 %v922, %v923
        %v1005 = vmax.f32 %v1004, %v924
        %v1006 = vmax.f32 %v1005, %v925
        %1007 = vmax.xlane.f32.xlu0 %v1006
        %v1008 = vpop.xlane.xlu0 %1007
        %v1009 = vmax.f32 %v926, %v927
        %v1010 = vmax.f32 %v1009, %v928
        %v1011 = vmax.f32 %v1010, %v929
        %1012 = vmax.xlane.f32.xlu0 %v1011
        %v1013 = vpop.xlane.xlu0 %1012
        %v1014 = vmax.f32 %v930, %v931
        %v1015 = vmax.f32 %v1014, %v932
        %v1016 = vmax.f32 %v1015, %v933
        %1017 = vmax.xlane.f32.xlu0 %v1016
        %v1018 = vpop.xlane.xlu0 %1017
        %v1019 = vmax.f32 %v934, %v935
        %v1020 = vmax.f32 %v1019, %v936
        %v1021 = vmax.f32 %v1020, %v937
        %1022 = vmax.xlane.f32.xlu0 %v1021
        %v1023 = vpop.xlane.xlu0 %1022
        %v1024 = vmax.f32 %v938, %v939
        %v1025 = vmax.f32 %v1024, %v940
        %v1026 = vmax.f32 %v1025, %v941
        %1027 = vmax.xlane.f32.xlu0 %v1026
        %v1028 = vpop.xlane.xlu0 %1027
        %v1029 = vmax.f32 %v942, %v943
        %v1030 = vmax.f32 %v1029, %v944
        %v1031 = vmax.f32 %v1030, %v945
        %1032 = vmax.xlane.f32.xlu0 %v1031
        %v1033 = vpop.xlane.xlu0 %1032
        %v1034 = vmax.f32 %v946, %v947
        %v1035 = vmax.f32 %v1034, %v948
        %v1036 = vmax.f32 %v1035, %v949
        %1037 = vmax.xlane.f32.xlu0 %v1036
        %v1038 = vpop.xlane.xlu0 %1037
        %v1039 = vmax.f32 %v950, %v951
        %v1040 = vmax.f32 %v1039, %v952
        %v1041 = vmax.f32 %v1040, %v953
        %1042 = vmax.xlane.f32.xlu0 %v1041
        %v1043 = vpop.xlane.xlu0 %1042
        %v1044 = vmax.f32 %v954, %v955
        %v1045 = vmax.f32 %v1044, %v956
        %v1046 = vmax.f32 %v1045, %v957
        %1047 = vmax.xlane.f32.xlu0 %v1046
        %v1048 = vpop.xlane.xlu0 %1047
        %v1049 = vmax.f32 %v958, %v959
        %v1050 = vmax.f32 %v1049, %v960
        %v1051 = vmax.f32 %v1050, %v961
        %1052 = vmax.xlane.f32.xlu0 %v1051
        %v1053 = vpop.xlane.xlu0 %1052
        %v1054 = vmax.f32 %v962, %v963
        %v1055 = vmax.f32 %v1054, %v964
        %v1056 = vmax.f32 %v1055, %v965
        %1057 = vmax.xlane.f32.xlu0 %v1056
        %v1058 = vpop.xlane.xlu0 %1057
        %v1059 = vmax.f32 %v966, %v967
        %v1060 = vmax.f32 %v1059, %v968
        %v1061 = vmax.f32 %v1060, %v969
        %1062 = vmax.xlane.f32.xlu0 %v1061
        %v1063 = vpop.xlane.xlu0 %1062
        %v1064 = vmax.f32 %v970, %v971
        %v1065 = vmax.f32 %v1064, %v972
        %v1066 = vmax.f32 %v1065, %v973
        %1067 = vmax.xlane.f32.xlu0 %v1066
        %v1068 = vpop.xlane.xlu0 %1067
        %v1069 = vmax.f32 %v974, %v975
        %v1070 = vmax.f32 %v1069, %v976
        %v1071 = vmax.f32 %v1070, %v977
        %1072 = vmax.xlane.f32.xlu0 %v1071
        %v1073 = vpop.xlane.xlu0 %1072
        %v1074 = vmax.f32 %v978, %v998
        %v1075 = vmax.f32 %v979, %v1003
        %v1076 = vmax.f32 %v980, %v1008
        %v1077 = vmax.f32 %v981, %v1013
        %v1078 = vmax.f32 %v982, %v1018
        %v1079 = vmax.f32 %v983, %v1023
        %v1080 = vmax.f32 %v984, %v1028
        %v1081 = vmax.f32 %v985, %v1033
        %v1082 = vmax.f32 %v986, %v1038
        %v1083 = vmax.f32 %v987, %v1043
        %v1084 = vmax.f32 %v988, %v1048
        %v1085 = vmax.f32 %v989, %v1053
        %v1086 = vmax.f32 %v990, %v1058
        %v1087 = vmax.f32 %v991, %v1063
        %v1088 = vmax.f32 %v992, %v1068
        %v1089 = vmax.f32 %v993, %v1073
        %vm1090 = vcmp.le.f32.partialorder %v1074, -1e+29
        %vm1091 = vcmp.le.f32.partialorder %v1075, -1e+29
        %vm1092 = vcmp.le.f32.partialorder %v1076, -1e+29
        %vm1093 = vcmp.le.f32.partialorder %v1077, -1e+29
        %vm1094 = vcmp.le.f32.partialorder %v1078, -1e+29
        %vm1095 = vcmp.le.f32.partialorder %v1079, -1e+29
        %vm1096 = vcmp.le.f32.partialorder %v1080, -1e+29
        %vm1097 = vcmp.le.f32.partialorder %v1081, -1e+29
        %vm1098 = vcmp.le.f32.partialorder %v1082, -1e+29
        %vm1099 = vcmp.le.f32.partialorder %v1083, -1e+29
        %vm1100 = vcmp.le.f32.partialorder %v1084, -1e+29
        %vm1101 = vcmp.le.f32.partialorder %v1085, -1e+29
        %vm1102 = vcmp.le.f32.partialorder %v1086, -1e+29
        %vm1103 = vcmp.le.f32.partialorder %v1087, -1e+29
        %vm1104 = vcmp.le.f32.partialorder %v1088, -1e+29
        %vm1105 = vcmp.le.f32.partialorder %v1089, -1e+29
        %v1106 = vsel %vm1090, 0.0, %v1074
        %v1107 = vsel %vm1091, 0.0, %v1075
        %v1108 = vsel %vm1092, 0.0, %v1076
        %v1109 = vsel %vm1093, 0.0, %v1077
        %v1110 = vsel %vm1094, 0.0, %v1078
        %v1111 = vsel %vm1095, 0.0, %v1079
        %v1112 = vsel %vm1096, 0.0, %v1080
        %v1113 = vsel %vm1097, 0.0, %v1081
        %v1114 = vsel %vm1098, 0.0, %v1082
        %v1115 = vsel %vm1099, 0.0, %v1083
        %v1116 = vsel %vm1100, 0.0, %v1084
        %v1117 = vsel %vm1101, 0.0, %v1085
        %v1118 = vsel %vm1102, 0.0, %v1086
        %v1119 = vsel %vm1103, 0.0, %v1087
        %v1120 = vsel %vm1104, 0.0, %v1088
        %v1121 = vsel %vm1105, 0.0, %v1089
        %1123 = vset.pattern.permute.xlu0 0
        %1124 = vperm.xlu0 %1123, %v1106
        %v1125 = vpop.permute.xlu0 %1124
        %1128 = vset.pattern.permute.xlu0 0
        %1129 = vperm.xlu0 %1128, %v1107
        %v1130 = vpop.permute.xlu0 %1129
        %1133 = vset.pattern.permute.xlu0 0
        %1134 = vperm.xlu0 %1133, %v1108
        %v1135 = vpop.permute.xlu0 %1134
        %1138 = vset.pattern.permute.xlu0 0
        %1139 = vperm.xlu0 %1138, %v1109
        %v1140 = vpop.permute.xlu0 %1139
        %1143 = vset.pattern.permute.xlu0 0
        %1144 = vperm.xlu0 %1143, %v1110
        %v1145 = vpop.permute.xlu0 %1144
        %1148 = vset.pattern.permute.xlu0 0
        %1149 = vperm.xlu0 %1148, %v1111
        %v1150 = vpop.permute.xlu0 %1149
        %1153 = vset.pattern.permute.xlu0 0
        %1154 = vperm.xlu0 %1153, %v1112
        %v1155 = vpop.permute.xlu0 %1154
        %1158 = vset.pattern.permute.xlu0 0
        %1159 = vperm.xlu0 %1158, %v1113
        %v1160 = vpop.permute.xlu0 %1159
        %1163 = vset.pattern.permute.xlu0 0
        %1164 = vperm.xlu0 %1163, %v1114
        %v1165 = vpop.permute.xlu0 %1164
        %1168 = vset.pattern.permute.xlu0 0
        %1169 = vperm.xlu0 %1168, %v1115
        %v1170 = vpop.permute.xlu0 %1169
        %1173 = vset.pattern.permute.xlu0 0
        %1174 = vperm.xlu0 %1173, %v1116
        %v1175 = vpop.permute.xlu0 %1174
        %1178 = vset.pattern.permute.xlu0 0
        %1179 = vperm.xlu0 %1178, %v1117
        %v1180 = vpop.permute.xlu0 %1179
        %1183 = vset.pattern.permute.xlu0 0
        %1184 = vperm.xlu0 %1183, %v1118
        %v1185 = vpop.permute.xlu0 %1184
        %1188 = vset.pattern.permute.xlu0 0
        %1189 = vperm.xlu0 %1188, %v1119
        %v1190 = vpop.permute.xlu0 %1189
        %1193 = vset.pattern.permute.xlu0 0
        %1194 = vperm.xlu0 %1193, %v1120
        %v1195 = vpop.permute.xlu0 %1194
        %1198 = vset.pattern.permute.xlu0 0
        %1199 = vperm.xlu0 %1198, %v1121
        %v1200 = vpop.permute.xlu0 %1199
        %v1202 = vsub.f32 %v914, %v1125
        %v1203 = vsub.f32 %v915, %v1125
        %v1204 = vsub.f32 %v916, %v1125
        %v1205 = vsub.f32 %v917, %v1125
        %v1206 = vsub.f32 %v918, %v1130
        %v1207 = vsub.f32 %v919, %v1130
        %v1208 = vsub.f32 %v920, %v1130
        %v1209 = vsub.f32 %v921, %v1130
        %v1210 = vsub.f32 %v922, %v1135
        %v1211 = vsub.f32 %v923, %v1135
        %v1212 = vsub.f32 %v924, %v1135
        %v1213 = vsub.f32 %v925, %v1135
        %v1214 = vsub.f32 %v926, %v1140
        %v1215 = vsub.f32 %v927, %v1140
        %v1216 = vsub.f32 %v928, %v1140
        %v1217 = vsub.f32 %v929, %v1140
        %v1218 = vsub.f32 %v930, %v1145
        %v1219 = vsub.f32 %v931, %v1145
        %v1220 = vsub.f32 %v932, %v1145
        %v1221 = vsub.f32 %v933, %v1145
        %v1222 = vsub.f32 %v934, %v1150
        %v1223 = vsub.f32 %v935, %v1150
        %v1224 = vsub.f32 %v936, %v1150
        %v1225 = vsub.f32 %v937, %v1150
        %v1226 = vsub.f32 %v938, %v1155
        %v1227 = vsub.f32 %v939, %v1155
        %v1228 = vsub.f32 %v940, %v1155
        %v1229 = vsub.f32 %v941, %v1155
        %v1230 = vsub.f32 %v942, %v1160
        %v1231 = vsub.f32 %v943, %v1160
        %v1232 = vsub.f32 %v944, %v1160
        %v1233 = vsub.f32 %v945, %v1160
        %v1234 = vsub.f32 %v946, %v1165
        %v1235 = vsub.f32 %v947, %v1165
        %v1236 = vsub.f32 %v948, %v1165
        %v1237 = vsub.f32 %v949, %v1165
        %v1238 = vsub.f32 %v950, %v1170
        %v1239 = vsub.f32 %v951, %v1170
        %v1240 = vsub.f32 %v952, %v1170
        %v1241 = vsub.f32 %v953, %v1170
        %v1242 = vsub.f32 %v954, %v1175
        %v1243 = vsub.f32 %v955, %v1175
        %v1244 = vsub.f32 %v956, %v1175
        %v1245 = vsub.f32 %v957, %v1175
        %v1246 = vsub.f32 %v958, %v1180
        %v1247 = vsub.f32 %v959, %v1180
        %v1248 = vsub.f32 %v960, %v1180
        %v1249 = vsub.f32 %v961, %v1180
        %v1250 = vsub.f32 %v962, %v1185
        %v1251 = vsub.f32 %v963, %v1185
        %v1252 = vsub.f32 %v964, %v1185
        %v1253 = vsub.f32 %v965, %v1185
        %v1254 = vsub.f32 %v966, %v1190
        %v1255 = vsub.f32 %v967, %v1190
        %v1256 = vsub.f32 %v968, %v1190
        %v1257 = vsub.f32 %v969, %v1190
        %v1258 = vsub.f32 %v970, %v1195
        %v1259 = vsub.f32 %v971, %v1195
        %v1260 = vsub.f32 %v972, %v1195
        %v1261 = vsub.f32 %v973, %v1195
        %v1262 = vsub.f32 %v974, %v1200
        %v1263 = vsub.f32 %v975, %v1200
        %v1264 = vsub.f32 %v976, %v1200
        %v1265 = vsub.f32 %v977, %v1200
        %v1266 = vmul.f32 %v1202, 1.442695
        %v1267 = vpow.pop %v1266
        %v1268 = vmul.f32 %v1203, 1.442695
        %v1269 = vpow.pop %v1268
        %v1270 = vmul.f32 %v1204, 1.442695
        %v1271 = vpow.pop %v1270
        %v1272 = vmul.f32 %v1205, 1.442695
        %v1273 = vpow.pop %v1272
        %v1274 = vmul.f32 %v1206, 1.442695
        %v1275 = vpow.pop %v1274
        %v1276 = vmul.f32 %v1207, 1.442695
        %v1277 = vpow.pop %v1276
        %v1278 = vmul.f32 %v1208, 1.442695
        %v1279 = vpow.pop %v1278
        %v1280 = vmul.f32 %v1209, 1.442695
        %v1281 = vpow.pop %v1280
        %v1282 = vmul.f32 %v1210, 1.442695
        %v1283 = vpow.pop %v1282
        %v1284 = vmul.f32 %v1211, 1.442695
        %v1285 = vpow.pop %v1284
        %v1286 = vmul.f32 %v1212, 1.442695
        %v1287 = vpow.pop %v1286
        %v1288 = vmul.f32 %v1213, 1.442695
        %v1289 = vpow.pop %v1288
        %v1290 = vmul.f32 %v1214, 1.442695
        %v1291 = vpow.pop %v1290
        %v1292 = vmul.f32 %v1215, 1.442695
        %v1293 = vpow.pop %v1292
        %v1294 = vmul.f32 %v1216, 1.442695
        %v1295 = vpow.pop %v1294
        %v1296 = vmul.f32 %v1217, 1.442695
        %v1297 = vpow.pop %v1296
        %v1298 = vmul.f32 %v1218, 1.442695
        %v1299 = vpow.pop %v1298
        %v1300 = vmul.f32 %v1219, 1.442695
        %v1301 = vpow.pop %v1300
        %v1302 = vmul.f32 %v1220, 1.442695
        %v1303 = vpow.pop %v1302
        %v1304 = vmul.f32 %v1221, 1.442695
        %v1305 = vpow.pop %v1304
        %v1306 = vmul.f32 %v1222, 1.442695
        %v1307 = vpow.pop %v1306
        %v1308 = vmul.f32 %v1223, 1.442695
        %v1309 = vpow.pop %v1308
        %v1310 = vmul.f32 %v1224, 1.442695
        %v1311 = vpow.pop %v1310
        %v1312 = vmul.f32 %v1225, 1.442695
        %v1313 = vpow.pop %v1312
        %v1314 = vmul.f32 %v1226, 1.442695
        %v1315 = vpow.pop %v1314
        %v1316 = vmul.f32 %v1227, 1.442695
        %v1317 = vpow.pop %v1316
        %v1318 = vmul.f32 %v1228, 1.442695
        %v1319 = vpow.pop %v1318
        %v1320 = vmul.f32 %v1229, 1.442695
        %v1321 = vpow.pop %v1320
        %v1322 = vmul.f32 %v1230, 1.442695
        %v1323 = vpow.pop %v1322
        %v1324 = vmul.f32 %v1231, 1.442695
        %v1325 = vpow.pop %v1324
        %v1326 = vmul.f32 %v1232, 1.442695
        %v1327 = vpow.pop %v1326
        %v1328 = vmul.f32 %v1233, 1.442695
        %v1329 = vpow.pop %v1328
        %v1330 = vmul.f32 %v1234, 1.442695
        %v1331 = vpow.pop %v1330
        %v1332 = vmul.f32 %v1235, 1.442695
        %v1333 = vpow.pop %v1332
        %v1334 = vmul.f32 %v1236, 1.442695
        %v1335 = vpow.pop %v1334
        %v1336 = vmul.f32 %v1237, 1.442695
        %v1337 = vpow.pop %v1336
        %v1338 = vmul.f32 %v1238, 1.442695
        %v1339 = vpow.pop %v1338
        %v1340 = vmul.f32 %v1239, 1.442695
        %v1341 = vpow.pop %v1340
        %v1342 = vmul.f32 %v1240, 1.442695
        %v1343 = vpow.pop %v1342
        %v1344 = vmul.f32 %v1241, 1.442695
        %v1345 = vpow.pop %v1344
        %v1346 = vmul.f32 %v1242, 1.442695
        %v1347 = vpow.pop %v1346
        %v1348 = vmul.f32 %v1243, 1.442695
        %v1349 = vpow.pop %v1348
        %v1350 = vmul.f32 %v1244, 1.442695
        %v1351 = vpow.pop %v1350
        %v1352 = vmul.f32 %v1245, 1.442695
        %v1353 = vpow.pop %v1352
        %v1354 = vmul.f32 %v1246, 1.442695
        %v1355 = vpow.pop %v1354
        %v1356 = vmul.f32 %v1247, 1.442695
        %v1357 = vpow.pop %v1356
        %v1358 = vmul.f32 %v1248, 1.442695
        %v1359 = vpow.pop %v1358
        %v1360 = vmul.f32 %v1249, 1.442695
        %v1361 = vpow.pop %v1360
        %v1362 = vmul.f32 %v1250, 1.442695
        %v1363 = vpow.pop %v1362
        %v1364 = vmul.f32 %v1251, 1.442695
        %v1365 = vpow.pop %v1364
        %v1366 = vmul.f32 %v1252, 1.442695
        %v1367 = vpow.pop %v1366
        %v1368 = vmul.f32 %v1253, 1.442695
        %v1369 = vpow.pop %v1368
        %v1370 = vmul.f32 %v1254, 1.442695
        %v1371 = vpow.pop %v1370
        %v1372 = vmul.f32 %v1255, 1.442695
        %v1373 = vpow.pop %v1372
        %v1374 = vmul.f32 %v1256, 1.442695
        %v1375 = vpow.pop %v1374
        %v1376 = vmul.f32 %v1257, 1.442695
        %v1377 = vpow.pop %v1376
        %v1378 = vmul.f32 %v1258, 1.442695
        %v1379 = vpow.pop %v1378
        %v1380 = vmul.f32 %v1259, 1.442695
        %v1381 = vpow.pop %v1380
        %v1382 = vmul.f32 %v1260, 1.442695
        %v1383 = vpow.pop %v1382
        %v1384 = vmul.f32 %v1261, 1.442695
        %v1385 = vpow.pop %v1384
        %v1386 = vmul.f32 %v1262, 1.442695
        %v1387 = vpow.pop %v1386
        %v1388 = vmul.f32 %v1263, 1.442695
        %v1389 = vpow.pop %v1388
        %v1390 = vmul.f32 %v1264, 1.442695
        %v1391 = vpow.pop %v1390
        %v1392 = vmul.f32 %v1265, 1.442695
        %v1393 = vpow.pop %v1392
        %v1394 = vsub.f32 %v978, %v1074
        %v1395 = vsub.f32 %v979, %v1075
        %v1396 = vsub.f32 %v980, %v1076
        %v1397 = vsub.f32 %v981, %v1077
        %v1398 = vsub.f32 %v982, %v1078
        %v1399 = vsub.f32 %v983, %v1079
        %v1400 = vsub.f32 %v984, %v1080
        %v1401 = vsub.f32 %v985, %v1081
        %v1402 = vsub.f32 %v986, %v1082
        %v1403 = vsub.f32 %v987, %v1083
        %v1404 = vsub.f32 %v988, %v1084
        %v1405 = vsub.f32 %v989, %v1085
        %v1406 = vsub.f32 %v990, %v1086
        %v1407 = vsub.f32 %v991, %v1087
        %v1408 = vsub.f32 %v992, %v1088
        %v1409 = vsub.f32 %v993, %v1089
        %v1410 = vmul.f32 %v1394, 1.442695
        %v1411 = vpow.pop %v1410
        %v1412 = vmul.f32 %v1395, 1.442695
        %v1413 = vpow.pop %v1412
        %v1414 = vmul.f32 %v1396, 1.442695
        %v1415 = vpow.pop %v1414
        %v1416 = vmul.f32 %v1397, 1.442695
        %v1417 = vpow.pop %v1416
        %v1418 = vmul.f32 %v1398, 1.442695
        %v1419 = vpow.pop %v1418
        %v1420 = vmul.f32 %v1399, 1.442695
        %v1421 = vpow.pop %v1420
        %v1422 = vmul.f32 %v1400, 1.442695
        %v1423 = vpow.pop %v1422
        %v1424 = vmul.f32 %v1401, 1.442695
        %v1425 = vpow.pop %v1424
        %v1426 = vmul.f32 %v1402, 1.442695
        %v1427 = vpow.pop %v1426
        %v1428 = vmul.f32 %v1403, 1.442695
        %v1429 = vpow.pop %v1428
        %v1430 = vmul.f32 %v1404, 1.442695
        %v1431 = vpow.pop %v1430
        %v1432 = vmul.f32 %v1405, 1.442695
        %v1433 = vpow.pop %v1432
        %v1434 = vmul.f32 %v1406, 1.442695
        %v1435 = vpow.pop %v1434
        %v1436 = vmul.f32 %v1407, 1.442695
        %v1437 = vpow.pop %v1436
        %v1438 = vmul.f32 %v1408, 1.442695
        %v1439 = vpow.pop %v1438
        %v1440 = vmul.f32 %v1409, 1.442695
        %v1441 = vpow.pop %v1440
        %v1442 = vld [vmem:[#allocation3] sm:$0xff]
        %v1443 = vld [vmem:[#allocation3 + $0x8] sm:$0xff]
        %v1444 = vld [vmem:[#allocation3 + $0x10] sm:$0xff]
        %v1445 = vld [vmem:[#allocation3 + $0x18] sm:$0xff]
        %v1446 = vld [vmem:[#allocation3 + $0x20] sm:$0xff]
        %v1447 = vld [vmem:[#allocation3 + $0x28] sm:$0xff]
        %v1448 = vld [vmem:[#allocation3 + $0x30] sm:$0xff]
        %v1449 = vld [vmem:[#allocation3 + $0x38] sm:$0xff]
        %v1450 = vld [vmem:[#allocation3 + $0x40] sm:$0xff]
        %v1451 = vld [vmem:[#allocation3 + $0x48] sm:$0xff]
        %v1452 = vld [vmem:[#allocation3 + $0x50] sm:$0xff]
        %v1453 = vld [vmem:[#allocation3 + $0x58] sm:$0xff]
        %v1454 = vld [vmem:[#allocation3 + $0x60] sm:$0xff]
        %v1455 = vld [vmem:[#allocation3 + $0x68] sm:$0xff]
        %v1456 = vld [vmem:[#allocation3 + $0x70] sm:$0xff]
        %v1457 = vld [vmem:[#allocation3 + $0x78] sm:$0xff]
        %1459 = vset.pattern.permute.xlu0 0
        %1460 = vperm.xlu0 %1459, %v1411
        %v1461 = vpop.permute.xlu0 %1460
        %1464 = vset.pattern.permute.xlu0 0
        %1465 = vperm.xlu0 %1464, %v1413
        %v1466 = vpop.permute.xlu0 %1465
        %1469 = vset.pattern.permute.xlu0 0
        %1470 = vperm.xlu0 %1469, %v1415
        %v1471 = vpop.permute.xlu0 %1470
        %1474 = vset.pattern.permute.xlu0 0
        %1475 = vperm.xlu0 %1474, %v1417
        %v1476 = vpop.permute.xlu0 %1475
        %1479 = vset.pattern.permute.xlu0 0
        %1480 = vperm.xlu0 %1479, %v1419
        %v1481 = vpop.permute.xlu0 %1480
        %1484 = vset.pattern.permute.xlu0 0
        %1485 = vperm.xlu0 %1484, %v1421
        %v1486 = vpop.permute.xlu0 %1485
        %1489 = vset.pattern.permute.xlu0 0
        %1490 = vperm.xlu0 %1489, %v1423
        %v1491 = vpop.permute.xlu0 %1490
        %1494 = vset.pattern.permute.xlu0 0
        %1495 = vperm.xlu0 %1494, %v1425
        %v1496 = vpop.permute.xlu0 %1495
        %1499 = vset.pattern.permute.xlu0 0
        %1500 = vperm.xlu0 %1499, %v1427
        %v1501 = vpop.permute.xlu0 %1500
        %1504 = vset.pattern.permute.xlu0 0
        %1505 = vperm.xlu0 %1504, %v1429
        %v1506 = vpop.permute.xlu0 %1505
        %1509 = vset.pattern.permute.xlu0 0
        %1510 = vperm.xlu0 %1509, %v1431
        %v1511 = vpop.permute.xlu0 %1510
        %1514 = vset.pattern.permute.xlu0 0
        %1515 = vperm.xlu0 %1514, %v1433
        %v1516 = vpop.permute.xlu0 %1515
        %1519 = vset.pattern.permute.xlu0 0
        %1520 = vperm.xlu0 %1519, %v1435
        %v1521 = vpop.permute.xlu0 %1520
        %1524 = vset.pattern.permute.xlu0 0
        %1525 = vperm.xlu0 %1524, %v1437
        %v1526 = vpop.permute.xlu0 %1525
        %1529 = vset.pattern.permute.xlu0 0
        %1530 = vperm.xlu0 %1529, %v1439
        %v1531 = vpop.permute.xlu0 %1530
        %1534 = vset.pattern.permute.xlu0 0
        %1535 = vperm.xlu0 %1534, %v1441
        %v1536 = vpop.permute.xlu0 %1535
        %v1538 = vmul.f32 %v1461, %v1442
        %v1539 = vmul.f32 %v1466, %v1443
        %v1540 = vmul.f32 %v1471, %v1444
        %v1541 = vmul.f32 %v1476, %v1445
        %v1542 = vmul.f32 %v1481, %v1446
        %v1543 = vmul.f32 %v1486, %v1447
        %v1544 = vmul.f32 %v1491, %v1448
        %v1545 = vmul.f32 %v1496, %v1449
        %v1546 = vmul.f32 %v1501, %v1450
        %v1547 = vmul.f32 %v1506, %v1451
        %v1548 = vmul.f32 %v1511, %v1452
        %v1549 = vmul.f32 %v1516, %v1453
        %v1550 = vmul.f32 %v1521, %v1454
        %v1551 = vmul.f32 %v1526, %v1455
        %v1552 = vmul.f32 %v1531, %v1456
        %v1553 = vmul.f32 %v1536, %v1457
        %v1554 = vpack.c.bf16 %v1275, %v1267
        %v1555 = vpack.c.bf16 %v1277, %v1269
        %v1556 = vpack.c.bf16 %v1279, %v1271
        %v1557 = vpack.c.bf16 %v1281, %v1273
        %v1558 = vpack.c.bf16 %v1291, %v1283
        %v1559 = vpack.c.bf16 %v1293, %v1285
        %v1560 = vpack.c.bf16 %v1295, %v1287
        %v1561 = vpack.c.bf16 %v1297, %v1289
        %v1562 = vpack.c.bf16 %v1307, %v1299
        %v1563 = vpack.c.bf16 %v1309, %v1301
        %v1564 = vpack.c.bf16 %v1311, %v1303
        %v1565 = vpack.c.bf16 %v1313, %v1305
        %v1566 = vpack.c.bf16 %v1323, %v1315
        %v1567 = vpack.c.bf16 %v1325, %v1317
        %v1568 = vpack.c.bf16 %v1327, %v1319
        %v1569 = vpack.c.bf16 %v1329, %v1321
        %v1570 = vpack.c.bf16 %v1339, %v1331
        %v1571 = vpack.c.bf16 %v1341, %v1333
        %v1572 = vpack.c.bf16 %v1343, %v1335
        %v1573 = vpack.c.bf16 %v1345, %v1337
        %v1574 = vpack.c.bf16 %v1355, %v1347
        %v1575 = vpack.c.bf16 %v1357, %v1349
        %v1576 = vpack.c.bf16 %v1359, %v1351
        %v1577 = vpack.c.bf16 %v1361, %v1353
        %v1578 = vpack.c.bf16 %v1371, %v1363
        %v1579 = vpack.c.bf16 %v1373, %v1365
        %v1580 = vpack.c.bf16 %v1375, %v1367
        %v1581 = vpack.c.bf16 %v1377, %v1369
        %v1582 = vpack.c.bf16 %v1387, %v1379
        %v1583 = vpack.c.bf16 %v1389, %v1381
        %v1584 = vpack.c.bf16 %v1391, %v1383
        %v1585 = vpack.c.bf16 %v1393, %v1385
        %v1586 = vld [vmem:[%s339] sm:$0xf]
        %v1587 = vld [vmem:[%s339 + $0x4] sm:$0xf]
        %v1588 = vld [vmem:[%s339 + $0x8] sm:$0xf]
        %v1589 = vld [vmem:[%s339 + $0xc] sm:$0xf]
        %v1590 = vld [vmem:[%s339 + $0x10] sm:$0xf]
        %v1591 = vld [vmem:[%s339 + $0x14] sm:$0xf]
        %v1592 = vld [vmem:[%s339 + $0x18] sm:$0xf]
        %v1593 = vld [vmem:[%s339 + $0x1c] sm:$0xf]
        %v1594 = vld [vmem:[%s339 + $0x20] sm:$0xf]
        %v1595 = vld [vmem:[%s339 + $0x24] sm:$0xf]
        %v1596 = vld [vmem:[%s339 + $0x28] sm:$0xf]
        %v1597 = vld [vmem:[%s339 + $0x2c] sm:$0xf]
        %v1598 = vld [vmem:[%s339 + $0x30] sm:$0xf]
        %v1599 = vld [vmem:[%s339 + $0x34] sm:$0xf]
        %v1600 = vld [vmem:[%s339 + $0x38] sm:$0xf]
        %v1601 = vld [vmem:[%s339 + $0x3c] sm:$0xf]
        %v1602 = vld [vmem:[%s339 + $0x40] sm:$0xf]
        %v1603 = vld [vmem:[%s339 + $0x44] sm:$0xf]
        %v1604 = vld [vmem:[%s339 + $0x48] sm:$0xf]
        %v1605 = vld [vmem:[%s339 + $0x4c] sm:$0xf]
        %v1606 = vld [vmem:[%s339 + $0x50] sm:$0xf]
        %v1607 = vld [vmem:[%s339 + $0x54] sm:$0xf]
        %v1608 = vld [vmem:[%s339 + $0x58] sm:$0xf]
        %v1609 = vld [vmem:[%s339 + $0x5c] sm:$0xf]
        %v1610 = vld [vmem:[%s339 + $0x60] sm:$0xf]
        %v1611 = vld [vmem:[%s339 + $0x64] sm:$0xf]
        %v1612 = vld [vmem:[%s339 + $0x68] sm:$0xf]
        %v1613 = vld [vmem:[%s339 + $0x6c] sm:$0xf]
        %v1614 = vld [vmem:[%s339 + $0x70] sm:$0xf]
        %v1615 = vld [vmem:[%s339 + $0x74] sm:$0xf]
        %v1616 = vld [vmem:[%s339 + $0x78] sm:$0xf]
        %v1617 = vld [vmem:[%s339 + $0x7c] sm:$0xf]
        %v1618 = vld [vmem:[%s339 + $0x80] sm:$0xf]
        %v1619 = vld [vmem:[%s339 + $0x84] sm:$0xf]
        %v1620 = vld [vmem:[%s339 + $0x88] sm:$0xf]
        %v1621 = vld [vmem:[%s339 + $0x8c] sm:$0xf]
        %v1622 = vld [vmem:[%s339 + $0x90] sm:$0xf]
        %v1623 = vld [vmem:[%s339 + $0x94] sm:$0xf]
        %v1624 = vld [vmem:[%s339 + $0x98] sm:$0xf]
        %v1625 = vld [vmem:[%s339 + $0x9c] sm:$0xf]
        %v1626 = vld [vmem:[%s339 + $0xa0] sm:$0xf]
        %v1627 = vld [vmem:[%s339 + $0xa4] sm:$0xf]
        %v1628 = vld [vmem:[%s339 + $0xa8] sm:$0xf]
        %v1629 = vld [vmem:[%s339 + $0xac] sm:$0xf]
        %v1630 = vld [vmem:[%s339 + $0xb0] sm:$0xf]
        %v1631 = vld [vmem:[%s339 + $0xb4] sm:$0xf]
        %v1632 = vld [vmem:[%s339 + $0xb8] sm:$0xf]
        %v1633 = vld [vmem:[%s339 + $0xbc] sm:$0xf]
        %v1634 = vld [vmem:[%s339 + $0xc0] sm:$0xf]
        %v1635 = vld [vmem:[%s339 + $0xc4] sm:$0xf]
        %v1636 = vld [vmem:[%s339 + $0xc8] sm:$0xf]
        %v1637 = vld [vmem:[%s339 + $0xcc] sm:$0xf]
        %v1638 = vld [vmem:[%s339 + $0xd0] sm:$0xf]
        %v1639 = vld [vmem:[%s339 + $0xd4] sm:$0xf]
        %v1640 = vld [vmem:[%s339 + $0xd8] sm:$0xf]
        %v1641 = vld [vmem:[%s339 + $0xdc] sm:$0xf]
        %v1642 = vld [vmem:[%s339 + $0xe0] sm:$0xf]
        %v1643 = vld [vmem:[%s339 + $0xe4] sm:$0xf]
        %v1644 = vld [vmem:[%s339 + $0xe8] sm:$0xf]
        %v1645 = vld [vmem:[%s339 + $0xec] sm:$0xf]
        %v1646 = vld [vmem:[%s339 + $0xf0] sm:$0xf]
        %v1647 = vld [vmem:[%s339 + $0xf4] sm:$0xf]
        %v1648 = vld [vmem:[%s339 + $0xf8] sm:$0xf]
        %v1649 = vld [vmem:[%s339 + $0xfc] sm:$0xf]
        %v1714 = vunpack.c.l.b16 %v1586
        %v1715 = vunpack.c.l.b16 %v1587
        %v1716 = vunpack.c.l.b16 %v1588
        %v1717 = vunpack.c.l.b16 %v1589
        %v1718 = vunpack.c.l.b16 %v1590
        %v1719 = vunpack.c.l.b16 %v1591
        %v1720 = vunpack.c.l.b16 %v1592
        %v1721 = vunpack.c.l.b16 %v1593
        %v1722 = vunpack.c.l.b16 %v1594
        %v1723 = vunpack.c.l.b16 %v1595
        %v1724 = vunpack.c.l.b16 %v1596
        %v1725 = vunpack.c.l.b16 %v1597
        %v1726 = vunpack.c.l.b16 %v1598
        %v1727 = vunpack.c.l.b16 %v1599
        %v1728 = vunpack.c.l.b16 %v1600
        %v1729 = vunpack.c.l.b16 %v1601
        %v1730 = vunpack.c.l.b16 %v1602
        %v1731 = vunpack.c.l.b16 %v1603
        %v1732 = vunpack.c.l.b16 %v1604
        %v1733 = vunpack.c.l.b16 %v1605
        %v1734 = vunpack.c.l.b16 %v1606
        %v1735 = vunpack.c.l.b16 %v1607
        %v1736 = vunpack.c.l.b16 %v1608
        %v1737 = vunpack.c.l.b16 %v1609
        %v1738 = vunpack.c.l.b16 %v1610
        %v1739 = vunpack.c.l.b16 %v1611
        %v1740 = vunpack.c.l.b16 %v1612
        %v1741 = vunpack.c.l.b16 %v1613
        %v1742 = vunpack.c.l.b16 %v1614
        %v1743 = vunpack.c.l.b16 %v1615
        %v1744 = vunpack.c.l.b16 %v1616
        %v1745 = vunpack.c.l.b16 %v1617
        %v1746 = vunpack.c.l.b16 %v1618
        %v1747 = vunpack.c.l.b16 %v1619
        %v1748 = vunpack.c.l.b16 %v1620
        %v1749 = vunpack.c.l.b16 %v1621
        %v1750 = vunpack.c.l.b16 %v1622
        %v1751 = vunpack.c.l.b16 %v1623
        %v1752 = vunpack.c.l.b16 %v1624
        %v1753 = vunpack.c.l.b16 %v1625
        %v1754 = vunpack.c.l.b16 %v1626
        %v1755 = vunpack.c.l.b16 %v1627
        %v1756 = vunpack.c.l.b16 %v1628
        %v1757 = vunpack.c.l.b16 %v1629
        %v1758 = vunpack.c.l.b16 %v1630
        %v1759 = vunpack.c.l.b16 %v1631
        %v1760 = vunpack.c.l.b16 %v1632
        %v1761 = vunpack.c.l.b16 %v1633
        %v1762 = vunpack.c.l.b16 %v1634
        %v1763 = vunpack.c.l.b16 %v1635
        %v1764 = vunpack.c.l.b16 %v1636
        %v1765 = vunpack.c.l.b16 %v1637
        %v1766 = vunpack.c.l.b16 %v1638
        %v1767 = vunpack.c.l.b16 %v1639
        %v1768 = vunpack.c.l.b16 %v1640
        %v1769 = vunpack.c.l.b16 %v1641
        %v1770 = vunpack.c.l.b16 %v1642
        %v1771 = vunpack.c.l.b16 %v1643
        %v1772 = vunpack.c.l.b16 %v1644
        %v1773 = vunpack.c.l.b16 %v1645
        %v1774 = vunpack.c.l.b16 %v1646
        %v1775 = vunpack.c.l.b16 %v1647
        %v1776 = vunpack.c.l.b16 %v1648
        %v1777 = vunpack.c.l.b16 %v1649
        %v1778 = vpack.c.b16 %v1715, %v1714
        %v1779 = vpack.c.b16 %v1717, %v1716
        %v1780 = vpack.c.b16 %v1719, %v1718
        %v1781 = vpack.c.b16 %v1721, %v1720
        %v1782 = vpack.c.b16 %v1723, %v1722
        %v1783 = vpack.c.b16 %v1725, %v1724
        %v1784 = vpack.c.b16 %v1727, %v1726
        %v1785 = vpack.c.b16 %v1729, %v1728
        %v1786 = vpack.c.b16 %v1731, %v1730
        %v1787 = vpack.c.b16 %v1733, %v1732
        %v1788 = vpack.c.b16 %v1735, %v1734
        %v1789 = vpack.c.b16 %v1737, %v1736
        %v1790 = vpack.c.b16 %v1739, %v1738
        %v1791 = vpack.c.b16 %v1741, %v1740
        %v1792 = vpack.c.b16 %v1743, %v1742
        %v1793 = vpack.c.b16 %v1745, %v1744
        %v1794 = vpack.c.b16 %v1747, %v1746
        %v1795 = vpack.c.b16 %v1749, %v1748
        %v1796 = vpack.c.b16 %v1751, %v1750
        %v1797 = vpack.c.b16 %v1753, %v1752
        %v1798 = vpack.c.b16 %v1755, %v1754
        %v1799 = vpack.c.b16 %v1757, %v1756
        %v1800 = vpack.c.b16 %v1759, %v1758
        %v1801 = vpack.c.b16 %v1761, %v1760
        %v1802 = vpack.c.b16 %v1763, %v1762
        %v1803 = vpack.c.b16 %v1765, %v1764
        %v1804 = vpack.c.b16 %v1767, %v1766
        %v1805 = vpack.c.b16 %v1769, %v1768
        %v1806 = vpack.c.b16 %v1771, %v1770
        %v1807 = vpack.c.b16 %v1773, %v1772
        %v1808 = vpack.c.b16 %v1775, %v1774
        %v1809 = vpack.c.b16 %v1777, %v1776
        %1842 = vmatprep.subr.bf16.mxu0 0
        %1843 = vmatpush1.bf16.msra.mxu0 %v1778
        %1844 = vmatprep.subr.bf16.mxu0 0
        %1845 = vmatpush1.bf16.msra.mxu0 %v1779
        %1846 = vmatprep.subr.bf16.mxu0 0
        %1847 = vmatpush1.bf16.msra.mxu0 %v1780
        %1848 = vmatprep.subr.bf16.mxu0 0
        %1849 = vmatpush1.bf16.msra.mxu0 %v1781
        %1850 = vmatprep.subr.bf16.mxu0 0
        %1851 = vmatpush1.bf16.msra.mxu0 %v1782
        %1852 = vmatprep.subr.bf16.mxu0 0
        %1853 = vmatpush1.bf16.msra.mxu0 %v1783
        %1854 = vmatprep.subr.bf16.mxu0 0
        %1855 = vmatpush1.bf16.msra.mxu0 %v1784
        %1856 = vmatprep.subr.bf16.mxu0 0
        %1857 = vmatpush1.bf16.msra.mxu0 %v1785
        %1858 = vmatprep.subr.bf16.mxu0 0
        %1859 = vmatpush1.bf16.msra.mxu0 %v1786
        %1860 = vmatprep.subr.bf16.mxu0 0
        %1861 = vmatpush1.bf16.msra.mxu0 %v1787
        %1862 = vmatprep.subr.bf16.mxu0 0
        %1863 = vmatpush1.bf16.msra.mxu0 %v1788
        %1864 = vmatprep.subr.bf16.mxu0 0
        %1865 = vmatpush1.bf16.msra.mxu0 %v1789
        %1866 = vmatprep.subr.bf16.mxu0 0
        %1867 = vmatpush1.bf16.msra.mxu0 %v1790
        %1868 = vmatprep.subr.bf16.mxu0 0
        %1869 = vmatpush1.bf16.msra.mxu0 %v1791
        %1870 = vmatprep.subr.bf16.mxu0 0
        %1871 = vmatpush1.bf16.msra.mxu0 %v1792
        %1872 = vmatprep.subr.bf16.mxu0 0
        %1873 = vmatpush1.bf16.msra.mxu0 %v1793
        %1874 = vmatprep.mubr.bf16.mxu0 %v1555
        %1875 = vmatmul.mubr.bf16.gmra.mrb[0].mxu0 %v1554
        %v1876 = vpop.f32.mrb[0].mxu0
        %v1877 = vadd.f32 0.0, %v1876
        %v1878 = vpop.f32.mrb[0].mxu0
        %v1879 = vpop.f32.mrb[0].mxu0
        %v1880 = vadd.f32 0.0, %v1879
        %v1881 = vpop.f32.mrb[0].mxu0
        %1882 = vmatprep.mubr.bf16.mxu0 %v1559
        %1883 = vmatmul.mubr.bf16.gmra.mrb[0].mxu0 %v1558
        %v1884 = vpop.f32.mrb[0].mxu0
        %v1885 = vadd.f32 0.0, %v1884
        %v1886 = vpop.f32.mrb[0].mxu0
        %v1887 = vpop.f32.mrb[0].mxu0
        %v1888 = vadd.f32 0.0, %v1887
        %v1889 = vpop.f32.mrb[0].mxu0
        %1890 = vmatprep.mubr.bf16.mxu0 %v1563
        %1891 = vmatmul.mubr.bf16.gmra.mrb[0].mxu0 %v1562
        %v1892 = vpop.f32.mrb[0].mxu0
        %v1893 = vadd.f32 0.0, %v1892
        %v1894 = vpop.f32.mrb[0].mxu0
        %v1895 = vpop.f32.mrb[0].mxu0
        %v1896 = vadd.f32 0.0, %v1895
        %v1897 = vpop.f32.mrb[0].mxu0
        %1898 = vmatprep.mubr.bf16.mxu0 %v1567
        %1899 = vmatmul.mubr.bf16.gmra.mrb[0].mxu0 %v1566
        %v1900 = vpop.f32.mrb[0].mxu0
        %v1901 = vadd.f32 0.0, %v1900
        %v1902 = vpop.f32.mrb[0].mxu0
        %v1903 = vpop.f32.mrb[0].mxu0
        %v1904 = vadd.f32 0.0, %v1903
        %v1905 = vpop.f32.mrb[0].mxu0
        %1906 = vmatprep.mubr.bf16.mxu0 %v1571
        %1907 = vmatmul.mubr.bf16.gmra.mrb[0].mxu0 %v1570
        %v1908 = vpop.f32.mrb[0].mxu0
        %v1909 = vadd.f32 0.0, %v1908
        %v1910 = vpop.f32.mrb[0].mxu0
        %v1911 = vpop.f32.mrb[0].mxu0
        %v1912 = vadd.f32 0.0, %v1911
        %v1913 = vpop.f32.mrb[0].mxu0
        %1914 = vmatprep.mubr.bf16.mxu0 %v1575
        %1915 = vmatmul.mubr.bf16.gmra.mrb[0].mxu0 %v1574
        %v1916 = vpop.f32.mrb[0].mxu0
        %v1917 = vadd.f32 0.0, %v1916
        %v1918 = vpop.f32.mrb[0].mxu0
        %v1919 = vpop.f32.mrb[0].mxu0
        %v1920 = vadd.f32 0.0, %v1919
        %v1921 = vpop.f32.mrb[0].mxu0
        %1922 = vmatprep.mubr.bf16.mxu0 %v1579
        %1923 = vmatmul.mubr.bf16.gmra.mrb[0].mxu0 %v1578
        %v1924 = vpop.f32.mrb[0].mxu0
        %v1925 = vadd.f32 0.0, %v1924
        %v1926 = vpop.f32.mrb[0].mxu0
        %v1927 = vpop.f32.mrb[0].mxu0
        %v1928 = vadd.f32 0.0, %v1927
        %v1929 = vpop.f32.mrb[0].mxu0
        %1930 = vmatprep.mubr.bf16.mxu0 %v1583
        %1931 = vmatmul.mubr.bf16.gmra.mrb[0].mxu0 %v1582
        %v1932 = vpop.f32.mrb[0].mxu0
        %v1933 = vadd.f32 0.0, %v1932
        %v1934 = vpop.f32.mrb[0].mxu0
        %v1935 = vpop.f32.mrb[0].mxu0
        %v1936 = vadd.f32 0.0, %v1935
        %v1937 = vpop.f32.mrb[0].mxu0
        %1938 = vdwg.mxu0
        %1939 = vmatprep.subr.bf16.mxu0 0
        %1940 = vmatpush1.bf16.msra.mxu0 %v1794
        %1941 = vmatprep.subr.bf16.mxu0 0
        %1942 = vmatpush1.bf16.msra.mxu0 %v1795
        %1943 = vmatprep.subr.bf16.mxu0 0
        %1944 = vmatpush1.bf16.msra.mxu0 %v1796
        %1945 = vmatprep.subr.bf16.mxu0 0
        %1946 = vmatpush1.bf16.msra.mxu0 %v1797
        %1947 = vmatprep.subr.bf16.mxu0 0
        %1948 = vmatpush1.bf16.msra.mxu0 %v1798
        %1949 = vmatprep.subr.bf16.mxu0 0
        %1950 = vmatpush1.bf16.msra.mxu0 %v1799
        %1951 = vmatprep.subr.bf16.mxu0 0
        %1952 = vmatpush1.bf16.msra.mxu0 %v1800
        %1953 = vmatprep.subr.bf16.mxu0 0
        %1954 = vmatpush1.bf16.msra.mxu0 %v1801
        %1955 = vmatprep.subr.bf16.mxu0 0
        %1956 = vmatpush1.bf16.msra.mxu0 %v1802
        %1957 = vmatprep.subr.bf16.mxu0 0
        %1958 = vmatpush1.bf16.msra.mxu0 %v1803
        %1959 = vmatprep.subr.bf16.mxu0 0
        %1960 = vmatpush1.bf16.msra.mxu0 %v1804
        %1961 = vmatprep.subr.bf16.mxu0 0
        %1962 = vmatpush1.bf16.msra.mxu0 %v1805
        %1963 = vmatprep.subr.bf16.mxu0 0
        %1964 = vmatpush1.bf16.msra.mxu0 %v1806
        %1965 = vmatprep.subr.bf16.mxu0 0
        %1966 = vmatpush1.bf16.msra.mxu0 %v1807
        %1967 = vmatprep.subr.bf16.mxu0 0
        %1968 = vmatpush1.bf16.msra.mxu0 %v1808
        %1969 = vmatprep.subr.bf16.mxu0 0
        %1970 = vmatpush1.bf16.msra.mxu0 %v1809
        %1971 = vmatprep.mubr.bf16.mxu0 %v1557
        %1972 = vmatmul.mubr.bf16.gmra.mrb[0].mxu0 %v1556
        %v1973 = vpop.f32.mrb[0].mxu0
        %v1974 = vadd.f32 %v1877, %v1973
        %v1975 = vpop.f32.mrb[0].mxu0
        %v1976 = vpop.f32.mrb[0].mxu0
        %v1977 = vadd.f32 %v1880, %v1976
        %v1978 = vpop.f32.mrb[0].mxu0
        %1979 = vmatprep.mubr.bf16.mxu0 %v1561
        %1980 = vmatmul.mubr.bf16.gmra.mrb[0].mxu0 %v1560
        %v1981 = vpop.f32.mrb[0].mxu0
        %v1982 = vadd.f32 %v1885, %v1981
        %v1983 = vpop.f32.mrb[0].mxu0
        %v1984 = vpop.f32.mrb[0].mxu0
        %v1985 = vadd.f32 %v1888, %v1984
        %v1986 = vpop.f32.mrb[0].mxu0
        %1987 = vmatprep.mubr.bf16.mxu0 %v1565
        %1988 = vmatmul.mubr.bf16.gmra.mrb[0].mxu0 %v1564
        %v1989 = vpop.f32.mrb[0].mxu0
        %v1990 = vadd.f32 %v1893, %v1989
        %v1991 = vpop.f32.mrb[0].mxu0
        %v1992 = vpop.f32.mrb[0].mxu0
        %v1993 = vadd.f32 %v1896, %v1992
        %v1994 = vpop.f32.mrb[0].mxu0
        %1995 = vmatprep.mubr.bf16.mxu0 %v1569
        %1996 = vmatmul.mubr.bf16.gmra.mrb[0].mxu0 %v1568
        %v1997 = vpop.f32.mrb[0].mxu0
        %v1998 = vadd.f32 %v1901, %v1997
        %v1999 = vpop.f32.mrb[0].mxu0
        %v2000 = vpop.f32.mrb[0].mxu0
        %v2001 = vadd.f32 %v1904, %v2000
        %v2002 = vpop.f32.mrb[0].mxu0
        %2003 = vmatprep.mubr.bf16.mxu0 %v1573
        %2004 = vmatmul.mubr.bf16.gmra.mrb[0].mxu0 %v1572
        %v2005 = vpop.f32.mrb[0].mxu0
        %v2006 = vadd.f32 %v1909, %v2005
        %v2007 = vpop.f32.mrb[0].mxu0
        %v2008 = vpop.f32.mrb[0].mxu0
        %v2009 = vadd.f32 %v1912, %v2008
        %v2010 = vpop.f32.mrb[0].mxu0
        %2011 = vmatprep.mubr.bf16.mxu0 %v1577
        %2012 = vmatmul.mubr.bf16.gmra.mrb[0].mxu0 %v1576
        %v2013 = vpop.f32.mrb[0].mxu0
        %v2014 = vadd.f32 %v1917, %v2013
        %v2015 = vpop.f32.mrb[0].mxu0
        %v2016 = vpop.f32.mrb[0].mxu0
        %v2017 = vadd.f32 %v1920, %v2016
        %v2018 = vpop.f32.mrb[0].mxu0
        %2019 = vmatprep.mubr.bf16.mxu0 %v1581
        %2020 = vmatmul.mubr.bf16.gmra.mrb[0].mxu0 %v1580
        %v2021 = vpop.f32.mrb[0].mxu0
        %v2022 = vadd.f32 %v1925, %v2021
        %v2023 = vpop.f32.mrb[0].mxu0
        %v2024 = vpop.f32.mrb[0].mxu0
        %v2025 = vadd.f32 %v1928, %v2024
        %v2026 = vpop.f32.mrb[0].mxu0
        %2027 = vmatprep.mubr.bf16.mxu0 %v1585
        %2028 = vmatmul.mubr.bf16.gmra.mrb[0].mxu0 %v1584
        %v2029 = vpop.f32.mrb[0].mxu0
        %v2030 = vadd.f32 %v1933, %v2029
        %v2031 = vpop.f32.mrb[0].mxu0
        %v2032 = vpop.f32.mrb[0].mxu0
        %v2033 = vadd.f32 %v1936, %v2032
        %v2034 = vpop.f32.mrb[0].mxu0
        %2035 = vdwg.mxu0
        %v2036 = vadd.f32 %v1538, %v1974
        %v2037 = vadd.f32 %v1539, %v1977
        %v2038 = vadd.f32 %v1540, %v1982
        %v2039 = vadd.f32 %v1541, %v1985
        %v2040 = vadd.f32 %v1542, %v1990
        %v2041 = vadd.f32 %v1543, %v1993
        %v2042 = vadd.f32 %v1544, %v1998
        %v2043 = vadd.f32 %v1545, %v2001
        %v2044 = vadd.f32 %v1546, %v2006
        %v2045 = vadd.f32 %v1547, %v2009
        %v2046 = vadd.f32 %v1548, %v2014
        %v2047 = vadd.f32 %v1549, %v2017
        %v2048 = vadd.f32 %v1550, %v2022
        %v2049 = vadd.f32 %v1551, %v2025
        %v2050 = vadd.f32 %v1552, %v2030
        %v2051 = vadd.f32 %v1553, %v2033
        %2052 = vst [vmem:[#allocation3] sm:$0xff] %v2036
        %2053 = vst [vmem:[#allocation3 + $0x8] sm:$0xff] %v2037
        %2054 = vst [vmem:[#allocation3 + $0x10] sm:$0xff] %v2038
        %2055 = vst [vmem:[#allocation3 + $0x18] sm:$0xff] %v2039
        %2056 = vst [vmem:[#allocation3 + $0x20] sm:$0xff] %v2040
        %2057 = vst [vmem:[#allocation3 + $0x28] sm:$0xff] %v2041
        %2058 = vst [vmem:[#allocation3 + $0x30] sm:$0xff] %v2042
        %2059 = vst [vmem:[#allocation3 + $0x38] sm:$0xff] %v2043
        %2060 = vst [vmem:[#allocation3 + $0x40] sm:$0xff] %v2044
        %2061 = vst [vmem:[#allocation3 + $0x48] sm:$0xff] %v2045
        %2062 = vst [vmem:[#allocation3 + $0x50] sm:$0xff] %v2046
        %2063 = vst [vmem:[#allocation3 + $0x58] sm:$0xff] %v2047
        %2064 = vst [vmem:[#allocation3 + $0x60] sm:$0xff] %v2048
        %2065 = vst [vmem:[#allocation3 + $0x68] sm:$0xff] %v2049
        %2066 = vst [vmem:[#allocation3 + $0x70] sm:$0xff] %v2050
        %2067 = vst [vmem:[#allocation3 + $0x78] sm:$0xff] %v2051
        %vm2068 = vcmask 7168
        %2069 = vst.msk [vmem:[#allocation2] sm:$0xff] %vm2068, %v1074
        %2070 = vst.msk [vmem:[#allocation2 + $0x8] sm:$0xff] %vm2068, %v1075
        %2071 = vst.msk [vmem:[#allocation2 + $0x10] sm:$0xff] %vm2068, %v1076
        %2072 = vst.msk [vmem:[#allocation2 + $0x18] sm:$0xff] %vm2068, %v1077
        %2073 = vst.msk [vmem:[#allocation2 + $0x20] sm:$0xff] %vm2068, %v1078
        %2074 = vst.msk [vmem:[#allocation2 + $0x28] sm:$0xff] %vm2068, %v1079
        %2075 = vst.msk [vmem:[#allocation2 + $0x30] sm:$0xff] %vm2068, %v1080
        %2076 = vst.msk [vmem:[#allocation2 + $0x38] sm:$0xff] %vm2068, %v1081
        %2077 = vst.msk [vmem:[#allocation2 + $0x40] sm:$0xff] %vm2068, %v1082
        %2078 = vst.msk [vmem:[#allocation2 + $0x48] sm:$0xff] %vm2068, %v1083
        %2079 = vst.msk [vmem:[#allocation2 + $0x50] sm:$0xff] %vm2068, %v1084
        %2080 = vst.msk [vmem:[#allocation2 + $0x58] sm:$0xff] %vm2068, %v1085
        %2081 = vst.msk [vmem:[#allocation2 + $0x60] sm:$0xff] %vm2068, %v1086
        %2082 = vst.msk [vmem:[#allocation2 + $0x68] sm:$0xff] %vm2068, %v1087
        %2083 = vst.msk [vmem:[#allocation2 + $0x70] sm:$0xff] %vm2068, %v1088
        %2084 = vst.msk [vmem:[#allocation2 + $0x78] sm:$0xff] %vm2068, %v1089
        %p2085 = scmp.eq.s32.totalorder %s21, 1
        // Predicated region
        $region68: #{gat_forward.7} parent=58 // pred_check
          %p2086 = pneg %p2085
        $region69: #{gat_forward.7} parent=58 // pred_check_branch
          %2088 = sbr.rel (%p2086) target = $region71
        $region70: #{gat_forward.7} parent=58 // pred_region
          %v2089 = vld [vmem:[#allocation3] sm:$0xff]
          %v2090 = vld [vmem:[#allocation3 + $0x8] sm:$0xff]
          %v2091 = vld [vmem:[#allocation3 + $0x10] sm:$0xff]
          %v2092 = vld [vmem:[#allocation3 + $0x18] sm:$0xff]
          %v2093 = vld [vmem:[#allocation3 + $0x20] sm:$0xff]
          %v2094 = vld [vmem:[#allocation3 + $0x28] sm:$0xff]
          %v2095 = vld [vmem:[#allocation3 + $0x30] sm:$0xff]
          %v2096 = vld [vmem:[#allocation3 + $0x38] sm:$0xff]
          %v2097 = vld [vmem:[#allocation3 + $0x40] sm:$0xff]
          %v2098 = vld [vmem:[#allocation3 + $0x48] sm:$0xff]
          %v2099 = vld [vmem:[#allocation3 + $0x50] sm:$0xff]
          %v2100 = vld [vmem:[#allocation3 + $0x58] sm:$0xff]
          %v2101 = vld [vmem:[#allocation3 + $0x60] sm:$0xff]
          %v2102 = vld [vmem:[#allocation3 + $0x68] sm:$0xff]
          %v2103 = vld [vmem:[#allocation3 + $0x70] sm:$0xff]
          %v2104 = vld [vmem:[#allocation3 + $0x78] sm:$0xff]
          %v2105 = vlaneseq
          %v2106 = vand.u32 %v2105, 127
          %vm2107 = vcmp.eq.s32.totalorder %v2106, 32
          %v2108 = vsel %vm2107, %v2089, 0.0
          %v2109 = vsel %vm2107, %v2090, 0.0
          %v2110 = vsel %vm2107, %v2091, 0.0
          %v2111 = vsel %vm2107, %v2092, 0.0
          %v2112 = vsel %vm2107, %v2093, 0.0
          %v2113 = vsel %vm2107, %v2094, 0.0
          %v2114 = vsel %vm2107, %v2095, 0.0
          %v2115 = vsel %vm2107, %v2096, 0.0
          %v2116 = vsel %vm2107, %v2097, 0.0
          %v2117 = vsel %vm2107, %v2098, 0.0
          %v2118 = vsel %vm2107, %v2099, 0.0
          %v2119 = vsel %vm2107, %v2100, 0.0
          %v2120 = vsel %vm2107, %v2101, 0.0
          %v2121 = vsel %vm2107, %v2102, 0.0
          %v2122 = vsel %vm2107, %v2103, 0.0
          %v2123 = vsel %vm2107, %v2104, 0.0
          %2124 = vadd.xlane.f32.xlu0 %v2108
          %v2125 = vpop.xlane.xlu0 %2124
          %2126 = vadd.xlane.f32.xlu0 %v2109
          %v2127 = vpop.xlane.xlu0 %2126
          %2128 = vadd.xlane.f32.xlu0 %v2110
          %v2129 = vpop.xlane.xlu0 %2128
          %2130 = vadd.xlane.f32.xlu0 %v2111
          %v2131 = vpop.xlane.xlu0 %2130
          %2132 = vadd.xlane.f32.xlu0 %v2112
          %v2133 = vpop.xlane.xlu0 %2132
          %2134 = vadd.xlane.f32.xlu0 %v2113
          %v2135 = vpop.xlane.xlu0 %2134
          %2136 = vadd.xlane.f32.xlu0 %v2114
          %v2137 = vpop.xlane.xlu0 %2136
          %2138 = vadd.xlane.f32.xlu0 %v2115
          %v2139 = vpop.xlane.xlu0 %2138
          %2140 = vadd.xlane.f32.xlu0 %v2116
          %v2141 = vpop.xlane.xlu0 %2140
          %2142 = vadd.xlane.f32.xlu0 %v2117
          %v2143 = vpop.xlane.xlu0 %2142
          %2144 = vadd.xlane.f32.xlu0 %v2118
          %v2145 = vpop.xlane.xlu0 %2144
          %2146 = vadd.xlane.f32.xlu0 %v2119
          %v2147 = vpop.xlane.xlu0 %2146
          %2148 = vadd.xlane.f32.xlu0 %v2120
          %v2149 = vpop.xlane.xlu0 %2148
          %2150 = vadd.xlane.f32.xlu0 %v2121
          %v2151 = vpop.xlane.xlu0 %2150
          %2152 = vadd.xlane.f32.xlu0 %v2122
          %v2153 = vpop.xlane.xlu0 %2152
          %2154 = vadd.xlane.f32.xlu0 %v2123
          %v2155 = vpop.xlane.xlu0 %2154
          %v2156 = vrcp.pop %v2125
          %v2157 = vrcp.pop %v2127
          %v2158 = vrcp.pop %v2129
          %v2159 = vrcp.pop %v2131
          %v2160 = vrcp.pop %v2133
          %v2161 = vrcp.pop %v2135
          %v2162 = vrcp.pop %v2137
          %v2163 = vrcp.pop %v2139
          %v2164 = vrcp.pop %v2141
          %v2165 = vrcp.pop %v2143
          %v2166 = vrcp.pop %v2145
          %v2167 = vrcp.pop %v2147
          %v2168 = vrcp.pop %v2149
          %v2169 = vrcp.pop %v2151
          %v2170 = vrcp.pop %v2153
          %v2171 = vrcp.pop %v2155
          %v2172 = vmul.f32 %v2089, %v2156
          %v2173 = vmul.f32 %v2090, %v2157
          %v2174 = vmul.f32 %v2091, %v2158
          %v2175 = vmul.f32 %v2092, %v2159
          %v2176 = vmul.f32 %v2093, %v2160
          %v2177 = vmul.f32 %v2094, %v2161
          %v2178 = vmul.f32 %v2095, %v2162
          %v2179 = vmul.f32 %v2096, %v2163
          %v2180 = vmul.f32 %v2097, %v2164
          %v2181 = vmul.f32 %v2098, %v2165
          %v2182 = vmul.f32 %v2099, %v2166
          %v2183 = vmul.f32 %v2100, %v2167
          %v2184 = vmul.f32 %v2101, %v2168
          %v2185 = vmul.f32 %v2102, %v2169
          %v2186 = vmul.f32 %v2103, %v2170
          %v2187 = vmul.f32 %v2104, %v2171
          %v2188 = vld [vmem:[%s4] sm:$0x1]
          %v2190 = vlaneseq
          %v2191 = vshrl.u32 %v2190, 7
          %v2192 = vsub.s32 0, %v2191
          %v2193 = vrot.slane %v2188, %v2192
          %v2195 = vadd.f32 %v2172, %v2193
          %v2196 = vadd.f32 %v2173, %v2193
          %v2197 = vadd.f32 %v2174, %v2193
          %v2198 = vadd.f32 %v2175, %v2193
          %v2199 = vadd.f32 %v2176, %v2193
          %v2200 = vadd.f32 %v2177, %v2193
          %v2201 = vadd.f32 %v2178, %v2193
          %v2202 = vadd.f32 %v2179, %v2193
          %v2203 = vadd.f32 %v2180, %v2193
          %v2204 = vadd.f32 %v2181, %v2193
          %v2205 = vadd.f32 %v2182, %v2193
          %v2206 = vadd.f32 %v2183, %v2193
          %v2207 = vadd.f32 %v2184, %v2193
          %v2208 = vadd.f32 %v2185, %v2193
          %v2209 = vadd.f32 %v2186, %v2193
          %v2210 = vadd.f32 %v2187, %v2193
          %v2211 = vmul.f32 %v2195, 0.01
          %v2212 = vmul.f32 %v2196, 0.01
          %v2213 = vmul.f32 %v2197, 0.01
          %v2214 = vmul.f32 %v2198, 0.01
          %v2215 = vmul.f32 %v2199, 0.01
          %v2216 = vmul.f32 %v2200, 0.01
          %v2217 = vmul.f32 %v2201, 0.01
          %v2218 = vmul.f32 %v2202, 0.01
          %v2219 = vmul.f32 %v2203, 0.01
          %v2220 = vmul.f32 %v2204, 0.01
          %v2221 = vmul.f32 %v2205, 0.01
          %v2222 = vmul.f32 %v2206, 0.01
          %v2223 = vmul.f32 %v2207, 0.01
          %v2224 = vmul.f32 %v2208, 0.01
          %v2225 = vmul.f32 %v2209, 0.01
          %v2226 = vmul.f32 %v2210, 0.01
          %v2227 = vmax.f32 %v2195, %v2211
          %v2228 = vmax.f32 %v2196, %v2212
          %v2229 = vmax.f32 %v2197, %v2213
          %v2230 = vmax.f32 %v2198, %v2214
          %v2231 = vmax.f32 %v2199, %v2215
          %v2232 = vmax.f32 %v2200, %v2216
          %v2233 = vmax.f32 %v2201, %v2217
          %v2234 = vmax.f32 %v2202, %v2218
          %v2235 = vmax.f32 %v2203, %v2219
          %v2236 = vmax.f32 %v2204, %v2220
          %v2237 = vmax.f32 %v2205, %v2221
          %v2238 = vmax.f32 %v2206, %v2222
          %v2239 = vmax.f32 %v2207, %v2223
          %v2240 = vmax.f32 %v2208, %v2224
          %v2241 = vmax.f32 %v2209, %v2225
          %v2242 = vmax.f32 %v2210, %v2226
          %2243 = vst [vmem:[%s356] sm:$0xff] %v2227
          %2244 = vst [vmem:[%s356 + $0x8] sm:$0xff] %v2228
          %2245 = vst [vmem:[%s356 + $0x10] sm:$0xff] %v2229
          %2246 = vst [vmem:[%s356 + $0x18] sm:$0xff] %v2230
          %2247 = vst [vmem:[%s356 + $0x20] sm:$0xff] %v2231
          %2248 = vst [vmem:[%s356 + $0x28] sm:$0xff] %v2232
          %2249 = vst [vmem:[%s356 + $0x30] sm:$0xff] %v2233
          %2250 = vst [vmem:[%s356 + $0x38] sm:$0xff] %v2234
          %2251 = vst [vmem:[%s356 + $0x40] sm:$0xff] %v2235
          %2252 = vst [vmem:[%s356 + $0x48] sm:$0xff] %v2236
          %2253 = vst [vmem:[%s356 + $0x50] sm:$0xff] %v2237
          %2254 = vst [vmem:[%s356 + $0x58] sm:$0xff] %v2238
          %2255 = vst [vmem:[%s356 + $0x60] sm:$0xff] %v2239
          %2256 = vst [vmem:[%s356 + $0x68] sm:$0xff] %v2240
          %2257 = vst [vmem:[%s356 + $0x70] sm:$0xff] %v2241
          %2258 = vst [vmem:[%s356 + $0x78] sm:$0xff] %v2242
        $region71: #{gat_forward.7} parent=58 // pred_fallthru
          _
        %s2259 = smul.u32 16, %s20
        %p2260 = scmp.lt.s32.totalorder %s2259, 127
        %s2261 = scalar_select %p2260, %s2259, 127
        %s2262 = smul.addr %s2261, 8
        %s2263 = scalar_lea.vmem %s5, %s2262
        // Predicated region
        $region72: #{gat_forward.7} parent=58 // pred_check
          %p2264 = pneg %p173
        $region73: #{gat_forward.7} parent=58 // pred_check_branch
          %2266 = sbr.rel (%p2264) target = $region75
        $region74: #{gat_forward.7} parent=58 // pred_region
          %s2267 = smul.u32 16, %s20
        $region75: #{gat_forward.7} parent=58 // pred_fallthru
          _
      $region59: #{gat_forward.7} parent=5 // pred_fallthru
        _
      %p2268 = scmp.le.s32.totalorder 2, %s11
      // Predicated region
      $region76: #{gat_forward.7} parent=5 // pred_check
        %p2269 = pneg %p2268
      $region77: #{gat_forward.7} parent=5 // pred_check_branch
        %2271 = sbr.rel (%p2269) target = $region79
      $region78: #{gat_forward.7} parent=5 // pred_region
        %s2272 = ssub.s32 %s11, 2
        // Predicated region
        $region80: #{gat_forward.7} parent=78 // pred_check
          %p2273 = pneg %p179
        $region81: #{gat_forward.7} parent=78 // pred_check_branch
          %2275 = sbr.rel (%p2273) target = $region83
        $region82: #{gat_forward.7} parent=78 // pred_region
          %s2276 = smul.u32 16, %s22
          %p2277 = scmp.lt.s32.totalorder %s2276, 127
          %s2278 = scalar_select %p2277, %s2276, 127
          %s2279 = smul.addr %s2278, 8
          %s2280 = scalar_lea.vmem %s5, %s2279
        $region83: #{gat_forward.7} parent=78 // pred_fallthru
          _
      $region79: #{gat_forward.7} parent=5 // pred_fallthru
        _
    $region6: #{gat_forward.7} parent=1 // loop_footer
      %s15 = sadd.s32 1, %s11
    $region7: #{gat_forward.7} parent=1 // loop_footer_branch
      %10 = sbr.rel target = $region3
    $region8: #{gat_forward.7} parent=1 // loop_exit
      _

// kernel: gat_forward.10
$region0: #{gat_forward.10}
  #allocation0 [shape = 'u32[]', space=smem, size = 0x4, offset = 0x4, fixed_abs, tag = 'smem constant byte address 0x4 - core index']
  #allocation1 [shape = 'u32[144,128]{1,0:T(1,128)}', space=vmem, size = 0x12000, scoped, tag = 'internal scratch']
  %s0 = inlined_call_operand.vmem [shape: f32[1024,128], index: 0, kind: input, shape index: {}]
  %s1 = inlined_call_operand.vmem [shape: f32[1024,1], index: 1, kind: input, shape index: {}]
  %s2 = inlined_call_operand.vmem [shape: f32[1,128], index: 2, kind: output, shape index: {0}]
  %s3 = inlined_call_operand.vmem [shape: f32[1,128], index: 3, kind: output, shape index: {1}]
  %4 = xla_tuple %s2, %s3
  %s5 = sld [smem:[#allocation0]]
  $region53: #{gat_forward.10} parent=0
    _
  %s7 = ssub.s32 1, %s5
  %s8 = scalar_select 0, %s7, %s5
  loop: start=0, step=1, limit=4
  $region2: #{gat_forward.10} parent=0 // loop_pre_header
    _
  $region3: #{gat_forward.10} parent=0 // loop_header
    %s10 = sphi 0, %s14
    %p11 = scmp.ge.s32.totalorder %s10, 4
    %s20 = sphi 0, %s22
    %s23 = sphi 0, %s20
    %s24 = sphi 0, %s23
    %s40 = sphi 0, %s24
    %s46 = sphi 0, %s48
    %s49 = sphi 0, %s46
    %s50 = sphi 0, %s49
    %s66 = sphi 0, %s50
    %s70 = sphi 0, %s70
    %s72 = sphi 0, %s70
    %s73 = sphi 0, %s72
    %s87 = sphi 0, %s73
    %s91 = sphi 0, %s91
    %s93 = sphi 0, %s91
    %s94 = sphi 0, %s93
    %s108 = sphi 0, %s94
  $region4: #{gat_forward.10} parent=0 // loop_header_branch
    %13 = sbr.rel (%p11) target = $region8
  $region5: #{gat_forward.10} parent=0 // loop_body
    %s15 = ssub.s32 %s10, 1
    %s16 = ssub.s32 %s10, 2
    %s17 = sadd.s32 %s10, 1
    %s18 = ssub.s32 %s10, %s17
    %p19 = scmp.eq.s32.totalorder %s18, 0
    %s21 = sadd.s32 %s20, 1
    %s22 = scalar_select %p19, %s20, %s21
    %p25 = pneg %p19
    %p26 = scmp.eq.s32.totalorder %s10, 1
    %p27 = por %p25, %p26
    %p28 = scmp.ne.s32.totalorder %s20, %s23
    %p29 = scmp.eq.s32.totalorder %s10, 0
    %p30 = por %p28, %p29
    %p31 = scmp.ne.s32.totalorder %s20, %s23
    %p32 = scmp.eq.s32.totalorder %s15, 1
    %p33 = por %p31, %p32
    %p34 = scmp.ne.s32.totalorder %s23, %s24
    %p35 = scmp.eq.s32.totalorder %s15, 0
    %p36 = por %p34, %p35
    %p37 = scmp.ne.s32.totalorder %s23, %s24
    %p38 = scmp.eq.s32.totalorder %s16, 1
    %p39 = por %p37, %p38
    %p41 = scmp.ne.s32.totalorder %s24, %s40
    %p42 = scmp.eq.s32.totalorder %s16, 0
    %p43 = por %p41, %p42
    %s44 = ssub.s32 %s10, %s17
    %p45 = scmp.eq.s32.totalorder %s44, 0
    %s47 = sadd.s32 %s46, 1
    %s48 = scalar_select %p45, %s46, %s47
    %p51 = pneg %p45
    %p52 = scmp.eq.s32.totalorder %s10, 1
    %p53 = por %p51, %p52
    %p54 = scmp.ne.s32.totalorder %s46, %s49
    %p55 = scmp.eq.s32.totalorder %s10, 0
    %p56 = por %p54, %p55
    %p57 = scmp.ne.s32.totalorder %s46, %s49
    %p58 = scmp.eq.s32.totalorder %s15, 1
    %p59 = por %p57, %p58
    %p60 = scmp.ne.s32.totalorder %s49, %s50
    %p61 = scmp.eq.s32.totalorder %s15, 0
    %p62 = por %p60, %p61
    %p63 = scmp.ne.s32.totalorder %s49, %s50
    %p64 = scmp.eq.s32.totalorder %s16, 1
    %p65 = por %p63, %p64
    %p67 = scmp.ne.s32.totalorder %s50, %s66
    %p68 = scmp.eq.s32.totalorder %s16, 0
    %p69 = por %p67, %p68
    %s71 = sadd.s32 %s70, 1
    %p74 = scmp.eq.s32.totalorder %s10, 1
    %p75 = scmp.ne.s32.totalorder %s70, %s72
    %p76 = scmp.eq.s32.totalorder %s10, 0
    %p77 = por %p75, %p76
    %p78 = scmp.ne.s32.totalorder %s70, %s72
    %p79 = scmp.eq.s32.totalorder %s15, 1
    %p80 = por %p78, %p79
    %p81 = scmp.ne.s32.totalorder %s72, %s73
    %p82 = scmp.eq.s32.totalorder %s15, 0
    %p83 = por %p81, %p82
    %p84 = scmp.ne.s32.totalorder %s72, %s73
    %p85 = scmp.eq.s32.totalorder %s16, 1
    %p86 = por %p84, %p85
    %p88 = scmp.ne.s32.totalorder %s73, %s87
    %p89 = scmp.eq.s32.totalorder %s16, 0
    %p90 = por %p88, %p89
    %s92 = sadd.s32 %s91, 1
    %p95 = scmp.eq.s32.totalorder %s10, 1
    %p96 = scmp.ne.s32.totalorder %s91, %s93
    %p97 = scmp.eq.s32.totalorder %s10, 0
    %p98 = por %p96, %p97
    %p99 = scmp.ne.s32.totalorder %s91, %s93
    %p100 = scmp.eq.s32.totalorder %s15, 1
    %p101 = por %p99, %p100
    %p102 = scmp.ne.s32.totalorder %s93, %s94
    %p103 = scmp.eq.s32.totalorder %s15, 0
    %p104 = por %p102, %p103
    %p105 = scmp.ne.s32.totalorder %s93, %s94
    %p106 = scmp.eq.s32.totalorder %s16, 1
    %p107 = por %p105, %p106
    %p109 = scmp.ne.s32.totalorder %s94, %s108
    %p110 = scmp.eq.s32.totalorder %s16, 0
    %p111 = por %p109, %p110
    %p112 = scmp.le.s32.totalorder 1, %s10
    %p113 = scmp.lt.s32.totalorder %s10, 3
    %p114 = pnand %p112, %p113
    %p115 = pneg %p114
    // Predicated region
    $region9: #{gat_forward.10} parent=5 // pred_check
      _
    $region10: #{gat_forward.10} parent=5 // pred_check_branch
      %117 = sbr.rel (%p114) target = $region12
    $region11: #{gat_forward.10} parent=5 // pred_region
      %s118 = ssub.s32 %s10, 1
    $region12: #{gat_forward.10} parent=5 // pred_fallthru
      _
    %p119 = scmp.lt.s32.totalorder %s10, 2
    // Predicated region
    $region13: #{gat_forward.10} parent=5 // pred_check
      %p120 = pneg %p119
    $region14: #{gat_forward.10} parent=5 // pred_check_branch
      %122 = sbr.rel (%p120) target = $region16
    $region15: #{gat_forward.10} parent=5 // pred_region
      // Predicated region
      $region17: #{gat_forward.10} parent=15 // pred_check
        %p123 = pneg %p30
      $region18: #{gat_forward.10} parent=15 // pred_check_branch
        %125 = sbr.rel (%p123) target = $region20
      $region19: #{gat_forward.10} parent=15 // pred_region
        %s126 = smul.u32 64, %s10
        %p127 = scmp.lt.s32.totalorder %s126, 127
        %s128 = scalar_select %p127, %s126, 127
        %s129 = smul.addr %s128, 8
        %s130 = scalar_lea.vmem %s0, %s129
        %s131 = smul.u32 64, %s10
      $region20: #{gat_forward.10} parent=15 // pred_fallthru
        _
      // Predicated region
      $region21: #{gat_forward.10} parent=15 // pred_check
        %p132 = pneg %p56
      $region22: #{gat_forward.10} parent=15 // pred_check_branch
        %134 = sbr.rel (%p132) target = $region24
      $region23: #{gat_forward.10} parent=15 // pred_region
        %s135 = smul.u32 64, %s10
        %p136 = scmp.lt.s32.totalorder %s135, 127
        %s137 = scalar_select %p136, %s135, 127
        %s138 = smul.addr %s137, 8
        %s139 = scalar_lea.vmem %s1, %s138
        %s140 = smul.u32 64, %s10
      $region24: #{gat_forward.10} parent=15 // pred_fallthru
        _
    $region16: #{gat_forward.10} parent=5 // pred_fallthru
      _
    %p141 = scmp.le.s32.totalorder 1, %s10
    %p142 = scmp.lt.s32.totalorder %s10, 3
    %p143 = pnand %p141, %p142
    %p144 = pneg %p143
    // Predicated region
    $region25: #{gat_forward.10} parent=5 // pred_check
      _
    $region26: #{gat_forward.10} parent=5 // pred_check_branch
      %146 = sbr.rel (%p143) target = $region28
    $region27: #{gat_forward.10} parent=5 // pred_region
      %s147 = ssub.s32 %s10, 1
      %s148 = smul.u32 64, %s15
      %p149 = scmp.lt.s32.totalorder %s148, 127
      %s150 = scalar_select %p149, %s148, 127
      %s151 = smul.addr %s150, 8
      %s152 = scalar_lea.vmem %s0, %s151
      %p153 = pneg %p36
      %p154 = pneg %p33
      %s155 = smul.u32 64, %s15
      %p156 = scmp.lt.s32.totalorder %s155, 127
      %s157 = scalar_select %p156, %s155, 127
      %s158 = smul.addr %s157, 8
      %s159 = scalar_lea.vmem %s1, %s158
      %p160 = pneg %p62
      %p161 = pneg %p59
      %p162 = pneg %p83
      %p163 = pneg %p80
      %p164 = pneg %p104
      %p165 = pneg %p101
      %s166 = smul.u32 64, %s15
      %p167 = scmp.lt.s32.totalorder %s166, 127
      %s168 = scalar_select %p167, %s166, 127
      %s169 = smul.addr %s168, 8
      %s170 = scalar_lea.vmem %s0, %s169
      %s171 = smul.u32 64, %s15
      %s172 = smul.u32 64, %s15
      %p173 = scmp.lt.s32.totalorder %s172, 127
      %s174 = scalar_select %p173, %s172, 127
      %s175 = smul.addr %s174, 8
      %s176 = scalar_lea.vmem %s1, %s175
      %s177 = smul.u32 64, %s15
      %p178 = scmp.eq.s32.totalorder %s15, 0
      // Predicated region
      $region29: #{gat_forward.10} parent=27 // pred_check
        %p179 = pneg %p178
      $region30: #{gat_forward.10} parent=27 // pred_check_branch
        %181 = sbr.rel (%p179) target = $region32
      $region31: #{gat_forward.10} parent=27 // pred_region
        %182 = vst [vmem:[%s2] sm:$0x1] 0.0
        %183 = vst [vmem:[%s3] sm:$0x1] 0.0
      $region32: #{gat_forward.10} parent=27 // pred_fallthru
        _
      %v184 = vld [vmem:[%s170] sm:$0xff]
      %v185 = vld [vmem:[%s170 + $0x8] sm:$0xff]
      %v186 = vld [vmem:[%s170 + $0x10] sm:$0xff]
      %v187 = vld [vmem:[%s170 + $0x18] sm:$0xff]
      %v188 = vld [vmem:[%s170 + $0x20] sm:$0xff]
      %v189 = vld [vmem:[%s170 + $0x28] sm:$0xff]
      %v190 = vld [vmem:[%s170 + $0x30] sm:$0xff]
      %v191 = vld [vmem:[%s170 + $0x38] sm:$0xff]
      %v192 = vld [vmem:[%s170 + $0x40] sm:$0xff]
      %v193 = vld [vmem:[%s170 + $0x48] sm:$0xff]
      %v194 = vld [vmem:[%s170 + $0x50] sm:$0xff]
      %v195 = vld [vmem:[%s170 + $0x58] sm:$0xff]
      %v196 = vld [vmem:[%s170 + $0x60] sm:$0xff]
      %v197 = vld [vmem:[%s170 + $0x68] sm:$0xff]
      %v198 = vld [vmem:[%s170 + $0x70] sm:$0xff]
      %v199 = vld [vmem:[%s170 + $0x78] sm:$0xff]
      %v200 = vld [vmem:[%s170 + $0x80] sm:$0xff]
      %v201 = vld [vmem:[%s170 + $0x88] sm:$0xff]
      %v202 = vld [vmem:[%s170 + $0x90] sm:$0xff]
      %v203 = vld [vmem:[%s170 + $0x98] sm:$0xff]
      %v204 = vld [vmem:[%s170 + $0xa0] sm:$0xff]
      %v205 = vld [vmem:[%s170 + $0xa8] sm:$0xff]
      %v206 = vld [vmem:[%s170 + $0xb0] sm:$0xff]
      %v207 = vld [vmem:[%s170 + $0xb8] sm:$0xff]
      %v208 = vld [vmem:[%s170 + $0xc0] sm:$0xff]
      %v209 = vld [vmem:[%s170 + $0xc8] sm:$0xff]
      %v210 = vld [vmem:[%s170 + $0xd0] sm:$0xff]
      %v211 = vld [vmem:[%s170 + $0xd8] sm:$0xff]
      %v212 = vld [vmem:[%s170 + $0xe0] sm:$0xff]
      %v213 = vld [vmem:[%s170 + $0xe8] sm:$0xff]
      %v214 = vld [vmem:[%s170 + $0xf0] sm:$0xff]
      %v215 = vld [vmem:[%s170 + $0xf8] sm:$0xff]
      %v216 = vld [vmem:[%s170 + $0x100] sm:$0xff]
      %v217 = vld [vmem:[%s170 + $0x108] sm:$0xff]
      %v218 = vld [vmem:[%s170 + $0x110] sm:$0xff]
      %v219 = vld [vmem:[%s170 + $0x118] sm:$0xff]
      %v220 = vld [vmem:[%s170 + $0x120] sm:$0xff]
      %v221 = vld [vmem:[%s170 + $0x128] sm:$0xff]
      %v222 = vld [vmem:[%s170 + $0x130] sm:$0xff]
      %v223 = vld [vmem:[%s170 + $0x138] sm:$0xff]
      %v224 = vld [vmem:[%s170 + $0x140] sm:$0xff]
      %v225 = vld [vmem:[%s170 + $0x148] sm:$0xff]
      %v226 = vld [vmem:[%s170 + $0x150] sm:$0xff]
      %v227 = vld [vmem:[%s170 + $0x158] sm:$0xff]
      %v228 = vld [vmem:[%s170 + $0x160] sm:$0xff]
      %v229 = vld [vmem:[%s170 + $0x168] sm:$0xff]
      %v230 = vld [vmem:[%s170 + $0x170] sm:$0xff]
      %v231 = vld [vmem:[%s170 + $0x178] sm:$0xff]
      %v232 = vld [vmem:[%s170 + $0x180] sm:$0xff]
      %v233 = vld [vmem:[%s170 + $0x188] sm:$0xff]
      %v234 = vld [vmem:[%s170 + $0x190] sm:$0xff]
      %v235 = vld [vmem:[%s170 + $0x198] sm:$0xff]
      %v236 = vld [vmem:[%s170 + $0x1a0] sm:$0xff]
      %v237 = vld [vmem:[%s170 + $0x1a8] sm:$0xff]
      %v238 = vld [vmem:[%s170 + $0x1b0] sm:$0xff]
      %v239 = vld [vmem:[%s170 + $0x1b8] sm:$0xff]
      %v240 = vld [vmem:[%s170 + $0x1c0] sm:$0xff]
      %v241 = vld [vmem:[%s170 + $0x1c8] sm:$0xff]
      %v242 = vld [vmem:[%s170 + $0x1d0] sm:$0xff]
      %v243 = vld [vmem:[%s170 + $0x1d8] sm:$0xff]
      %v244 = vld [vmem:[%s170 + $0x1e0] sm:$0xff]
      %v245 = vld [vmem:[%s170 + $0x1e8] sm:$0xff]
      %v246 = vld [vmem:[%s170 + $0x1f0] sm:$0xff]
      %v247 = vld [vmem:[%s170 + $0x1f8] sm:$0xff]
      %v248 = vld [vmem:[%s176] sm:$0xff]
      %v249 = vld [vmem:[%s176 + $0x8] sm:$0xff]
      %v250 = vld [vmem:[%s176 + $0x10] sm:$0xff]
      %v251 = vld [vmem:[%s176 + $0x18] sm:$0xff]
      %v252 = vld [vmem:[%s176 + $0x20] sm:$0xff]
      %v253 = vld [vmem:[%s176 + $0x28] sm:$0xff]
      %v254 = vld [vmem:[%s176 + $0x30] sm:$0xff]
      %v255 = vld [vmem:[%s176 + $0x38] sm:$0xff]
      %v256 = vld [vmem:[%s176 + $0x40] sm:$0xff]
      %v257 = vld [vmem:[%s176 + $0x48] sm:$0xff]
      %v258 = vld [vmem:[%s176 + $0x50] sm:$0xff]
      %v259 = vld [vmem:[%s176 + $0x58] sm:$0xff]
      %v260 = vld [vmem:[%s176 + $0x60] sm:$0xff]
      %v261 = vld [vmem:[%s176 + $0x68] sm:$0xff]
      %v262 = vld [vmem:[%s176 + $0x70] sm:$0xff]
      %v263 = vld [vmem:[%s176 + $0x78] sm:$0xff]
      %v264 = vld [vmem:[%s176 + $0x80] sm:$0xff]
      %v265 = vld [vmem:[%s176 + $0x88] sm:$0xff]
      %v266 = vld [vmem:[%s176 + $0x90] sm:$0xff]
      %v267 = vld [vmem:[%s176 + $0x98] sm:$0xff]
      %v268 = vld [vmem:[%s176 + $0xa0] sm:$0xff]
      %v269 = vld [vmem:[%s176 + $0xa8] sm:$0xff]
      %v270 = vld [vmem:[%s176 + $0xb0] sm:$0xff]
      %v271 = vld [vmem:[%s176 + $0xb8] sm:$0xff]
      %v272 = vld [vmem:[%s176 + $0xc0] sm:$0xff]
      %v273 = vld [vmem:[%s176 + $0xc8] sm:$0xff]
      %v274 = vld [vmem:[%s176 + $0xd0] sm:$0xff]
      %v275 = vld [vmem:[%s176 + $0xd8] sm:$0xff]
      %v276 = vld [vmem:[%s176 + $0xe0] sm:$0xff]
      %v277 = vld [vmem:[%s176 + $0xe8] sm:$0xff]
      %v278 = vld [vmem:[%s176 + $0xf0] sm:$0xff]
      %v279 = vld [vmem:[%s176 + $0xf8] sm:$0xff]
      %v280 = vld [vmem:[%s176 + $0x100] sm:$0xff]
      %v281 = vld [vmem:[%s176 + $0x108] sm:$0xff]
      %v282 = vld [vmem:[%s176 + $0x110] sm:$0xff]
      %v283 = vld [vmem:[%s176 + $0x118] sm:$0xff]
      %v284 = vld [vmem:[%s176 + $0x120] sm:$0xff]
      %v285 = vld [vmem:[%s176 + $0x128] sm:$0xff]
      %v286 = vld [vmem:[%s176 + $0x130] sm:$0xff]
      %v287 = vld [vmem:[%s176 + $0x138] sm:$0xff]
      %v288 = vld [vmem:[%s176 + $0x140] sm:$0xff]
      %v289 = vld [vmem:[%s176 + $0x148] sm:$0xff]
      %v290 = vld [vmem:[%s176 + $0x150] sm:$0xff]
      %v291 = vld [vmem:[%s176 + $0x158] sm:$0xff]
      %v292 = vld [vmem:[%s176 + $0x160] sm:$0xff]
      %v293 = vld [vmem:[%s176 + $0x168] sm:$0xff]
      %v294 = vld [vmem:[%s176 + $0x170] sm:$0xff]
      %v295 = vld [vmem:[%s176 + $0x178] sm:$0xff]
      %v296 = vld [vmem:[%s176 + $0x180] sm:$0xff]
      %v297 = vld [vmem:[%s176 + $0x188] sm:$0xff]
      %v298 = vld [vmem:[%s176 + $0x190] sm:$0xff]
      %v299 = vld [vmem:[%s176 + $0x198] sm:$0xff]
      %v300 = vld [vmem:[%s176 + $0x1a0] sm:$0xff]
      %v301 = vld [vmem:[%s176 + $0x1a8] sm:$0xff]
      %v302 = vld [vmem:[%s176 + $0x1b0] sm:$0xff]
      %v303 = vld [vmem:[%s176 + $0x1b8] sm:$0xff]
      %v304 = vld [vmem:[%s176 + $0x1c0] sm:$0xff]
      %v305 = vld [vmem:[%s176 + $0x1c8] sm:$0xff]
      %v306 = vld [vmem:[%s176 + $0x1d0] sm:$0xff]
      %v307 = vld [vmem:[%s176 + $0x1d8] sm:$0xff]
      %v308 = vld [vmem:[%s176 + $0x1e0] sm:$0xff]
      %v309 = vld [vmem:[%s176 + $0x1e8] sm:$0xff]
      %v310 = vld [vmem:[%s176 + $0x1f0] sm:$0xff]
      %v311 = vld [vmem:[%s176 + $0x1f8] sm:$0xff]
      %313 = vset.pattern.permute.xlu0 0
      %314 = vperm.xlu0 %313, %v248
      %v315 = vpop.permute.xlu0 %314
      %318 = vset.pattern.permute.xlu0 0
      %319 = vperm.xlu0 %318, %v249
      %v320 = vpop.permute.xlu0 %319
      %323 = vset.pattern.permute.xlu0 0
      %324 = vperm.xlu0 %323, %v250
      %v325 = vpop.permute.xlu0 %324
      %328 = vset.pattern.permute.xlu0 0
      %329 = vperm.xlu0 %328, %v251
      %v330 = vpop.permute.xlu0 %329
      %333 = vset.pattern.permute.xlu0 0
      %334 = vperm.xlu0 %333, %v252
      %v335 = vpop.permute.xlu0 %334
      %338 = vset.pattern.permute.xlu0 0
      %339 = vperm.xlu0 %338, %v253
      %v340 = vpop.permute.xlu0 %339
      %343 = vset.pattern.permute.xlu0 0
      %344 = vperm.xlu0 %343, %v254
      %v345 = vpop.permute.xlu0 %344
      %348 = vset.pattern.permute.xlu0 0
      %349 = vperm.xlu0 %348, %v255
      %v350 = vpop.permute.xlu0 %349
      %353 = vset.pattern.permute.xlu0 0
      %354 = vperm.xlu0 %353, %v256
      %v355 = vpop.permute.xlu0 %354
      %358 = vset.pattern.permute.xlu0 0
      %359 = vperm.xlu0 %358, %v257
      %v360 = vpop.permute.xlu0 %359
      %363 = vset.pattern.permute.xlu0 0
      %364 = vperm.xlu0 %363, %v258
      %v365 = vpop.permute.xlu0 %364
      %368 = vset.pattern.permute.xlu0 0
      %369 = vperm.xlu0 %368, %v259
      %v370 = vpop.permute.xlu0 %369
      %373 = vset.pattern.permute.xlu0 0
      %374 = vperm.xlu0 %373, %v260
      %v375 = vpop.permute.xlu0 %374
      %378 = vset.pattern.permute.xlu0 0
      %379 = vperm.xlu0 %378, %v261
      %v380 = vpop.permute.xlu0 %379
      %383 = vset.pattern.permute.xlu0 0
      %384 = vperm.xlu0 %383, %v262
      %v385 = vpop.permute.xlu0 %384
      %388 = vset.pattern.permute.xlu0 0
      %389 = vperm.xlu0 %388, %v263
      %v390 = vpop.permute.xlu0 %389
      %393 = vset.pattern.permute.xlu0 0
      %394 = vperm.xlu0 %393, %v264
      %v395 = vpop.permute.xlu0 %394
      %398 = vset.pattern.permute.xlu0 0
      %399 = vperm.xlu0 %398, %v265
      %v400 = vpop.permute.xlu0 %399
      %403 = vset.pattern.permute.xlu0 0
      %404 = vperm.xlu0 %403, %v266
      %v405 = vpop.permute.xlu0 %404
      %408 = vset.pattern.permute.xlu0 0
      %409 = vperm.xlu0 %408, %v267
      %v410 = vpop.permute.xlu0 %409
      %413 = vset.pattern.permute.xlu0 0
      %414 = vperm.xlu0 %413, %v268
      %v415 = vpop.permute.xlu0 %414
      %418 = vset.pattern.permute.xlu0 0
      %419 = vperm.xlu0 %418, %v269
      %v420 = vpop.permute.xlu0 %419
      %423 = vset.pattern.permute.xlu0 0
      %424 = vperm.xlu0 %423, %v270
      %v425 = vpop.permute.xlu0 %424
      %428 = vset.pattern.permute.xlu0 0
      %429 = vperm.xlu0 %428, %v271
      %v430 = vpop.permute.xlu0 %429
      %433 = vset.pattern.permute.xlu0 0
      %434 = vperm.xlu0 %433, %v272
      %v435 = vpop.permute.xlu0 %434
      %438 = vset.pattern.permute.xlu0 0
      %439 = vperm.xlu0 %438, %v273
      %v440 = vpop.permute.xlu0 %439
      %443 = vset.pattern.permute.xlu0 0
      %444 = vperm.xlu0 %443, %v274
      %v445 = vpop.permute.xlu0 %444
      %448 = vset.pattern.permute.xlu0 0
      %449 = vperm.xlu0 %448, %v275
      %v450 = vpop.permute.xlu0 %449
      %453 = vset.pattern.permute.xlu0 0
      %454 = vperm.xlu0 %453, %v276
      %v455 = vpop.permute.xlu0 %454
      %458 = vset.pattern.permute.xlu0 0
      %459 = vperm.xlu0 %458, %v277
      %v460 = vpop.permute.xlu0 %459
      %463 = vset.pattern.permute.xlu0 0
      %464 = vperm.xlu0 %463, %v278
      %v465 = vpop.permute.xlu0 %464
      %468 = vset.pattern.permute.xlu0 0
      %469 = vperm.xlu0 %468, %v279
      %v470 = vpop.permute.xlu0 %469
      %473 = vset.pattern.permute.xlu0 0
      %474 = vperm.xlu0 %473, %v280
      %v475 = vpop.permute.xlu0 %474
      %478 = vset.pattern.permute.xlu0 0
      %479 = vperm.xlu0 %478, %v281
      %v480 = vpop.permute.xlu0 %479
      %483 = vset.pattern.permute.xlu0 0
      %484 = vperm.xlu0 %483, %v282
      %v485 = vpop.permute.xlu0 %484
      %488 = vset.pattern.permute.xlu0 0
      %489 = vperm.xlu0 %488, %v283
      %v490 = vpop.permute.xlu0 %489
      %493 = vset.pattern.permute.xlu0 0
      %494 = vperm.xlu0 %493, %v284
      %v495 = vpop.permute.xlu0 %494
      %498 = vset.pattern.permute.xlu0 0
      %499 = vperm.xlu0 %498, %v285
      %v500 = vpop.permute.xlu0 %499
      %503 = vset.pattern.permute.xlu0 0
      %504 = vperm.xlu0 %503, %v286
      %v505 = vpop.permute.xlu0 %504
      %508 = vset.pattern.permute.xlu0 0
      %509 = vperm.xlu0 %508, %v287
      %v510 = vpop.permute.xlu0 %509
      %513 = vset.pattern.permute.xlu0 0
      %514 = vperm.xlu0 %513, %v288
      %v515 = vpop.permute.xlu0 %514
      %518 = vset.pattern.permute.xlu0 0
      %519 = vperm.xlu0 %518, %v289
      %v520 = vpop.permute.xlu0 %519
      %523 = vset.pattern.permute.xlu0 0
      %524 = vperm.xlu0 %523, %v290
      %v525 = vpop.permute.xlu0 %524
      %528 = vset.pattern.permute.xlu0 0
      %529 = vperm.xlu0 %528, %v291
      %v530 = vpop.permute.xlu0 %529
      %533 = vset.pattern.permute.xlu0 0
      %534 = vperm.xlu0 %533, %v292
      %v535 = vpop.permute.xlu0 %534
      %538 = vset.pattern.permute.xlu0 0
      %539 = vperm.xlu0 %538, %v293
      %v540 = vpop.permute.xlu0 %539
      %543 = vset.pattern.permute.xlu0 0
      %544 = vperm.xlu0 %543, %v294
      %v545 = vpop.permute.xlu0 %544
      %548 = vset.pattern.permute.xlu0 0
      %549 = vperm.xlu0 %548, %v295
      %v550 = vpop.permute.xlu0 %549
      %553 = vset.pattern.permute.xlu0 0
      %554 = vperm.xlu0 %553, %v296
      %v555 = vpop.permute.xlu0 %554
      %558 = vset.pattern.permute.xlu0 0
      %559 = vperm.xlu0 %558, %v297
      %v560 = vpop.permute.xlu0 %559
      %563 = vset.pattern.permute.xlu0 0
      %564 = vperm.xlu0 %563, %v298
      %v565 = vpop.permute.xlu0 %564
      %568 = vset.pattern.permute.xlu0 0
      %569 = vperm.xlu0 %568, %v299
      %v570 = vpop.permute.xlu0 %569
      %573 = vset.pattern.permute.xlu0 0
      %574 = vperm.xlu0 %573, %v300
      %v575 = vpop.permute.xlu0 %574
      %578 = vset.pattern.permute.xlu0 0
      %579 = vperm.xlu0 %578, %v301
      %v580 = vpop.permute.xlu0 %579
      %583 = vset.pattern.permute.xlu0 0
      %584 = vperm.xlu0 %583, %v302
      %v585 = vpop.permute.xlu0 %584
      %588 = vset.pattern.permute.xlu0 0
      %589 = vperm.xlu0 %588, %v303
      %v590 = vpop.permute.xlu0 %589
      %593 = vset.pattern.permute.xlu0 0
      %594 = vperm.xlu0 %593, %v304
      %v595 = vpop.permute.xlu0 %594
      %598 = vset.pattern.permute.xlu0 0
      %599 = vperm.xlu0 %598, %v305
      %v600 = vpop.permute.xlu0 %599
      %603 = vset.pattern.permute.xlu0 0
      %604 = vperm.xlu0 %603, %v306
      %v605 = vpop.permute.xlu0 %604
      %608 = vset.pattern.permute.xlu0 0
      %609 = vperm.xlu0 %608, %v307
      %v610 = vpop.permute.xlu0 %609
      %613 = vset.pattern.permute.xlu0 0
      %614 = vperm.xlu0 %613, %v308
      %v615 = vpop.permute.xlu0 %614
      %618 = vset.pattern.permute.xlu0 0
      %619 = vperm.xlu0 %618, %v309
      %v620 = vpop.permute.xlu0 %619
      %623 = vset.pattern.permute.xlu0 0
      %624 = vperm.xlu0 %623, %v310
      %v625 = vpop.permute.xlu0 %624
      %628 = vset.pattern.permute.xlu0 0
      %629 = vperm.xlu0 %628, %v311
      %v630 = vpop.permute.xlu0 %629
      %v632 = vmul.f32 %v184, %v315
      %v633 = vmul.f32 %v185, %v320
      %v634 = vmul.f32 %v186, %v325
      %v635 = vmul.f32 %v187, %v330
      %v636 = vmul.f32 %v188, %v335
      %v637 = vmul.f32 %v189, %v340
      %v638 = vmul.f32 %v190, %v345
      %v639 = vmul.f32 %v191, %v350
      %v640 = vmul.f32 %v192, %v355
      %v641 = vmul.f32 %v193, %v360
      %v642 = vmul.f32 %v194, %v365
      %v643 = vmul.f32 %v195, %v370
      %v644 = vmul.f32 %v196, %v375
      %v645 = vmul.f32 %v197, %v380
      %v646 = vmul.f32 %v198, %v385
      %v647 = vmul.f32 %v199, %v390
      %v648 = vmul.f32 %v200, %v395
      %v649 = vmul.f32 %v201, %v400
      %v650 = vmul.f32 %v202, %v405
      %v651 = vmul.f32 %v203, %v410
      %v652 = vmul.f32 %v204, %v415
      %v653 = vmul.f32 %v205, %v420
      %v654 = vmul.f32 %v206, %v425
      %v655 = vmul.f32 %v207, %v430
      %v656 = vmul.f32 %v208, %v435
      %v657 = vmul.f32 %v209, %v440
      %v658 = vmul.f32 %v210, %v445
      %v659 = vmul.f32 %v211, %v450
      %v660 = vmul.f32 %v212, %v455
      %v661 = vmul.f32 %v213, %v460
      %v662 = vmul.f32 %v214, %v465
      %v663 = vmul.f32 %v215, %v470
      %v664 = vmul.f32 %v216, %v475
      %v665 = vmul.f32 %v217, %v480
      %v666 = vmul.f32 %v218, %v485
      %v667 = vmul.f32 %v219, %v490
      %v668 = vmul.f32 %v220, %v495
      %v669 = vmul.f32 %v221, %v500
      %v670 = vmul.f32 %v222, %v505
      %v671 = vmul.f32 %v223, %v510
      %v672 = vmul.f32 %v224, %v515
      %v673 = vmul.f32 %v225, %v520
      %v674 = vmul.f32 %v226, %v525
      %v675 = vmul.f32 %v227, %v530
      %v676 = vmul.f32 %v228, %v535
      %v677 = vmul.f32 %v229, %v540
      %v678 = vmul.f32 %v230, %v545
      %v679 = vmul.f32 %v231, %v550
      %v680 = vmul.f32 %v232, %v555
      %v681 = vmul.f32 %v233, %v560
      %v682 = vmul.f32 %v234, %v565
      %v683 = vmul.f32 %v235, %v570
      %v684 = vmul.f32 %v236, %v575
      %v685 = vmul.f32 %v237, %v580
      %v686 = vmul.f32 %v238, %v585
      %v687 = vmul.f32 %v239, %v590
      %v688 = vmul.f32 %v240, %v595
      %v689 = vmul.f32 %v241, %v600
      %v690 = vmul.f32 %v242, %v605
      %v691 = vmul.f32 %v243, %v610
      %v692 = vmul.f32 %v244, %v615
      %v693 = vmul.f32 %v245, %v620
      %v694 = vmul.f32 %v246, %v625
      %v695 = vmul.f32 %v247, %v630
      %v696 = vld [vmem:[%s2] sm:$0x1]
      %v697 = vadd.f32 %v632, %v633
      %v698 = vadd.f32 %v697, %v634
      %v699 = vadd.f32 %v698, %v635
      %v700 = vadd.f32 %v699, %v636
      %v701 = vadd.f32 %v700, %v637
      %v702 = vadd.f32 %v701, %v638
      %v703 = vadd.f32 %v702, %v639
      %v704 = vadd.f32 %v703, %v640
      %v705 = vadd.f32 %v704, %v641
      %v706 = vadd.f32 %v705, %v642
      %v707 = vadd.f32 %v706, %v643
      %v708 = vadd.f32 %v707, %v644
      %v709 = vadd.f32 %v708, %v645
      %v710 = vadd.f32 %v709, %v646
      %v711 = vadd.f32 %v710, %v647
      %v712 = vadd.f32 %v711, %v648
      %v713 = vadd.f32 %v712, %v649
      %v714 = vadd.f32 %v713, %v650
      %v715 = vadd.f32 %v714, %v651
      %v716 = vadd.f32 %v715, %v652
      %v717 = vadd.f32 %v716, %v653
      %v718 = vadd.f32 %v717, %v654
      %v719 = vadd.f32 %v718, %v655
      %v720 = vadd.f32 %v719, %v656
      %v721 = vadd.f32 %v720, %v657
      %v722 = vadd.f32 %v721, %v658
      %v723 = vadd.f32 %v722, %v659
      %v724 = vadd.f32 %v723, %v660
      %v725 = vadd.f32 %v724, %v661
      %v726 = vadd.f32 %v725, %v662
      %v727 = vadd.f32 %v726, %v663
      %v728 = vadd.f32 %v727, %v664
      %v729 = vadd.f32 %v728, %v665
      %v730 = vadd.f32 %v729, %v666
      %v731 = vadd.f32 %v730, %v667
      %v732 = vadd.f32 %v731, %v668
      %v733 = vadd.f32 %v732, %v669
      %v734 = vadd.f32 %v733, %v670
      %v735 = vadd.f32 %v734, %v671
      %v736 = vadd.f32 %v735, %v672
      %v737 = vadd.f32 %v736, %v673
      %v738 = vadd.f32 %v737, %v674
      %v739 = vadd.f32 %v738, %v675
      %v740 = vadd.f32 %v739, %v676
      %v741 = vadd.f32 %v740, %v677
      %v742 = vadd.f32 %v741, %v678
      %v743 = vadd.f32 %v742, %v679
      %v744 = vadd.f32 %v743, %v680
      %v745 = vadd.f32 %v744, %v681
      %v746 = vadd.f32 %v745, %v682
      %v747 = vadd.f32 %v746, %v683
      %v748 = vadd.f32 %v747, %v684
      %v749 = vadd.f32 %v748, %v685
      %v750 = vadd.f32 %v749, %v686
      %v751 = vadd.f32 %v750, %v687
      %v752 = vadd.f32 %v751, %v688
      %v753 = vadd.f32 %v752, %v689
      %v754 = vadd.f32 %v753, %v690
      %v755 = vadd.f32 %v754, %v691
      %v756 = vadd.f32 %v755, %v692
      %v757 = vadd.f32 %v756, %v693
      %v758 = vadd.f32 %v757, %v694
      %v759 = vadd.f32 %v758, %v695
      %v760 = vrot.slane %v759, 4
      %v761 = vadd.f32 %v759, %v760
      %v762 = vrot.slane %v761, 2
      %v763 = vadd.f32 %v761, %v762
      %v764 = vrot.slane %v763, 1
      %v765 = vadd.f32 %v763, %v764
      %v766 = vadd.f32 %v696, %v765
      %767 = vst [vmem:[%s2] sm:$0x1] %v766
      %v768 = vld [vmem:[%s3] sm:$0x1]
      %v769 = vld [vmem:[%s170] sm:$0xff]
      %v770 = vld [vmem:[%s170 + $0x8] sm:$0xff]
      %v771 = vld [vmem:[%s170 + $0x10] sm:$0xff]
      %v772 = vld [vmem:[%s170 + $0x18] sm:$0xff]
      %v773 = vld [vmem:[%s170 + $0x20] sm:$0xff]
      %v774 = vld [vmem:[%s170 + $0x28] sm:$0xff]
      %v775 = vld [vmem:[%s170 + $0x30] sm:$0xff]
      %v776 = vld [vmem:[%s170 + $0x38] sm:$0xff]
      %v777 = vld [vmem:[%s170 + $0x40] sm:$0xff]
      %v778 = vld [vmem:[%s170 + $0x48] sm:$0xff]
      %v779 = vld [vmem:[%s170 + $0x50] sm:$0xff]
      %v780 = vld [vmem:[%s170 + $0x58] sm:$0xff]
      %v781 = vld [vmem:[%s170 + $0x60] sm:$0xff]
      %v782 = vld [vmem:[%s170 + $0x68] sm:$0xff]
      %v783 = vld [vmem:[%s170 + $0x70] sm:$0xff]
      %v784 = vld [vmem:[%s170 + $0x78] sm:$0xff]
      %v785 = vld [vmem:[%s170 + $0x80] sm:$0xff]
      %v786 = vld [vmem:[%s170 + $0x88] sm:$0xff]
      %v787 = vld [vmem:[%s170 + $0x90] sm:$0xff]
      %v788 = vld [vmem:[%s170 + $0x98] sm:$0xff]
      %v789 = vld [vmem:[%s170 + $0xa0] sm:$0xff]
      %v790 = vld [vmem:[%s170 + $0xa8] sm:$0xff]
      %v791 = vld [vmem:[%s170 + $0xb0] sm:$0xff]
      %v792 = vld [vmem:[%s170 + $0xb8] sm:$0xff]
      %v793 = vld [vmem:[%s170 + $0xc0] sm:$0xff]
      %v794 = vld [vmem:[%s170 + $0xc8] sm:$0xff]
      %v795 = vld [vmem:[%s170 + $0xd0] sm:$0xff]
      %v796 = vld [vmem:[%s170 + $0xd8] sm:$0xff]
      %v797 = vld [vmem:[%s170 + $0xe0] sm:$0xff]
      %v798 = vld [vmem:[%s170 + $0xe8] sm:$0xff]
      %v799 = vld [vmem:[%s170 + $0xf0] sm:$0xff]
      %v800 = vld [vmem:[%s170 + $0xf8] sm:$0xff]
      %v801 = vld [vmem:[%s170 + $0x100] sm:$0xff]
      %v802 = vld [vmem:[%s170 + $0x108] sm:$0xff]
      %v803 = vld [vmem:[%s170 + $0x110] sm:$0xff]
      %v804 = vld [vmem:[%s170 + $0x118] sm:$0xff]
      %v805 = vld [vmem:[%s170 + $0x120] sm:$0xff]
      %v806 = vld [vmem:[%s170 + $0x128] sm:$0xff]
      %v807 = vld [vmem:[%s170 + $0x130] sm:$0xff]
      %v808 = vld [vmem:[%s170 + $0x138] sm:$0xff]
      %v809 = vld [vmem:[%s170 + $0x140] sm:$0xff]
      %v810 = vld [vmem:[%s170 + $0x148] sm:$0xff]
      %v811 = vld [vmem:[%s170 + $0x150] sm:$0xff]
      %v812 = vld [vmem:[%s170 + $0x158] sm:$0xff]
      %v813 = vld [vmem:[%s170 + $0x160] sm:$0xff]
      %v814 = vld [vmem:[%s170 + $0x168] sm:$0xff]
      %v815 = vld [vmem:[%s170 + $0x170] sm:$0xff]
      %v816 = vld [vmem:[%s170 + $0x178] sm:$0xff]
      %v817 = vld [vmem:[%s170 + $0x180] sm:$0xff]
      %v818 = vld [vmem:[%s170 + $0x188] sm:$0xff]
      %v819 = vld [vmem:[%s170 + $0x190] sm:$0xff]
      %v820 = vld [vmem:[%s170 + $0x198] sm:$0xff]
      %v821 = vld [vmem:[%s170 + $0x1a0] sm:$0xff]
      %v822 = vld [vmem:[%s170 + $0x1a8] sm:$0xff]
      %v823 = vld [vmem:[%s170 + $0x1b0] sm:$0xff]
      %v824 = vld [vmem:[%s170 + $0x1b8] sm:$0xff]
      %v825 = vld [vmem:[%s170 + $0x1c0] sm:$0xff]
      %v826 = vld [vmem:[%s170 + $0x1c8] sm:$0xff]
      %v827 = vld [vmem:[%s170 + $0x1d0] sm:$0xff]
      %v828 = vld [vmem:[%s170 + $0x1d8] sm:$0xff]
      %v829 = vld [vmem:[%s170 + $0x1e0] sm:$0xff]
      %v830 = vld [vmem:[%s170 + $0x1e8] sm:$0xff]
      %v831 = vld [vmem:[%s170 + $0x1f0] sm:$0xff]
      %v832 = vld [vmem:[%s170 + $0x1f8] sm:$0xff]
      %v833 = vmul.f32 %v632, %v769
      %v834 = vmul.f32 %v633, %v770
      %v835 = vmul.f32 %v634, %v771
      %v836 = vmul.f32 %v635, %v772
      %v837 = vmul.f32 %v636, %v773
      %v838 = vmul.f32 %v637, %v774
      %v839 = vmul.f32 %v638, %v775
      %v840 = vmul.f32 %v639, %v776
      %v841 = vmul.f32 %v640, %v777
      %v842 = vmul.f32 %v641, %v778
      %v843 = vmul.f32 %v642, %v779
      %v844 = vmul.f32 %v643, %v780
      %v845 = vmul.f32 %v644, %v781
      %v846 = vmul.f32 %v645, %v782
      %v847 = vmul.f32 %v646, %v783
      %v848 = vmul.f32 %v647, %v784
      %v849 = vmul.f32 %v648, %v785
      %v850 = vmul.f32 %v649, %v786
      %v851 = vmul.f32 %v650, %v787
      %v852 = vmul.f32 %v651, %v788
      %v853 = vmul.f32 %v652, %v789
      %v854 = vmul.f32 %v653, %v790
      %v855 = vmul.f32 %v654, %v791
      %v856 = vmul.f32 %v655, %v792
      %v857 = vmul.f32 %v656, %v793
      %v858 = vmul.f32 %v657, %v794
      %v859 = vmul.f32 %v658, %v795
      %v860 = vmul.f32 %v659, %v796
      %v861 = vmul.f32 %v660, %v797
      %v862 = vmul.f32 %v661, %v798
      %v863 = vmul.f32 %v662, %v799
      %v864 = vmul.f32 %v663, %v800
      %v865 = vmul.f32 %v664, %v801
      %v866 = vmul.f32 %v665, %v802
      %v867 = vmul.f32 %v666, %v803
      %v868 = vmul.f32 %v667, %v804
      %v869 = vmul.f32 %v668, %v805
      %v870 = vmul.f32 %v669, %v806
      %v871 = vmul.f32 %v670, %v807
      %v872 = vmul.f32 %v671, %v808
      %v873 = vmul.f32 %v672, %v809
      %v874 = vmul.f32 %v673, %v810
      %v875 = vmul.f32 %v674, %v811
      %v876 = vmul.f32 %v675, %v812
      %v877 = vmul.f32 %v676, %v813
      %v878 = vmul.f32 %v677, %v814
      %v879 = vmul.f32 %v678, %v815
      %v880 = vmul.f32 %v679, %v816
      %v881 = vmul.f32 %v680, %v817
      %v882 = vmul.f32 %v681, %v818
      %v883 = vmul.f32 %v682, %v819
      %v884 = vmul.f32 %v683, %v820
      %v885 = vmul.f32 %v684, %v821
      %v886 = vmul.f32 %v685, %v822
      %v887 = vmul.f32 %v686, %v823
      %v888 = vmul.f32 %v687, %v824
      %v889 = vmul.f32 %v688, %v825
      %v890 = vmul.f32 %v689, %v826
      %v891 = vmul.f32 %v690, %v827
      %v892 = vmul.f32 %v691, %v828
      %v893 = vmul.f32 %v692, %v829
      %v894 = vmul.f32 %v693, %v830
      %v895 = vmul.f32 %v694, %v831
      %v896 = vmul.f32 %v695, %v832
      %v897 = vadd.f32 %v833, %v834
      %v898 = vadd.f32 %v897, %v835
      %v899 = vadd.f32 %v898, %v836
      %v900 = vadd.f32 %v899, %v837
      %v901 = vadd.f32 %v900, %v838
      %v902 = vadd.f32 %v901, %v839
      %v903 = vadd.f32 %v902, %v840
      %v904 = vadd.f32 %v903, %v841
      %v905 = vadd.f32 %v904, %v842
      %v906 = vadd.f32 %v905, %v843
      %v907 = vadd.f32 %v906, %v844
      %v908 = vadd.f32 %v907, %v845
      %v909 = vadd.f32 %v908, %v846
      %v910 = vadd.f32 %v909, %v847
      %v911 = vadd.f32 %v910, %v848
      %v912 = vadd.f32 %v911, %v849
      %v913 = vadd.f32 %v912, %v850
      %v914 = vadd.f32 %v913, %v851
      %v915 = vadd.f32 %v914, %v852
      %v916 = vadd.f32 %v915, %v853
      %v917 = vadd.f32 %v916, %v854
      %v918 = vadd.f32 %v917, %v855
      %v919 = vadd.f32 %v918, %v856
      %v920 = vadd.f32 %v919, %v857
      %v921 = vadd.f32 %v920, %v858
      %v922 = vadd.f32 %v921, %v859
      %v923 = vadd.f32 %v922, %v860
      %v924 = vadd.f32 %v923, %v861
      %v925 = vadd.f32 %v924, %v862
      %v926 = vadd.f32 %v925, %v863
      %v927 = vadd.f32 %v926, %v864
      %v928 = vadd.f32 %v927, %v865
      %v929 = vadd.f32 %v928, %v866
      %v930 = vadd.f32 %v929, %v867
      %v931 = vadd.f32 %v930, %v868
      %v932 = vadd.f32 %v931, %v869
      %v933 = vadd.f32 %v932, %v870
      %v934 = vadd.f32 %v933, %v871
      %v935 = vadd.f32 %v934, %v872
      %v936 = vadd.f32 %v935, %v873
      %v937 = vadd.f32 %v936, %v874
      %v938 = vadd.f32 %v937, %v875
      %v939 = vadd.f32 %v938, %v876
      %v940 = vadd.f32 %v939, %v877
      %v941 = vadd.f32 %v940, %v878
      %v942 = vadd.f32 %v941, %v879
      %v943 = vadd.f32 %v942, %v880
      %v944 = vadd.f32 %v943, %v881
      %v945 = vadd.f32 %v944, %v882
      %v946 = vadd.f32 %v945, %v883
      %v947 = vadd.f32 %v946, %v884
      %v948 = vadd.f32 %v947, %v885
      %v949 = vadd.f32 %v948, %v886
      %v950 = vadd.f32 %v949, %v887
      %v951 = vadd.f32 %v950, %v888
      %v952 = vadd.f32 %v951, %v889
      %v953 = vadd.f32 %v952, %v890
      %v954 = vadd.f32 %v953, %v891
      %v955 = vadd.f32 %v954, %v892
      %v956 = vadd.f32 %v955, %v893
      %v957 = vadd.f32 %v956, %v894
      %v958 = vadd.f32 %v957, %v895
      %v959 = vadd.f32 %v958, %v896
      %v960 = vrot.slane %v959, 4
      %v961 = vadd.f32 %v959, %v960
      %v962 = vrot.slane %v961, 2
      %v963 = vadd.f32 %v961, %v962
      %v964 = vrot.slane %v963, 1
      %v965 = vadd.f32 %v963, %v964
      %v966 = vadd.f32 %v768, %v965
      %967 = vst [vmem:[%s3] sm:$0x1] %v966
      // Predicated region
      $region33: #{gat_forward.10} parent=27 // pred_check
        %p968 = pneg %p80
      $region34: #{gat_forward.10} parent=27 // pred_check_branch
        %970 = sbr.rel (%p968) target = $region36
      $region35: #{gat_forward.10} parent=27 // pred_region
        _
      $region36: #{gat_forward.10} parent=27 // pred_fallthru
        _
      // Predicated region
      $region37: #{gat_forward.10} parent=27 // pred_check
        %p971 = pneg %p101
      $region38: #{gat_forward.10} parent=27 // pred_check_branch
        %973 = sbr.rel (%p971) target = $region40
      $region39: #{gat_forward.10} parent=27 // pred_region
        _
      $region40: #{gat_forward.10} parent=27 // pred_fallthru
        _
      // Predicated region
      $region41: #{gat_forward.10} parent=27 // pred_check
        %p974 = pneg %p80
      $region42: #{gat_forward.10} parent=27 // pred_check_branch
        %976 = sbr.rel (%p974) target = $region44
      $region43: #{gat_forward.10} parent=27 // pred_region
        _
      $region44: #{gat_forward.10} parent=27 // pred_fallthru
        _
      // Predicated region
      $region45: #{gat_forward.10} parent=27 // pred_check
        %p977 = pneg %p101
      $region46: #{gat_forward.10} parent=27 // pred_check_branch
        %979 = sbr.rel (%p977) target = $region48
      $region47: #{gat_forward.10} parent=27 // pred_region
        _
      $region48: #{gat_forward.10} parent=27 // pred_fallthru
        _
    $region28: #{gat_forward.10} parent=5 // pred_fallthru
      _
    %p980 = scmp.le.s32.totalorder 2, %s10
    // Predicated region
    $region49: #{gat_forward.10} parent=5 // pred_check
      %p981 = pneg %p980
    $region50: #{gat_forward.10} parent=5 // pred_check_branch
      %983 = sbr.rel (%p981) target = $region52
    $region51: #{gat_forward.10} parent=5 // pred_region
      %s984 = ssub.s32 %s10, 2
    $region52: #{gat_forward.10} parent=5 // pred_fallthru
      _
  $region6: #{gat_forward.10} parent=0 // loop_footer
    %s14 = sadd.s32 1, %s10
  $region7: #{gat_forward.10} parent=0 // loop_footer_branch
    %9 = sbr.rel target = $region3
  $region8: #{gat_forward.10} parent=0 // loop_exit
    _

// kernel: gat_forward.11
$region0: #{gat_forward.11}
  #allocation0 [shape = 'u32[]', space=smem, size = 0x4, offset = 0x4, fixed_abs, tag = 'smem constant byte address 0x4 - core index']
  #allocation1 [shape = 'u32[144,128]{1,0:T(1,128)}', space=vmem, size = 0x12000, scoped, tag = 'internal scratch']
  %s0 = inlined_call_operand.vmem [shape: f32[1024,128], index: 0, kind: input, shape index: {}]
  %s1 = inlined_call_operand.vmem [shape: f32[1,128], index: 1, kind: input, shape index: {}]
  %s2 = inlined_call_operand.vmem [shape: f32[1,128], index: 2, kind: input, shape index: {}]
  %s3 = inlined_call_operand.vmem [shape: f32[1024,128], index: 3, kind: output, shape index: {}]
  %s4 = sld [smem:[#allocation0]]
  $region45: #{gat_forward.11} parent=0
    _
  %s6 = ssub.s32 1, %s4
  %s7 = scalar_select 0, %s6, %s4
  loop: start=0, step=1, limit=4
  $region2: #{gat_forward.11} parent=0 // loop_pre_header
    _
  $region3: #{gat_forward.11} parent=0 // loop_header
    %s9 = sphi 0, %s13
    %p10 = scmp.ge.s32.totalorder %s9, 4
    %s19 = sphi 0, %s21
    %s22 = sphi 0, %s19
    %s23 = sphi 0, %s22
    %s39 = sphi 0, %s23
    %s43 = sphi 0, %s43
    %s45 = sphi 0, %s43
    %s46 = sphi 0, %s45
    %s60 = sphi 0, %s46
    %s64 = sphi 0, %s64
    %s66 = sphi 0, %s64
    %s67 = sphi 0, %s66
    %s81 = sphi 0, %s67
    %s87 = sphi 0, %s89
    %s90 = sphi 0, %s87
    %s91 = sphi 0, %s90
    %s107 = sphi 0, %s91
  $region4: #{gat_forward.11} parent=0 // loop_header_branch
    %12 = sbr.rel (%p10) target = $region8
  $region5: #{gat_forward.11} parent=0 // loop_body
    %s14 = ssub.s32 %s9, 1
    %s15 = ssub.s32 %s9, 2
    %s16 = sadd.s32 %s9, 1
    %s17 = ssub.s32 %s9, %s16
    %p18 = scmp.eq.s32.totalorder %s17, 0
    %s20 = sadd.s32 %s19, 1
    %s21 = scalar_select %p18, %s19, %s20
    %p24 = pneg %p18
    %p25 = scmp.eq.s32.totalorder %s9, 1
    %p26 = por %p24, %p25
    %p27 = scmp.ne.s32.totalorder %s19, %s22
    %p28 = scmp.eq.s32.totalorder %s9, 0
    %p29 = por %p27, %p28
    %p30 = scmp.ne.s32.totalorder %s19, %s22
    %p31 = scmp.eq.s32.totalorder %s14, 1
    %p32 = por %p30, %p31
    %p33 = scmp.ne.s32.totalorder %s22, %s23
    %p34 = scmp.eq.s32.totalorder %s14, 0
    %p35 = por %p33, %p34
    %p36 = scmp.ne.s32.totalorder %s22, %s23
    %p37 = scmp.eq.s32.totalorder %s15, 1
    %p38 = por %p36, %p37
    %p40 = scmp.ne.s32.totalorder %s23, %s39
    %p41 = scmp.eq.s32.totalorder %s15, 0
    %p42 = por %p40, %p41
    %s44 = sadd.s32 %s43, 1
    %p47 = scmp.eq.s32.totalorder %s9, 1
    %p48 = scmp.ne.s32.totalorder %s43, %s45
    %p49 = scmp.eq.s32.totalorder %s9, 0
    %p50 = por %p48, %p49
    %p51 = scmp.ne.s32.totalorder %s43, %s45
    %p52 = scmp.eq.s32.totalorder %s14, 1
    %p53 = por %p51, %p52
    %p54 = scmp.ne.s32.totalorder %s45, %s46
    %p55 = scmp.eq.s32.totalorder %s14, 0
    %p56 = por %p54, %p55
    %p57 = scmp.ne.s32.totalorder %s45, %s46
    %p58 = scmp.eq.s32.totalorder %s15, 1
    %p59 = por %p57, %p58
    %p61 = scmp.ne.s32.totalorder %s46, %s60
    %p62 = scmp.eq.s32.totalorder %s15, 0
    %p63 = por %p61, %p62
    %s65 = sadd.s32 %s64, 1
    %p68 = scmp.eq.s32.totalorder %s9, 1
    %p69 = scmp.ne.s32.totalorder %s64, %s66
    %p70 = scmp.eq.s32.totalorder %s9, 0
    %p71 = por %p69, %p70
    %p72 = scmp.ne.s32.totalorder %s64, %s66
    %p73 = scmp.eq.s32.totalorder %s14, 1
    %p74 = por %p72, %p73
    %p75 = scmp.ne.s32.totalorder %s66, %s67
    %p76 = scmp.eq.s32.totalorder %s14, 0
    %p77 = por %p75, %p76
    %p78 = scmp.ne.s32.totalorder %s66, %s67
    %p79 = scmp.eq.s32.totalorder %s15, 1
    %p80 = por %p78, %p79
    %p82 = scmp.ne.s32.totalorder %s67, %s81
    %p83 = scmp.eq.s32.totalorder %s15, 0
    %p84 = por %p82, %p83
    %s85 = ssub.s32 %s9, %s16
    %p86 = scmp.eq.s32.totalorder %s85, 0
    %s88 = sadd.s32 %s87, 1
    %s89 = scalar_select %p86, %s87, %s88
    %p92 = pneg %p86
    %p93 = scmp.eq.s32.totalorder %s9, 1
    %p94 = por %p92, %p93
    %p95 = scmp.ne.s32.totalorder %s87, %s90
    %p96 = scmp.eq.s32.totalorder %s9, 0
    %p97 = por %p95, %p96
    %p98 = scmp.ne.s32.totalorder %s87, %s90
    %p99 = scmp.eq.s32.totalorder %s14, 1
    %p100 = por %p98, %p99
    %p101 = scmp.ne.s32.totalorder %s90, %s91
    %p102 = scmp.eq.s32.totalorder %s14, 0
    %p103 = por %p101, %p102
    %p104 = scmp.ne.s32.totalorder %s90, %s91
    %p105 = scmp.eq.s32.totalorder %s15, 1
    %p106 = por %p104, %p105
    %p108 = scmp.ne.s32.totalorder %s91, %s107
    %p109 = scmp.eq.s32.totalorder %s15, 0
    %p110 = por %p108, %p109
    %p111 = scmp.le.s32.totalorder 1, %s9
    %p112 = scmp.lt.s32.totalorder %s9, 3
    %p113 = pnand %p111, %p112
    %p114 = pneg %p113
    // Predicated region
    $region9: #{gat_forward.11} parent=5 // pred_check
      _
    $region10: #{gat_forward.11} parent=5 // pred_check_branch
      %116 = sbr.rel (%p113) target = $region12
    $region11: #{gat_forward.11} parent=5 // pred_region
      %s117 = ssub.s32 %s9, 1
      // Predicated region
      $region13: #{gat_forward.11} parent=11 // pred_check
        %p118 = pneg %p56
      $region14: #{gat_forward.11} parent=11 // pred_check_branch
        %120 = sbr.rel (%p118) target = $region16
      $region15: #{gat_forward.11} parent=11 // pred_region
        _
      $region16: #{gat_forward.11} parent=11 // pred_fallthru
        _
      // Predicated region
      $region17: #{gat_forward.11} parent=11 // pred_check
        %p121 = pneg %p77
      $region18: #{gat_forward.11} parent=11 // pred_check_branch
        %123 = sbr.rel (%p121) target = $region20
      $region19: #{gat_forward.11} parent=11 // pred_region
        _
      $region20: #{gat_forward.11} parent=11 // pred_fallthru
        _
    $region12: #{gat_forward.11} parent=5 // pred_fallthru
      _
    %p124 = scmp.lt.s32.totalorder %s9, 2
    // Predicated region
    $region21: #{gat_forward.11} parent=5 // pred_check
      %p125 = pneg %p124
    $region22: #{gat_forward.11} parent=5 // pred_check_branch
      %127 = sbr.rel (%p125) target = $region24
    $region23: #{gat_forward.11} parent=5 // pred_region
      // Predicated region
      $region25: #{gat_forward.11} parent=23 // pred_check
        %p128 = pneg %p29
      $region26: #{gat_forward.11} parent=23 // pred_check_branch
        %130 = sbr.rel (%p128) target = $region28
      $region27: #{gat_forward.11} parent=23 // pred_region
        %s131 = smul.u32 64, %s9
        %p132 = scmp.lt.s32.totalorder %s131, 127
        %s133 = scalar_select %p132, %s131, 127
        %s134 = smul.addr %s133, 8
        %s135 = scalar_lea.vmem %s0, %s134
        %s136 = smul.u32 64, %s9
      $region28: #{gat_forward.11} parent=23 // pred_fallthru
        _
    $region24: #{gat_forward.11} parent=5 // pred_fallthru
      _
    %p137 = scmp.le.s32.totalorder 1, %s9
    %p138 = scmp.lt.s32.totalorder %s9, 3
    %p139 = pnand %p137, %p138
    %p140 = pneg %p139
    // Predicated region
    $region29: #{gat_forward.11} parent=5 // pred_check
      _
    $region30: #{gat_forward.11} parent=5 // pred_check_branch
      %142 = sbr.rel (%p139) target = $region32
    $region31: #{gat_forward.11} parent=5 // pred_region
      %s143 = ssub.s32 %s9, 1
      %s144 = smul.u32 64, %s14
      %p145 = scmp.lt.s32.totalorder %s144, 127
      %s146 = scalar_select %p145, %s144, 127
      %s147 = smul.addr %s146, 8
      %s148 = scalar_lea.vmem %s0, %s147
      %p149 = pneg %p35
      %p150 = pneg %p32
      %p151 = pneg %p56
      %p152 = pneg %p53
      %p153 = pneg %p77
      %p154 = pneg %p74
      %p155 = pneg %p103
      %p156 = pneg %p100
      %s157 = smul.u32 64, %s14
      %p158 = scmp.lt.s32.totalorder %s157, 127
      %s159 = scalar_select %p158, %s157, 127
      %s160 = smul.addr %s159, 8
      %s161 = scalar_lea.vmem %s3, %s160
      %s162 = smul.u32 64, %s14
      %p163 = scmp.lt.s32.totalorder %s162, 127
      %s164 = scalar_select %p163, %s162, 127
      %s165 = smul.addr %s164, 8
      %s166 = scalar_lea.vmem %s0, %s165
      %s167 = smul.u32 64, %s14
      %s168 = smul.u32 64, %s14
      %p169 = scmp.lt.s32.totalorder %s168, 127
      %s170 = scalar_select %p169, %s168, 127
      %s171 = smul.addr %s170, 8
      %s172 = scalar_lea.vmem %s3, %s171
      %s173 = smul.u32 64, %s14
      %v174 = vld [vmem:[%s166] sm:$0xff]
      %v175 = vld [vmem:[%s166 + $0x8] sm:$0xff]
      %v176 = vld [vmem:[%s166 + $0x10] sm:$0xff]
      %v177 = vld [vmem:[%s166 + $0x18] sm:$0xff]
      %v178 = vld [vmem:[%s166 + $0x20] sm:$0xff]
      %v179 = vld [vmem:[%s166 + $0x28] sm:$0xff]
      %v180 = vld [vmem:[%s166 + $0x30] sm:$0xff]
      %v181 = vld [vmem:[%s166 + $0x38] sm:$0xff]
      %v182 = vld [vmem:[%s166 + $0x40] sm:$0xff]
      %v183 = vld [vmem:[%s166 + $0x48] sm:$0xff]
      %v184 = vld [vmem:[%s166 + $0x50] sm:$0xff]
      %v185 = vld [vmem:[%s166 + $0x58] sm:$0xff]
      %v186 = vld [vmem:[%s166 + $0x60] sm:$0xff]
      %v187 = vld [vmem:[%s166 + $0x68] sm:$0xff]
      %v188 = vld [vmem:[%s166 + $0x70] sm:$0xff]
      %v189 = vld [vmem:[%s166 + $0x78] sm:$0xff]
      %v190 = vld [vmem:[%s166 + $0x80] sm:$0xff]
      %v191 = vld [vmem:[%s166 + $0x88] sm:$0xff]
      %v192 = vld [vmem:[%s166 + $0x90] sm:$0xff]
      %v193 = vld [vmem:[%s166 + $0x98] sm:$0xff]
      %v194 = vld [vmem:[%s166 + $0xa0] sm:$0xff]
      %v195 = vld [vmem:[%s166 + $0xa8] sm:$0xff]
      %v196 = vld [vmem:[%s166 + $0xb0] sm:$0xff]
      %v197 = vld [vmem:[%s166 + $0xb8] sm:$0xff]
      %v198 = vld [vmem:[%s166 + $0xc0] sm:$0xff]
      %v199 = vld [vmem:[%s166 + $0xc8] sm:$0xff]
      %v200 = vld [vmem:[%s166 + $0xd0] sm:$0xff]
      %v201 = vld [vmem:[%s166 + $0xd8] sm:$0xff]
      %v202 = vld [vmem:[%s166 + $0xe0] sm:$0xff]
      %v203 = vld [vmem:[%s166 + $0xe8] sm:$0xff]
      %v204 = vld [vmem:[%s166 + $0xf0] sm:$0xff]
      %v205 = vld [vmem:[%s166 + $0xf8] sm:$0xff]
      %v206 = vld [vmem:[%s166 + $0x100] sm:$0xff]
      %v207 = vld [vmem:[%s166 + $0x108] sm:$0xff]
      %v208 = vld [vmem:[%s166 + $0x110] sm:$0xff]
      %v209 = vld [vmem:[%s166 + $0x118] sm:$0xff]
      %v210 = vld [vmem:[%s166 + $0x120] sm:$0xff]
      %v211 = vld [vmem:[%s166 + $0x128] sm:$0xff]
      %v212 = vld [vmem:[%s166 + $0x130] sm:$0xff]
      %v213 = vld [vmem:[%s166 + $0x138] sm:$0xff]
      %v214 = vld [vmem:[%s166 + $0x140] sm:$0xff]
      %v215 = vld [vmem:[%s166 + $0x148] sm:$0xff]
      %v216 = vld [vmem:[%s166 + $0x150] sm:$0xff]
      %v217 = vld [vmem:[%s166 + $0x158] sm:$0xff]
      %v218 = vld [vmem:[%s166 + $0x160] sm:$0xff]
      %v219 = vld [vmem:[%s166 + $0x168] sm:$0xff]
      %v220 = vld [vmem:[%s166 + $0x170] sm:$0xff]
      %v221 = vld [vmem:[%s166 + $0x178] sm:$0xff]
      %v222 = vld [vmem:[%s166 + $0x180] sm:$0xff]
      %v223 = vld [vmem:[%s166 + $0x188] sm:$0xff]
      %v224 = vld [vmem:[%s166 + $0x190] sm:$0xff]
      %v225 = vld [vmem:[%s166 + $0x198] sm:$0xff]
      %v226 = vld [vmem:[%s166 + $0x1a0] sm:$0xff]
      %v227 = vld [vmem:[%s166 + $0x1a8] sm:$0xff]
      %v228 = vld [vmem:[%s166 + $0x1b0] sm:$0xff]
      %v229 = vld [vmem:[%s166 + $0x1b8] sm:$0xff]
      %v230 = vld [vmem:[%s166 + $0x1c0] sm:$0xff]
      %v231 = vld [vmem:[%s166 + $0x1c8] sm:$0xff]
      %v232 = vld [vmem:[%s166 + $0x1d0] sm:$0xff]
      %v233 = vld [vmem:[%s166 + $0x1d8] sm:$0xff]
      %v234 = vld [vmem:[%s166 + $0x1e0] sm:$0xff]
      %v235 = vld [vmem:[%s166 + $0x1e8] sm:$0xff]
      %v236 = vld [vmem:[%s166 + $0x1f0] sm:$0xff]
      %v237 = vld [vmem:[%s166 + $0x1f8] sm:$0xff]
      %v238 = vld [vmem:[%s1] sm:$0x1]
      %v240 = vlaneseq
      %v241 = vshrl.u32 %v240, 7
      %v242 = vsub.s32 0, %v241
      %v243 = vrot.slane %v238, %v242
      %v245 = vmul.f32 %v174, %v243
      %v246 = vmul.f32 %v175, %v243
      %v247 = vmul.f32 %v176, %v243
      %v248 = vmul.f32 %v177, %v243
      %v249 = vmul.f32 %v178, %v243
      %v250 = vmul.f32 %v179, %v243
      %v251 = vmul.f32 %v180, %v243
      %v252 = vmul.f32 %v181, %v243
      %v253 = vmul.f32 %v182, %v243
      %v254 = vmul.f32 %v183, %v243
      %v255 = vmul.f32 %v184, %v243
      %v256 = vmul.f32 %v185, %v243
      %v257 = vmul.f32 %v186, %v243
      %v258 = vmul.f32 %v187, %v243
      %v259 = vmul.f32 %v188, %v243
      %v260 = vmul.f32 %v189, %v243
      %v261 = vmul.f32 %v190, %v243
      %v262 = vmul.f32 %v191, %v243
      %v263 = vmul.f32 %v192, %v243
      %v264 = vmul.f32 %v193, %v243
      %v265 = vmul.f32 %v194, %v243
      %v266 = vmul.f32 %v195, %v243
      %v267 = vmul.f32 %v196, %v243
      %v268 = vmul.f32 %v197, %v243
      %v269 = vmul.f32 %v198, %v243
      %v270 = vmul.f32 %v199, %v243
      %v271 = vmul.f32 %v200, %v243
      %v272 = vmul.f32 %v201, %v243
      %v273 = vmul.f32 %v202, %v243
      %v274 = vmul.f32 %v203, %v243
      %v275 = vmul.f32 %v204, %v243
      %v276 = vmul.f32 %v205, %v243
      %v277 = vmul.f32 %v206, %v243
      %v278 = vmul.f32 %v207, %v243
      %v279 = vmul.f32 %v208, %v243
      %v280 = vmul.f32 %v209, %v243
      %v281 = vmul.f32 %v210, %v243
      %v282 = vmul.f32 %v211, %v243
      %v283 = vmul.f32 %v212, %v243
      %v284 = vmul.f32 %v213, %v243
      %v285 = vmul.f32 %v214, %v243
      %v286 = vmul.f32 %v215, %v243
      %v287 = vmul.f32 %v216, %v243
      %v288 = vmul.f32 %v217, %v243
      %v289 = vmul.f32 %v218, %v243
      %v290 = vmul.f32 %v219, %v243
      %v291 = vmul.f32 %v220, %v243
      %v292 = vmul.f32 %v221, %v243
      %v293 = vmul.f32 %v222, %v243
      %v294 = vmul.f32 %v223, %v243
      %v295 = vmul.f32 %v224, %v243
      %v296 = vmul.f32 %v225, %v243
      %v297 = vmul.f32 %v226, %v243
      %v298 = vmul.f32 %v227, %v243
      %v299 = vmul.f32 %v228, %v243
      %v300 = vmul.f32 %v229, %v243
      %v301 = vmul.f32 %v230, %v243
      %v302 = vmul.f32 %v231, %v243
      %v303 = vmul.f32 %v232, %v243
      %v304 = vmul.f32 %v233, %v243
      %v305 = vmul.f32 %v234, %v243
      %v306 = vmul.f32 %v235, %v243
      %v307 = vmul.f32 %v236, %v243
      %v308 = vmul.f32 %v237, %v243
      %v309 = vld [vmem:[%s2] sm:$0x1]
      %v311 = vlaneseq
      %v312 = vshrl.u32 %v311, 7
      %v313 = vsub.s32 0, %v312
      %v314 = vrot.slane %v309, %v313
      %v316 = vadd.f32 %v245, %v314
      %v317 = vadd.f32 %v246, %v314
      %v318 = vadd.f32 %v247, %v314
      %v319 = vadd.f32 %v248, %v314
      %v320 = vadd.f32 %v249, %v314
      %v321 = vadd.f32 %v250, %v314
      %v322 = vadd.f32 %v251, %v314
      %v323 = vadd.f32 %v252, %v314
      %v324 = vadd.f32 %v253, %v314
      %v325 = vadd.f32 %v254, %v314
      %v326 = vadd.f32 %v255, %v314
      %v327 = vadd.f32 %v256, %v314
      %v328 = vadd.f32 %v257, %v314
      %v329 = vadd.f32 %v258, %v314
      %v330 = vadd.f32 %v259, %v314
      %v331 = vadd.f32 %v260, %v314
      %v332 = vadd.f32 %v261, %v314
      %v333 = vadd.f32 %v262, %v314
      %v334 = vadd.f32 %v263, %v314
      %v335 = vadd.f32 %v264, %v314
      %v336 = vadd.f32 %v265, %v314
      %v337 = vadd.f32 %v266, %v314
      %v338 = vadd.f32 %v267, %v314
      %v339 = vadd.f32 %v268, %v314
      %v340 = vadd.f32 %v269, %v314
      %v341 = vadd.f32 %v270, %v314
      %v342 = vadd.f32 %v271, %v314
      %v343 = vadd.f32 %v272, %v314
      %v344 = vadd.f32 %v273, %v314
      %v345 = vadd.f32 %v274, %v314
      %v346 = vadd.f32 %v275, %v314
      %v347 = vadd.f32 %v276, %v314
      %v348 = vadd.f32 %v277, %v314
      %v349 = vadd.f32 %v278, %v314
      %v350 = vadd.f32 %v279, %v314
      %v351 = vadd.f32 %v280, %v314
      %v352 = vadd.f32 %v281, %v314
      %v353 = vadd.f32 %v282, %v314
      %v354 = vadd.f32 %v283, %v314
      %v355 = vadd.f32 %v284, %v314
      %v356 = vadd.f32 %v285, %v314
      %v357 = vadd.f32 %v286, %v314
      %v358 = vadd.f32 %v287, %v314
      %v359 = vadd.f32 %v288, %v314
      %v360 = vadd.f32 %v289, %v314
      %v361 = vadd.f32 %v290, %v314
      %v362 = vadd.f32 %v291, %v314
      %v363 = vadd.f32 %v292, %v314
      %v364 = vadd.f32 %v293, %v314
      %v365 = vadd.f32 %v294, %v314
      %v366 = vadd.f32 %v295, %v314
      %v367 = vadd.f32 %v296, %v314
      %v368 = vadd.f32 %v297, %v314
      %v369 = vadd.f32 %v298, %v314
      %v370 = vadd.f32 %v299, %v314
      %v371 = vadd.f32 %v300, %v314
      %v372 = vadd.f32 %v301, %v314
      %v373 = vadd.f32 %v302, %v314
      %v374 = vadd.f32 %v303, %v314
      %v375 = vadd.f32 %v304, %v314
      %v376 = vadd.f32 %v305, %v314
      %v377 = vadd.f32 %v306, %v314
      %v378 = vadd.f32 %v307, %v314
      %v379 = vadd.f32 %v308, %v314
      %380 = vst [vmem:[%s172] sm:$0xff] %v316
      %381 = vst [vmem:[%s172 + $0x8] sm:$0xff] %v317
      %382 = vst [vmem:[%s172 + $0x10] sm:$0xff] %v318
      %383 = vst [vmem:[%s172 + $0x18] sm:$0xff] %v319
      %384 = vst [vmem:[%s172 + $0x20] sm:$0xff] %v320
      %385 = vst [vmem:[%s172 + $0x28] sm:$0xff] %v321
      %386 = vst [vmem:[%s172 + $0x30] sm:$0xff] %v322
      %387 = vst [vmem:[%s172 + $0x38] sm:$0xff] %v323
      %388 = vst [vmem:[%s172 + $0x40] sm:$0xff] %v324
      %389 = vst [vmem:[%s172 + $0x48] sm:$0xff] %v325
      %390 = vst [vmem:[%s172 + $0x50] sm:$0xff] %v326
      %391 = vst [vmem:[%s172 + $0x58] sm:$0xff] %v327
      %392 = vst [vmem:[%s172 + $0x60] sm:$0xff] %v328
      %393 = vst [vmem:[%s172 + $0x68] sm:$0xff] %v329
      %394 = vst [vmem:[%s172 + $0x70] sm:$0xff] %v330
      %395 = vst [vmem:[%s172 + $0x78] sm:$0xff] %v331
      %396 = vst [vmem:[%s172 + $0x80] sm:$0xff] %v332
      %397 = vst [vmem:[%s172 + $0x88] sm:$0xff] %v333
      %398 = vst [vmem:[%s172 + $0x90] sm:$0xff] %v334
      %399 = vst [vmem:[%s172 + $0x98] sm:$0xff] %v335
      %400 = vst [vmem:[%s172 + $0xa0] sm:$0xff] %v336
      %401 = vst [vmem:[%s172 + $0xa8] sm:$0xff] %v337
      %402 = vst [vmem:[%s172 + $0xb0] sm:$0xff] %v338
      %403 = vst [vmem:[%s172 + $0xb8] sm:$0xff] %v339
      %404 = vst [vmem:[%s172 + $0xc0] sm:$0xff] %v340
      %405 = vst [vmem:[%s172 + $0xc8] sm:$0xff] %v341
      %406 = vst [vmem:[%s172 + $0xd0] sm:$0xff] %v342
      %407 = vst [vmem:[%s172 + $0xd8] sm:$0xff] %v343
      %408 = vst [vmem:[%s172 + $0xe0] sm:$0xff] %v344
      %409 = vst [vmem:[%s172 + $0xe8] sm:$0xff] %v345
      %410 = vst [vmem:[%s172 + $0xf0] sm:$0xff] %v346
      %411 = vst [vmem:[%s172 + $0xf8] sm:$0xff] %v347
      %412 = vst [vmem:[%s172 + $0x100] sm:$0xff] %v348
      %413 = vst [vmem:[%s172 + $0x108] sm:$0xff] %v349
      %414 = vst [vmem:[%s172 + $0x110] sm:$0xff] %v350
      %415 = vst [vmem:[%s172 + $0x118] sm:$0xff] %v351
      %416 = vst [vmem:[%s172 + $0x120] sm:$0xff] %v352
      %417 = vst [vmem:[%s172 + $0x128] sm:$0xff] %v353
      %418 = vst [vmem:[%s172 + $0x130] sm:$0xff] %v354
      %419 = vst [vmem:[%s172 + $0x138] sm:$0xff] %v355
      %420 = vst [vmem:[%s172 + $0x140] sm:$0xff] %v356
      %421 = vst [vmem:[%s172 + $0x148] sm:$0xff] %v357
      %422 = vst [vmem:[%s172 + $0x150] sm:$0xff] %v358
      %423 = vst [vmem:[%s172 + $0x158] sm:$0xff] %v359
      %424 = vst [vmem:[%s172 + $0x160] sm:$0xff] %v360
      %425 = vst [vmem:[%s172 + $0x168] sm:$0xff] %v361
      %426 = vst [vmem:[%s172 + $0x170] sm:$0xff] %v362
      %427 = vst [vmem:[%s172 + $0x178] sm:$0xff] %v363
      %428 = vst [vmem:[%s172 + $0x180] sm:$0xff] %v364
      %429 = vst [vmem:[%s172 + $0x188] sm:$0xff] %v365
      %430 = vst [vmem:[%s172 + $0x190] sm:$0xff] %v366
      %431 = vst [vmem:[%s172 + $0x198] sm:$0xff] %v367
      %432 = vst [vmem:[%s172 + $0x1a0] sm:$0xff] %v368
      %433 = vst [vmem:[%s172 + $0x1a8] sm:$0xff] %v369
      %434 = vst [vmem:[%s172 + $0x1b0] sm:$0xff] %v370
      %435 = vst [vmem:[%s172 + $0x1b8] sm:$0xff] %v371
      %436 = vst [vmem:[%s172 + $0x1c0] sm:$0xff] %v372
      %437 = vst [vmem:[%s172 + $0x1c8] sm:$0xff] %v373
      %438 = vst [vmem:[%s172 + $0x1d0] sm:$0xff] %v374
      %439 = vst [vmem:[%s172 + $0x1d8] sm:$0xff] %v375
      %440 = vst [vmem:[%s172 + $0x1e0] sm:$0xff] %v376
      %441 = vst [vmem:[%s172 + $0x1e8] sm:$0xff] %v377
      %442 = vst [vmem:[%s172 + $0x1f0] sm:$0xff] %v378
      %443 = vst [vmem:[%s172 + $0x1f8] sm:$0xff] %v379
      %s444 = smul.u32 64, %s14
      %p445 = scmp.lt.s32.totalorder %s444, 127
      %s446 = scalar_select %p445, %s444, 127
      %s447 = smul.addr %s446, 8
      %s448 = scalar_lea.vmem %s3, %s447
      // Predicated region
      $region33: #{gat_forward.11} parent=31 // pred_check
        %p449 = pneg %p100
      $region34: #{gat_forward.11} parent=31 // pred_check_branch
        %451 = sbr.rel (%p449) target = $region36
      $region35: #{gat_forward.11} parent=31 // pred_region
        %s452 = smul.u32 64, %s14
      $region36: #{gat_forward.11} parent=31 // pred_fallthru
        _
    $region32: #{gat_forward.11} parent=5 // pred_fallthru
      _
    %p453 = scmp.le.s32.totalorder 2, %s9
    // Predicated region
    $region37: #{gat_forward.11} parent=5 // pred_check
      %p454 = pneg %p453
    $region38: #{gat_forward.11} parent=5 // pred_check_branch
      %456 = sbr.rel (%p454) target = $region40
    $region39: #{gat_forward.11} parent=5 // pred_region
      %s457 = ssub.s32 %s9, 2
      // Predicated region
      $region41: #{gat_forward.11} parent=39 // pred_check
        %p458 = pneg %p106
      $region42: #{gat_forward.11} parent=39 // pred_check_branch
        %460 = sbr.rel (%p458) target = $region44
      $region43: #{gat_forward.11} parent=39 // pred_region
        %s461 = smul.u32 64, %s15
        %p462 = scmp.lt.s32.totalorder %s461, 127
        %s463 = scalar_select %p462, %s461, 127
        %s464 = smul.addr %s463, 8
        %s465 = scalar_lea.vmem %s3, %s464
      $region44: #{gat_forward.11} parent=39 // pred_fallthru
        _
    $region40: #{gat_forward.11} parent=5 // pred_fallthru
      _
  $region6: #{gat_forward.11} parent=0 // loop_footer
    %s13 = sadd.s32 1, %s9
  $region7: #{gat_forward.11} parent=0 // loop_footer_branch
    %8 = sbr.rel target = $region3
  $region8: #{gat_forward.11} parent=0 // loop_exit
    _

</llo_original>
